<compile_context>
chip_gen: v6e
topology: v6e:2x2x1
jax: 0.10.0
libtpu: 0.0.40
codegen_flags: <defaults>
</compile_context>

<pallas_src>
import jax
import jax.numpy as jnp
from jax import lax
from jax.experimental import pallas as pl
from jax.experimental.pallas import tpu as pltpu

EPS = 1e-3  # nn.BatchNorm2d(eps=0.001)

UNIT_ORDER = ("branch1x1", "branch5x5_1", "branch5x5_2",
              "branch3x3_1", "branch3x3_2", "branch_pool")
# Row order of the merged block-diagonal 1x1 matmul.
ONE_BY_ONE_ORDER = ("branch1x1", "branch5x5_1", "branch3x3_1", "branch_pool")


def _align8(n):
    return (n + 7) // 8 * 8


# ----------------------------- fused Pallas kernel -----------------------------

def _make_dense_kernel(layers_meta, cout, H, W, c0_pad, reg5_off, reg3_off):
    """Builds the fused DenseModule kernel (one batch element per grid step)."""
    HW = H * W
    nw = 3 * len(layers_meta)

    def kernel(*refs):
        x_ref, pc_ref = refs[0], refs[1]          # x: (C0_pad, HW); pc: (P, 1)
        w_refs = refs[2:2 + nw]                   # per layer: W1_blockdiag, W5, W3
        out_ref = refs[2 + nw]                    # (C_final_pad, HW): running acts
        stk_ref = refs[3 + nw]                    # bf16 stacking scratch

        # ---- boundary masks, hoisted: shared by every conv tap and the max pool.
        col = lax.broadcasted_iota(jnp.int32, (1, HW), 1)   # flattened pixel index
        col_w = col % W                                     # position within a row
        masks = {}
        for di in range(-2, 3):
            for dj in range(-2, 3):
                if di == 0 and dj == 0:
                    continue
                conds = []
                if di > 0:
                    conds.append(col < HW - di * W)
                elif di < 0:
                    conds.append(col >= -di * W)
                if dj > 0:
                    conds.append(col_w < W - dj)
                elif dj < 0:
                    conds.append(col_w >= -dj)
                m = conds[0]
                for c in conds[1:]:
                    m = jnp.logical_and(m, c)
                masks[(di, dj)] = m

        def shifted(src, di, dj, fill):
            # out[c, h*W + w] = src[c, (h+di)*W + (w+dj)]; `fill` out of bounds.
            if di == 0 and dj == 0:
                return src
            r = pltpu.roll(src, shift=(-(di * W + dj)) % HW, axis=1)
            return jnp.where(masks[(di, dj)], r, fill)

        def maxpool3(src):
            # F.max_pool2d(kernel_size=3, stride=1, padding=1): -inf outside.
            acc = src                              # center tap always in-bounds
            for di in (-1, 0, 1):
                for dj in (-1, 0, 1):
                    if di == 0 and dj == 0:
                        continue
                    acc = jnp.maximum(acc, shifted(src, di, dj, -jnp.inf))
            return acc

        def pc_col(off, length):
            return pc_ref[off:off + length, :]     # (length, 1) f32 column

        def conv_kxk(yin, w_ref, k, s_off, h_off, b_off, reg_off):
            # BN(running stats) -> ReLU -> KxK 'same' conv as ONE stacked-K matmul.
            pad = (k - 1) // 2
            y = jnp.maximum(yin * pc_col(s_off, cout) + pc_col(h_off, cout), 0.0)
            t = 0
            for di in range(-pad, pad + 1):
                for dj in range(-pad, pad + 1):
                    stk_ref[reg_off + t * cout: reg_off + (t + 1) * cout, :] = (
                        shifted(y, di, dj, 0.0).astype(jnp.bfloat16))
                    t += 1
            acc = jnp.dot(w_ref[...], stk_ref[reg_off: reg_off + k * k * cout, :],
                          preferred_element_type=jnp.float32)
            return acc + pc_col(b_off, cout)

        # The running dense activation lives in the output block (channels grow).
        out_ref[0:c0_pad, :] = x_ref[...]

        for l, meta in enumerate(layers_meta):
            cin_p = meta["cin_p"]
            w1_ref, w5_ref, w3_ref = w_refs[3 * l:3 * l + 3]
            src = out_ref[0:cin_p, :]
            mp = maxpool3(src)

            # Four leading 1x1 units merged into one block-diagonal matmul:
            # stack their BN+ReLU'd inputs (src, src, src, maxpool(src)) on sublanes.
            inputs4 = (src, src, src, mp)
            for j in range(4):
                s = pc_col(meta["s1"][j], cin_p)
                h = pc_col(meta["h1"][j], cin_p)
                stk_ref[j * cin_p:(j + 1) * cin_p, :] = (
                    jnp.maximum(inputs4[j] * s + h, 0.0).astype(jnp.bfloat16))
            o4 = jnp.dot(w1_ref[...], stk_ref[0:4 * cin_p, :],
                         preferred_element_type=jnp.float32)
            o4 = o4 + pc_col(meta["b1"], 4 * cout)
            b1 = o4[0 * cout:1 * cout, :]          # branch1x1
            y5 = o4[1 * cout:2 * cout, :]          # branch5x5_1 output
            y3 = o4[2 * cout:3 * cout, :]          # branch3x3_1 output
            bp = o4[3 * cout:4 * cout, :]          # branch_pool

            b5 = conv_kxk(y5, w5_ref, meta["k5"], meta["s5"], meta["h5"],
                          meta["b5"], reg5_off)
            b3 = conv_kxk(y3, w3_ref, meta["k3"], meta["s3"], meta["h3"],
                          meta["b3"], reg3_off)

            # torch.cat([branch1x1, branch5x5, branch3x3, branch_pool], dim=1)
            out_ref[cin_p + 0 * cout: cin_p + 1 * cout, :] = b1
            out_ref[cin_p + 1 * cout: cin_p + 2 * cout, :] = b5
            out_ref[cin_p + 2 * cout: cin_p + 3 * cout, :] = b3
            out_ref[cin_p + 3 * cout: cin_p + 4 * cout, :] = bp

    return kernel


# ----------------------------- wrapper -----------------------------

def dense_module_forward(params, x):
    """DenseModule forward.  x: (N, C, H, W) float32 (NCHW, as in PyTorch)."""
    N, C0, H, W = x.shape
    HW = H * W
    cout = params[0]["branch1x1"]["w"].shape[-1]
    L = len(params)
    C0_pad = _align8(C0)
    pad0 = C0_pad - C0
    layer_cin_p = [C0_pad + l * 4 * cout for l in range(L)]
    c_final = C0 + L * 4 * cout
    c_final_p = C0_pad + L * 4 * cout
    # NOTE: segment-boundary alignment assumes 4*cout is a multiple of 8 (true
    # here with cout=8); other sizes remain correct but fall back to masked stores.

    def pad_cvec(v):          # insert zeros for the C0 -> C0_pad pad channels
        v = v.astype(jnp.float32)
        if pad0 == 0:
            return v
        return jnp.concatenate([v[:C0], jnp.zeros((pad0,), jnp.float32), v[C0:]])

    def pad_cmat(m):          # (cout, cin) -> (cout, cin_p)
        if pad0 == 0:
            return m
        return jnp.concatenate(
            [m[:, :C0], jnp.zeros((m.shape[0], pad0), m.dtype), m[:, C0:]], axis=1)

    # ---- pack all per-channel params (folded BN scale/shift + conv biases) into
    # ---- one column slab; one weight matrix per matmul (3 per layer), bf16.
    pc_chunks = []
    pc_len = 0

    def add_pc(v):
        nonlocal pc_len
        off = pc_len
        seg = _align8(v.shape[0])
        pc_chunks.append(jnp.pad(v.astype(jnp.float32), (0, seg - v.shape[0])))
        pc_len += seg
        return off

    layers_meta = []
    weight_arrays = []
    for l, layer in enumerate(params):
        cin_p = layer_cin_p[l]
        meta = {"cin_p": cin_p, "s1": [], "h1": []}
        w_blocks, biases = [], []
        for name in ONE_BY_ONE_ORDER:
            u = layer[name]
            scale = u["gamma"] * lax.rsqrt(u["var"] + EPS)   # folded inference BN
            shift = u["beta"] - u["mean"] * scale
            meta["s1"].append(add_pc(pad_cvec(scale)))
            meta["h1"].append(add_pc(pad_cvec(shift)))
            w_blocks.append(pad_cmat(u["w"][0, 0].T))        # (cout, cin_p)
            biases.append(u["b"])
        meta["b1"] = add_pc(jnp.concatenate(biases))         # (4*cout,)
        w1 = jnp.zeros((4 * cout, 4 * cin_p), jnp.float32)   # block-diag 1x1 merge
        for j, wb in enumerate(w_blocks):
            w1 = w1.at[j * cout:(j + 1) * cout, j * cin_p:(j + 1) * cin_p].set(wb)
        weight_arrays.append(w1.astype(jnp.bfloat16))

        for name, tag in (("branch5x5_2", "5"), ("branch3x3_2", "3")):
            u = layer[name]
            k = u["w"].shape[0]
            scale = u["gamma"] * lax.rsqrt(u["var"] + EPS)
            shift = u["beta"] - u["mean"] * scale
            meta["k" + tag] = k
            meta["s" + tag] = add_pc(scale)
            meta["h" + tag] = add_pc(shift)
            meta["b" + tag] = add_pc(u["b"])
            # (K,K,Cin,Cout) HWIO -> (Cout, K*K*Cin) stacked-tap matmul weight.
            wflat = jnp.transpose(u["w"], (3, 0, 1, 2)).reshape(cout, k * k * cout)
            weight_arrays.append(wflat.astype(jnp.bfloat16))
        layers_meta.append(meta)

    pc = jnp.concatenate(pc_chunks).reshape(pc_len, 1)

    # Disjoint stacking-scratch regions (1x1 stack / 5x5 taps / 3x3 taps).
    k5 = params[0]["branch5x5_2"]["w"].shape[0]
    k3 = params[0]["branch3x3_2"]["w"].shape[0]
    reg5_off = _align8(4 * layer_cin_p[-1])
    reg3_off = _align8(reg5_off + k5 * k5 * cout)
    stk_rows = _align8(reg3_off + k3 * k3 * cout)

    kernel = _make_dense_kernel(layers_meta, cout, H, W, C0_pad, reg5_off, reg3_off)

    x_p = x.astype(jnp.float32).reshape(N, C0, HW)
    if pad0:
        x_p = jnp.pad(x_p, ((0, 0), (0, pad0), (0, 0)))

    in_specs = [pl.BlockSpec((None, C0_pad, HW), lambda n: (n, 0, 0)),
                pl.BlockSpec((pc_len, 1), lambda n: (0, 0))]
    in_specs += [pl.BlockSpec(w.shape, lambda n: (0, 0)) for w in weight_arrays]

    # Advisory cost estimate for the XLA scheduler.
    flops = 0
    for layer in params:
        for name in UNIT_ORDER:
            k, _, ci, co = layer[name]["w"].shape
            flops += 2 * k * k * ci * co * HW
    flops *= N
    param_bytes = pc_len * 4 + sum(w.size * 2 for w in weight_arrays)
    bytes_accessed = N * C0_pad * HW * 4 + param_bytes + N * c_final_p * HW * 4

    # Explicit VMEM budget: double-buffered x/out/param blocks + scratch, with
    # headroom, capped at 32 MiB (valid scoped limit on v5e/v6e/v7x alike).
    def padded_bytes(shape, itemsize):
        r = shape[-2] if len(shape) >= 2 else 1
        c = shape[-1]
        lead = 1
        for d in shape[:-2]:
            lead *= d
        return lead * _align8(r) * ((c + 127) // 128 * 128) * itemsize

    vmem_est = (2 * padded_bytes((C0_pad, HW), 4) +
                2 * padded_bytes((c_final_p, HW), 4) +
                2 * padded_bytes((pc_len, 1), 4) +
                2 * sum(padded_bytes(w.shape, 2) for w in weight_arrays) +
                padded_bytes((stk_rows, HW), 2))
    vmem_limit = int(min(32 * 1024 * 1024, max(4 * 1024 * 1024, 2 * vmem_est)))

    out = pl.pallas_call(
        kernel,
        out_shape=jax.ShapeDtypeStruct((N, c_final_p, HW), jnp.float32),
        grid=(N,),
        in_specs=in_specs,
        out_specs=pl.BlockSpec((None, c_final_p, HW), lambda n: (n, 0, 0)),
        scratch_shapes=[pltpu.VMEM((stk_rows, HW), jnp.bfloat16)],
        compiler_params=pltpu.CompilerParams(
            dimension_semantics=("parallel",),
            vmem_limit_bytes=vmem_limit),
        cost_estimate=pl.CostEstimate(flops=flops, transcendentals=0,
                                      bytes_accessed=bytes_accessed),
    )(x_p, pc, *weight_arrays)

    if pad0:                                  # strip the C0 -> C0_pad pad rows
        out = jnp.concatenate([out[:, :C0], out[:, C0_pad:]], axis=1)
    return out.reshape(N, c_final, H, W)


# ----------------------------- parameter init -----------------------------

def init_basic_conv(key, cin, cout, k):
    kw_, kb, kg, kbeta, km, kv = jax.random.split(key, 6)
    fan_in = cin * k * k
    return {
        "w": jax.random.normal(kw_, (k, k, cin, cout), jnp.float32) / jnp.sqrt(fan_in),
        "b": 0.05 * jax.random.normal(kb, (cout,), jnp.float32),
        "gamma": 1.0 + 0.1 * jax.random.normal(kg, (cin,), jnp.float32),
        "beta": 0.1 * jax.random.normal(kbeta, (cin,), jnp.float32),
        "mean": 0.1 * jax.random.normal(km, (cin,), jnp.float32),
        "var": 1.0 + 0.5 * jax.random.uniform(kv, (cin,), jnp.float32),
    }


def init_inception(key, cin, cout):
    keys = jax.random.split(key, 6)
    return {
        "branch1x1": init_basic_conv(keys[0], cin, cout, 1),
        "branch5x5_1": init_basic_conv(keys[1], cin, cout, 1),
        "branch5x5_2": init_basic_conv(keys[2], cout, cout, 5),
        "branch3x3_1": init_basic_conv(keys[3], cin, cout, 1),
        "branch3x3_2": init_basic_conv(keys[4], cout, cout, 3),
        "branch_pool": init_basic_conv(keys[5], cin, cout, 1),
    }


def init_dense(key, num_dense, cin, cout):
    params = []
    for _ in range(num_dense):
        key, sub = jax.random.split(key)
        params.append(init_inception(sub, cin, cout))
        cin += 4 * cout
    return params


# ----------------------------- pure-JAX reference (NCHW) -----------------------------

def _ref_basic_conv(p, x):
    scale = p["gamma"] * lax.rsqrt(p["var"] + EPS)
    shift = p["beta"] - p["mean"] * scale
    y = jnp.maximum(x * scale.reshape(1, -1, 1, 1) + shift.reshape(1, -1, 1, 1), 0.0)
    k = p["w"].shape[0]
    pad = (k - 1) // 2
    out = lax.conv_general_dilated(
        y, p["w"], (1, 1), [(pad, pad), (pad, pad)],
        dimension_numbers=("NCHW", "HWIO", "NCHW"),
        precision=lax.Precision.HIGHEST)
    return out + p["b"].reshape(1, -1, 1, 1)


def _ref_maxpool(x):
    return lax.reduce_window(x, -jnp.inf, lax.max, (1, 1, 3, 3), (1, 1, 1, 1),
                             [(0, 0), (0, 0), (1, 1), (1, 1)])


def _ref_inception(p, x):
    b1 = _ref_basic_conv(p["branch1x1"], x)
    b5 = _ref_basic_conv(p["branch5x5_2"], _ref_basic_conv(p["branch5x5_1"], x))
    b3 = _ref_basic_conv(p["branch3x3_2"], _ref_basic_conv(p["branch3x3_1"], x))
    bp = _ref_basic_conv(p["branch_pool"], _ref_maxpool(x))
    return jnp.concatenate([b1, b5, b3, bp], axis=1)


def _ref_dense(params, x):
    for p in params:
        x = jnp.concatenate([x, _ref_inception(p, x)], axis=1)
    return x


# ----------------------------- main -----------------------------

if __name__ == "__main__":
    key = jax.random.PRNGKey(0)
    kx, kp = jax.random.split(key)

    N, C0, H, W = 2, 4, 16, 16            # small NCHW input, per the module
    num_dense, cout = 2, 8                # DenseModule(2, 4, 8)

    x = jax.random.normal(kx, (N, C0, H, W), jnp.float32)
    params = init_dense(kp, num_dense, C0, cout)

    out = jax.jit(dense_module_forward)(params, x)
    out = jax.block_until_ready(out)

    expected_c = C0 + num_dense * 4 * cout   # 4 + 2*32 = 68
    assert out.shape == (N, expected_c, H, W), out.shape

    ref = _ref_dense(params, x)
    max_err = float(jnp.max(jnp.abs(out - ref)))
    # Matmul operands are bf16 (f32 accumulation) == default MXU precision;
    # the reference uses HIGHEST, so allow a small tolerance.
    assert jnp.allclose(out, ref, atol=2e-2, rtol=2e-2), max_err

    print("KERNEL_OK")
</pallas_src>

<mosaic_0001>
module attributes {stable_mosaic.version = 11 : i64} {
  func.func @kernel(%arg0: i32, %arg1: memref<1x8x256xf32, #tpu.memory_space<vmem>>, %arg2: memref<544x1xf32, #tpu.memory_space<vmem>>, %arg3: memref<32x32xbf16, #tpu.memory_space<vmem>>, %arg4: memref<8x200xbf16, #tpu.memory_space<vmem>>, %arg5: memref<8x72xbf16, #tpu.memory_space<vmem>>, %arg6: memref<32x160xbf16, #tpu.memory_space<vmem>>, %arg7: memref<8x200xbf16, #tpu.memory_space<vmem>>, %arg8: memref<8x72xbf16, #tpu.memory_space<vmem>>, %arg9: memref<1x72x256xf32, #tpu.memory_space<vmem>>, %arg10: memref<432x256xbf16, #tpu.memory_space<vmem>>) attributes {dimension_semantics = [#tpu.dimension_semantics<parallel>], iteration_bounds = array<i64: 2>, scalar_prefetch = 0 : i64, scratch_operands = 1 : i64, tpu.core_type = #tpu.core_type<tc>, window_params = [{transform_indices = @transform_0, window_bounds = array<i64: 1, 8, 256>}, {pipeline_mode = #tpu.pipeline_mode<synchronous>, transform_indices = @transform_1, window_bounds = array<i64: 544, 1>}, {pipeline_mode = #tpu.pipeline_mode<synchronous>, transform_indices = @transform_2, window_bounds = array<i64: 32, 32>}, {pipeline_mode = #tpu.pipeline_mode<synchronous>, transform_indices = @transform_3, window_bounds = array<i64: 8, 200>}, {pipeline_mode = #tpu.pipeline_mode<synchronous>, transform_indices = @transform_4, window_bounds = array<i64: 8, 72>}, {pipeline_mode = #tpu.pipeline_mode<synchronous>, transform_indices = @transform_5, window_bounds = array<i64: 32, 160>}, {pipeline_mode = #tpu.pipeline_mode<synchronous>, transform_indices = @transform_6, window_bounds = array<i64: 8, 200>}, {pipeline_mode = #tpu.pipeline_mode<synchronous>, transform_indices = @transform_7, window_bounds = array<i64: 8, 72>}, {transform_indices = @transform_8, window_bounds = array<i64: 1, 72, 256>}]} {
    %0 = tpu.iota {dimensions = array<i32: 1>} : vector<1x256xi32>
    %c16_i32 = arith.constant 16 : i32
    %c0_i32 = arith.constant 0 : i32
    %1 = arith.cmpi eq, %c16_i32, %c0_i32 : i32
    %c1_i32 = arith.constant 1 : i32
    %2 = arith.select %1, %c1_i32, %c16_i32 : i32
    %3 = vector.broadcast %2 : i32 to vector<1x256xi32>
    %4 = arith.remsi %0, %3 : vector<1x256xi32>
    %c0_i32_0 = arith.constant 0 : i32
    %5 = vector.broadcast %c0_i32_0 : i32 to vector<1x256xi32>
    %6 = arith.cmpi ne, %4, %5 : vector<1x256xi32>
    %c0_i32_1 = arith.constant 0 : i32
    %7 = vector.broadcast %c0_i32_1 : i32 to vector<1x256xi32>
    %8 = arith.cmpi slt, %4, %7 : vector<1x256xi32>
    %c0_i32_2 = arith.constant 0 : i32
    %9 = arith.cmpi slt, %2, %c0_i32_2 : i32
    %10 = vector.broadcast %9 : i1 to vector<1x256xi1>
    %11 = vector.broadcast %10 : vector<1x256xi1> to vector<1x256xi1>
    %12 = arith.xori %8, %11 : vector<1x256xi1>
    %13 = arith.andi %12, %6 : vector<1x256xi1>
    %14 = vector.broadcast %2 : i32 to vector<1x256xi32>
    %15 = arith.addi %4, %14 : vector<1x256xi32>
    %16 = arith.select %13, %15, %4 : vector<1x256xi1>, vector<1x256xi32>
    %c32_i32 = arith.constant 32 : i32
    %17 = vector.broadcast %c32_i32 : i32 to vector<1x256xi32>
    %18 = arith.cmpi sge, %0, %17 : vector<1x256xi32>
    %c2_i32 = arith.constant 2 : i32
    %19 = vector.broadcast %c2_i32 : i32 to vector<1x256xi32>
    %20 = arith.cmpi sge, %16, %19 : vector<1x256xi32>
    %21 = arith.andi %18, %20 : vector<1x256xi1>
    %c32_i32_3 = arith.constant 32 : i32
    %22 = vector.broadcast %c32_i32_3 : i32 to vector<1x256xi32>
    %23 = arith.cmpi sge, %0, %22 : vector<1x256xi32>
    %c1_i32_4 = arith.constant 1 : i32
    %24 = vector.broadcast %c1_i32_4 : i32 to vector<1x256xi32>
    %25 = arith.cmpi sge, %16, %24 : vector<1x256xi32>
    %26 = arith.andi %23, %25 : vector<1x256xi1>
    %c32_i32_5 = arith.constant 32 : i32
    %27 = vector.broadcast %c32_i32_5 : i32 to vector<1x256xi32>
    %28 = arith.cmpi sge, %0, %27 : vector<1x256xi32>
    %c32_i32_6 = arith.constant 32 : i32
    %29 = vector.broadcast %c32_i32_6 : i32 to vector<1x256xi32>
    %30 = arith.cmpi sge, %0, %29 : vector<1x256xi32>
    %c15_i32 = arith.constant 15 : i32
    %31 = vector.broadcast %c15_i32 : i32 to vector<1x256xi32>
    %32 = arith.cmpi slt, %16, %31 : vector<1x256xi32>
    %33 = arith.andi %30, %32 : vector<1x256xi1>
    %c32_i32_7 = arith.constant 32 : i32
    %34 = vector.broadcast %c32_i32_7 : i32 to vector<1x256xi32>
    %35 = arith.cmpi sge, %0, %34 : vector<1x256xi32>
    %c14_i32 = arith.constant 14 : i32
    %36 = vector.broadcast %c14_i32 : i32 to vector<1x256xi32>
    %37 = arith.cmpi slt, %16, %36 : vector<1x256xi32>
    %38 = arith.andi %35, %37 : vector<1x256xi1>
    %c16_i32_8 = arith.constant 16 : i32
    %39 = vector.broadcast %c16_i32_8 : i32 to vector<1x256xi32>
    %40 = arith.cmpi sge, %0, %39 : vector<1x256xi32>
    %c2_i32_9 = arith.constant 2 : i32
    %41 = vector.broadcast %c2_i32_9 : i32 to vector<1x256xi32>
    %42 = arith.cmpi sge, %16, %41 : vector<1x256xi32>
    %43 = arith.andi %40, %42 : vector<1x256xi1>
    %c16_i32_10 = arith.constant 16 : i32
    %44 = vector.broadcast %c16_i32_10 : i32 to vector<1x256xi32>
    %45 = arith.cmpi sge, %0, %44 : vector<1x256xi32>
    %c1_i32_11 = arith.constant 1 : i32
    %46 = vector.broadcast %c1_i32_11 : i32 to vector<1x256xi32>
    %47 = arith.cmpi sge, %16, %46 : vector<1x256xi32>
    %48 = arith.andi %45, %47 : vector<1x256xi1>
    %c16_i32_12 = arith.constant 16 : i32
    %49 = vector.broadcast %c16_i32_12 : i32 to vector<1x256xi32>
    %50 = arith.cmpi sge, %0, %49 : vector<1x256xi32>
    %c16_i32_13 = arith.constant 16 : i32
    %51 = vector.broadcast %c16_i32_13 : i32 to vector<1x256xi32>
    %52 = arith.cmpi sge, %0, %51 : vector<1x256xi32>
    %c15_i32_14 = arith.constant 15 : i32
    %53 = vector.broadcast %c15_i32_14 : i32 to vector<1x256xi32>
    %54 = arith.cmpi slt, %16, %53 : vector<1x256xi32>
    %55 = arith.andi %52, %54 : vector<1x256xi1>
    %c16_i32_15 = arith.constant 16 : i32
    %56 = vector.broadcast %c16_i32_15 : i32 to vector<1x256xi32>
    %57 = arith.cmpi sge, %0, %56 : vector<1x256xi32>
    %c14_i32_16 = arith.constant 14 : i32
    %58 = vector.broadcast %c14_i32_16 : i32 to vector<1x256xi32>
    %59 = arith.cmpi slt, %16, %58 : vector<1x256xi32>
    %60 = arith.andi %57, %59 : vector<1x256xi1>
    %c2_i32_17 = arith.constant 2 : i32
    %61 = vector.broadcast %c2_i32_17 : i32 to vector<1x256xi32>
    %62 = arith.cmpi sge, %16, %61 : vector<1x256xi32>
    %c1_i32_18 = arith.constant 1 : i32
    %63 = vector.broadcast %c1_i32_18 : i32 to vector<1x256xi32>
    %64 = arith.cmpi sge, %16, %63 : vector<1x256xi32>
    %c15_i32_19 = arith.constant 15 : i32
    %65 = vector.broadcast %c15_i32_19 : i32 to vector<1x256xi32>
    %66 = arith.cmpi slt, %16, %65 : vector<1x256xi32>
    %c14_i32_20 = arith.constant 14 : i32
    %67 = vector.broadcast %c14_i32_20 : i32 to vector<1x256xi32>
    %68 = arith.cmpi slt, %16, %67 : vector<1x256xi32>
    %c240_i32 = arith.constant 240 : i32
    %69 = vector.broadcast %c240_i32 : i32 to vector<1x256xi32>
    %70 = arith.cmpi slt, %0, %69 : vector<1x256xi32>
    %c2_i32_21 = arith.constant 2 : i32
    %71 = vector.broadcast %c2_i32_21 : i32 to vector<1x256xi32>
    %72 = arith.cmpi sge, %16, %71 : vector<1x256xi32>
    %73 = arith.andi %70, %72 : vector<1x256xi1>
    %c240_i32_22 = arith.constant 240 : i32
    %74 = vector.broadcast %c240_i32_22 : i32 to vector<1x256xi32>
    %75 = arith.cmpi slt, %0, %74 : vector<1x256xi32>
    %c1_i32_23 = arith.constant 1 : i32
    %76 = vector.broadcast %c1_i32_23 : i32 to vector<1x256xi32>
    %77 = arith.cmpi sge, %16, %76 : vector<1x256xi32>
    %78 = arith.andi %75, %77 : vector<1x256xi1>
    %c240_i32_24 = arith.constant 240 : i32
    %79 = vector.broadcast %c240_i32_24 : i32 to vector<1x256xi32>
    %80 = arith.cmpi slt, %0, %79 : vector<1x256xi32>
    %c240_i32_25 = arith.constant 240 : i32
    %81 = vector.broadcast %c240_i32_25 : i32 to vector<1x256xi32>
    %82 = arith.cmpi slt, %0, %81 : vector<1x256xi32>
    %c15_i32_26 = arith.constant 15 : i32
    %83 = vector.broadcast %c15_i32_26 : i32 to vector<1x256xi32>
    %84 = arith.cmpi slt, %16, %83 : vector<1x256xi32>
    %85 = arith.andi %82, %84 : vector<1x256xi1>
    %c240_i32_27 = arith.constant 240 : i32
    %86 = vector.broadcast %c240_i32_27 : i32 to vector<1x256xi32>
    %87 = arith.cmpi slt, %0, %86 : vector<1x256xi32>
    %c14_i32_28 = arith.constant 14 : i32
    %88 = vector.broadcast %c14_i32_28 : i32 to vector<1x256xi32>
    %89 = arith.cmpi slt, %16, %88 : vector<1x256xi32>
    %90 = arith.andi %87, %89 : vector<1x256xi1>
    %c224_i32 = arith.constant 224 : i32
    %91 = vector.broadcast %c224_i32 : i32 to vector<1x256xi32>
    %92 = arith.cmpi slt, %0, %91 : vector<1x256xi32>
    %c2_i32_29 = arith.constant 2 : i32
    %93 = vector.broadcast %c2_i32_29 : i32 to vector<1x256xi32>
    %94 = arith.cmpi sge, %16, %93 : vector<1x256xi32>
    %95 = arith.andi %92, %94 : vector<1x256xi1>
    %c224_i32_30 = arith.constant 224 : i32
    %96 = vector.broadcast %c224_i32_30 : i32 to vector<1x256xi32>
    %97 = arith.cmpi slt, %0, %96 : vector<1x256xi32>
    %c1_i32_31 = arith.constant 1 : i32
    %98 = vector.broadcast %c1_i32_31 : i32 to vector<1x256xi32>
    %99 = arith.cmpi sge, %16, %98 : vector<1x256xi32>
    %100 = arith.andi %97, %99 : vector<1x256xi1>
    %c224_i32_32 = arith.constant 224 : i32
    %101 = vector.broadcast %c224_i32_32 : i32 to vector<1x256xi32>
    %102 = arith.cmpi slt, %0, %101 : vector<1x256xi32>
    %c224_i32_33 = arith.constant 224 : i32
    %103 = vector.broadcast %c224_i32_33 : i32 to vector<1x256xi32>
    %104 = arith.cmpi slt, %0, %103 : vector<1x256xi32>
    %c15_i32_34 = arith.constant 15 : i32
    %105 = vector.broadcast %c15_i32_34 : i32 to vector<1x256xi32>
    %106 = arith.cmpi slt, %16, %105 : vector<1x256xi32>
    %107 = arith.andi %104, %106 : vector<1x256xi1>
    %c224_i32_35 = arith.constant 224 : i32
    %108 = vector.broadcast %c224_i32_35 : i32 to vector<1x256xi32>
    %109 = arith.cmpi slt, %0, %108 : vector<1x256xi32>
    %c14_i32_36 = arith.constant 14 : i32
    %110 = vector.broadcast %c14_i32_36 : i32 to vector<1x256xi32>
    %111 = arith.cmpi slt, %16, %110 : vector<1x256xi32>
    %112 = arith.andi %109, %111 : vector<1x256xi1>
    %c0 = arith.constant 0 : index
    %c0_37 = arith.constant 0 : index
    %c0_38 = arith.constant 0 : index
    %113 = vector.load %arg1[%c0, %c0_37, %c0_38] : memref<1x8x256xf32, #tpu.memory_space<vmem>>, vector<1x8x256xf32>
    %114 = vector.shape_cast %113 : vector<1x8x256xf32> to vector<8x256xf32>
    %c0_39 = arith.constant 0 : index
    %c0_40 = arith.constant 0 : index
    %c0_41 = arith.constant 0 : index
    %115 = vector.load %arg9[%c0_39, %c0_40, %c0_41] : memref<1x72x256xf32, #tpu.memory_space<vmem>>, vector<1x8x256xf32>
    %116 = vector.shape_cast %115 : vector<1x8x256xf32> to vector<8x256xf32>
    %117 = vector.shape_cast %114 : vector<8x256xf32> to vector<1x8x256xf32>
    tpu.vector_store %arg9[%c0_39, %c0_40, %c0_41], %117 {strides = array<i32>} : memref<1x72x256xf32, #tpu.memory_space<vmem>>, vector<1x8x256xf32>,
    %c0_42 = arith.constant 0 : index
    %c0_43 = arith.constant 0 : index
    %c0_44 = arith.constant 0 : index
    %118 = vector.load %arg9[%c0_42, %c0_43, %c0_44] : memref<1x72x256xf32, #tpu.memory_space<vmem>>, vector<1x8x256xf32>
    %119 = vector.shape_cast %118 : vector<1x8x256xf32> to vector<8x256xf32>
    %c17_i32 = arith.constant 17 : i32
    %120 = tpu.dynamic_rotate %119 by %c17_i32 dim 1 : vector<8x256xf32>, i32 -> vector<8x256xf32>
    %cst = arith.constant 0xFF800000 : f32
    %121 = vector.shape_cast %48 : vector<1x256xi1> to vector<1x256xi1>
    %122 = vector.broadcast %121 : vector<1x256xi1> to vector<8x256xi1>
    %123 = vector.broadcast %cst : f32 to vector<8x256xf32>
    %124 = arith.select %122, %120, %123 : vector<8x256xi1>, vector<8x256xf32>
    %125 = arith.maximumf %119, %124 : vector<8x256xf32>
    %c16_i32_45 = arith.constant 16 : i32
    %126 = tpu.dynamic_rotate %119 by %c16_i32_45 dim 1 : vector<8x256xf32>, i32 -> vector<8x256xf32>
    %cst_46 = arith.constant 0xFF800000 : f32
    %127 = vector.shape_cast %50 : vector<1x256xi1> to vector<1x256xi1>
    %128 = vector.broadcast %127 : vector<1x256xi1> to vector<8x256xi1>
    %129 = vector.broadcast %cst_46 : f32 to vector<8x256xf32>
    %130 = arith.select %128, %126, %129 : vector<8x256xi1>, vector<8x256xf32>
    %131 = arith.maximumf %125, %130 : vector<8x256xf32>
    %c15_i32_47 = arith.constant 15 : i32
    %132 = tpu.dynamic_rotate %119 by %c15_i32_47 dim 1 : vector<8x256xf32>, i32 -> vector<8x256xf32>
    %cst_48 = arith.constant 0xFF800000 : f32
    %133 = vector.shape_cast %55 : vector<1x256xi1> to vector<1x256xi1>
    %134 = vector.broadcast %133 : vector<1x256xi1> to vector<8x256xi1>
    %135 = vector.broadcast %cst_48 : f32 to vector<8x256xf32>
    %136 = arith.select %134, %132, %135 : vector<8x256xi1>, vector<8x256xf32>
    %137 = arith.maximumf %131, %136 : vector<8x256xf32>
    %c1_i32_49 = arith.constant 1 : i32
    %138 = tpu.dynamic_rotate %119 by %c1_i32_49 dim 1 : vector<8x256xf32>, i32 -> vector<8x256xf32>
    %cst_50 = arith.constant 0xFF800000 : f32
    %139 = vector.shape_cast %64 : vector<1x256xi1> to vector<1x256xi1>
    %140 = vector.broadcast %139 : vector<1x256xi1> to vector<8x256xi1>
    %141 = vector.broadcast %cst_50 : f32 to vector<8x256xf32>
    %142 = arith.select %140, %138, %141 : vector<8x256xi1>, vector<8x256xf32>
    %143 = arith.maximumf %137, %142 : vector<8x256xf32>
    %c255_i32 = arith.constant 255 : i32
    %144 = tpu.dynamic_rotate %119 by %c255_i32 dim 1 : vector<8x256xf32>, i32 -> vector<8x256xf32>
    %cst_51 = arith.constant 0xFF800000 : f32
    %145 = vector.shape_cast %66 : vector<1x256xi1> to vector<1x256xi1>
    %146 = vector.broadcast %145 : vector<1x256xi1> to vector<8x256xi1>
    %147 = vector.broadcast %cst_51 : f32 to vector<8x256xf32>
    %148 = arith.select %146, %144, %147 : vector<8x256xi1>, vector<8x256xf32>
    %149 = arith.maximumf %143, %148 : vector<8x256xf32>
    %c241_i32 = arith.constant 241 : i32
    %150 = tpu.dynamic_rotate %119 by %c241_i32 dim 1 : vector<8x256xf32>, i32 -> vector<8x256xf32>
    %cst_52 = arith.constant 0xFF800000 : f32
    %151 = vector.shape_cast %78 : vector<1x256xi1> to vector<1x256xi1>
    %152 = vector.broadcast %151 : vector<1x256xi1> to vector<8x256xi1>
    %153 = vector.broadcast %cst_52 : f32 to vector<8x256xf32>
    %154 = arith.select %152, %150, %153 : vector<8x256xi1>, vector<8x256xf32>
    %155 = arith.maximumf %149, %154 : vector<8x256xf32>
    %c240_i32_53 = arith.constant 240 : i32
    %156 = tpu.dynamic_rotate %119 by %c240_i32_53 dim 1 : vector<8x256xf32>, i32 -> vector<8x256xf32>
    %cst_54 = arith.constant 0xFF800000 : f32
    %157 = vector.shape_cast %80 : vector<1x256xi1> to vector<1x256xi1>
    %158 = vector.broadcast %157 : vector<1x256xi1> to vector<8x256xi1>
    %159 = vector.broadcast %cst_54 : f32 to vector<8x256xf32>
    %160 = arith.select %158, %156, %159 : vector<8x256xi1>, vector<8x256xf32>
    %161 = arith.maximumf %155, %160 : vector<8x256xf32>
    %c239_i32 = arith.constant 239 : i32
    %162 = tpu.dynamic_rotate %119 by %c239_i32 dim 1 : vector<8x256xf32>, i32 -> vector<8x256xf32>
    %cst_55 = arith.constant 0xFF800000 : f32
    %163 = vector.shape_cast %85 : vector<1x256xi1> to vector<1x256xi1>
    %164 = vector.broadcast %163 : vector<1x256xi1> to vector<8x256xi1>
    %165 = vector.broadcast %cst_55 : f32 to vector<8x256xf32>
    %166 = arith.select %164, %162, %165 : vector<8x256xi1>, vector<8x256xf32>
    %167 = arith.maximumf %161, %166 : vector<8x256xf32>
    %c0_56 = arith.constant 0 : index
    %c0_57 = arith.constant 0 : index
    %168 = vector.load %arg2[%c0_56, %c0_57] : memref<544x1xf32, #tpu.memory_space<vmem>>, vector<8x1xf32>
    %c8 = arith.constant 8 : index
    %c0_58 = arith.constant 0 : index
    %169 = vector.load %arg2[%c8, %c0_58] : memref<544x1xf32, #tpu.memory_space<vmem>>, vector<8x1xf32>
    %170 = vector.broadcast %168 : vector<8x1xf32> to vector<8x256xf32>
    %171 = arith.mulf %119, %170 : vector<8x256xf32>
    %172 = vector.broadcast %169 : vector<8x1xf32> to vector<8x256xf32>
    %173 = arith.addf %171, %172 : vector<8x256xf32>
    %cst_59 = arith.constant 0.000000e+00 : f32
    %174 = vector.broadcast %cst_59 : f32 to vector<8x256xf32>
    %175 = arith.maximumf %173, %174 : vector<8x256xf32>
    %176 = arith.truncf %175 : vector<8x256xf32> to vector<8x256xbf16>
    %c0_60 = arith.constant 0 : index
    %c0_61 = arith.constant 0 : index
    %177 = vector.load %arg10[%c0_60, %c0_61] : memref<432x256xbf16, #tpu.memory_space<vmem>>, vector<8x256xbf16>
    tpu.vector_store %arg10[%c0_60, %c0_61], %176 {strides = array<i32>} : memref<432x256xbf16, #tpu.memory_space<vmem>>, vector<8x256xbf16>,
    %c16 = arith.constant 16 : index
    %c0_62 = arith.constant 0 : index
    %178 = vector.load %arg2[%c16, %c0_62] : memref<544x1xf32, #tpu.memory_space<vmem>>, vector<8x1xf32>
    %c24 = arith.constant 24 : index
    %c0_63 = arith.constant 0 : index
    %179 = vector.load %arg2[%c24, %c0_63] : memref<544x1xf32, #tpu.memory_space<vmem>>, vector<8x1xf32>
    %180 = vector.broadcast %178 : vector<8x1xf32> to vector<8x256xf32>
    %181 = arith.mulf %119, %180 : vector<8x256xf32>
    %182 = vector.broadcast %179 : vector<8x1xf32> to vector<8x256xf32>
    %183 = arith.addf %181, %182 : vector<8x256xf32>
    %cst_64 = arith.constant 0.000000e+00 : f32
    %184 = vector.broadcast %cst_64 : f32 to vector<8x256xf32>
    %185 = arith.maximumf %183, %184 : vector<8x256xf32>
    %186 = arith.truncf %185 : vector<8x256xf32> to vector<8x256xbf16>
    %c8_65 = arith.constant 8 : index
    %c0_66 = arith.constant 0 : index
    %187 = vector.load %arg10[%c8_65, %c0_66] : memref<432x256xbf16, #tpu.memory_space<vmem>>, vector<8x256xbf16>
    tpu.vector_store %arg10[%c8_65, %c0_66], %186 {strides = array<i32>} : memref<432x256xbf16, #tpu.memory_space<vmem>>, vector<8x256xbf16>,
    %c32 = arith.constant 32 : index
    %c0_67 = arith.constant 0 : index
    %188 = vector.load %arg2[%c32, %c0_67] : memref<544x1xf32, #tpu.memory_space<vmem>>, vector<8x1xf32>
    %c40 = arith.constant 40 : index
    %c0_68 = arith.constant 0 : index
    %189 = vector.load %arg2[%c40, %c0_68] : memref<544x1xf32, #tpu.memory_space<vmem>>, vector<8x1xf32>
    %190 = vector.broadcast %188 : vector<8x1xf32> to vector<8x256xf32>
    %191 = arith.mulf %119, %190 : vector<8x256xf32>
    %192 = vector.broadcast %189 : vector<8x1xf32> to vector<8x256xf32>
    %193 = arith.addf %191, %192 : vector<8x256xf32>
    %cst_69 = arith.constant 0.000000e+00 : f32
    %194 = vector.broadcast %cst_69 : f32 to vector<8x256xf32>
    %195 = arith.maximumf %193, %194 : vector<8x256xf32>
    %196 = arith.truncf %195 : vector<8x256xf32> to vector<8x256xbf16>
    %c16_70 = arith.constant 16 : index
    %c0_71 = arith.constant 0 : index
    %197 = vector.load %arg10[%c16_70, %c0_71] : memref<432x256xbf16, #tpu.memory_space<vmem>>, vector<8x256xbf16>
    tpu.vector_store %arg10[%c16_70, %c0_71], %196 {strides = array<i32>} : memref<432x256xbf16, #tpu.memory_space<vmem>>, vector<8x256xbf16>,
    %c48 = arith.constant 48 : index
    %c0_72 = arith.constant 0 : index
    %198 = vector.load %arg2[%c48, %c0_72] : memref<544x1xf32, #tpu.memory_space<vmem>>, vector<8x1xf32>
    %c56 = arith.constant 56 : index
    %c0_73 = arith.constant 0 : index
    %199 = vector.load %arg2[%c56, %c0_73] : memref<544x1xf32, #tpu.memory_space<vmem>>, vector<8x1xf32>
    %200 = vector.broadcast %198 : vector<8x1xf32> to vector<8x256xf32>
    %201 = arith.mulf %167, %200 : vector<8x256xf32>
    %202 = vector.broadcast %199 : vector<8x1xf32> to vector<8x256xf32>
    %203 = arith.addf %201, %202 : vector<8x256xf32>
    %cst_74 = arith.constant 0.000000e+00 : f32
    %204 = vector.broadcast %cst_74 : f32 to vector<8x256xf32>
    %205 = arith.maximumf %203, %204 : vector<8x256xf32>
    %206 = arith.truncf %205 : vector<8x256xf32> to vector<8x256xbf16>
    %c24_75 = arith.constant 24 : index
    %c0_76 = arith.constant 0 : index
    %207 = vector.load %arg10[%c24_75, %c0_76] : memref<432x256xbf16, #tpu.memory_space<vmem>>, vector<8x256xbf16>
    tpu.vector_store %arg10[%c24_75, %c0_76], %206 {strides = array<i32>} : memref<432x256xbf16, #tpu.memory_space<vmem>>, vector<8x256xbf16>,
    %c0_77 = arith.constant 0 : index
    %c0_78 = arith.constant 0 : index
    %208 = vector.load %arg3[%c0_77, %c0_78] : memref<32x32xbf16, #tpu.memory_space<vmem>>, vector<32x32xbf16>
    %c0_79 = arith.constant 0 : index
    %c0_80 = arith.constant 0 : index
    %209 = vector.load %arg10[%c0_79, %c0_80] : memref<432x256xbf16, #tpu.memory_space<vmem>>, vector<32x256xbf16>
    %cst_81 = arith.constant dense<0.000000e+00> : vector<32x256xf32>
    %210 = tpu.matmul %208, %209, %cst_81 {dimension_numbers = #tpu.dot_dimension_numbers<[1], [0], [0], [1], [0, 0, 1, 1], [], []>} : vector<32x32xbf16>, vector<32x256xbf16>, vector<32x256xf32> -> vector<32x256xf32>
    %c64 = arith.constant 64 : index
    %c0_82 = arith.constant 0 : index
    %211 = vector.load %arg2[%c64, %c0_82] : memref<544x1xf32, #tpu.memory_space<vmem>>, vector<32x1xf32>
    %212 = vector.broadcast %211 : vector<32x1xf32> to vector<32x256xf32>
    %213 = arith.addf %210, %212 : vector<32x256xf32>
    %214 = vector.extract_strided_slice %213 {offsets = [0, 0], sizes = [8, 256], strides = [1, 1]} : vector<32x256xf32> to vector<8x256xf32>
    %215 = vector.extract_strided_slice %213 {offsets = [8, 0], sizes = [8, 256], strides = [1, 1]} : vector<32x256xf32> to vector<8x256xf32>
    %216 = vector.extract_strided_slice %213 {offsets = [16, 0], sizes = [8, 256], strides = [1, 1]} : vector<32x256xf32> to vector<8x256xf32>
    %217 = vector.extract_strided_slice %213 {offsets = [24, 0], sizes = [8, 256], strides = [1, 1]} : vector<32x256xf32> to vector<8x256xf32>
    %c96 = arith.constant 96 : index
    %c0_83 = arith.constant 0 : index
    %218 = vector.load %arg2[%c96, %c0_83] : memref<544x1xf32, #tpu.memory_space<vmem>>, vector<8x1xf32>
    %219 = vector.broadcast %218 : vector<8x1xf32> to vector<8x256xf32>
    %220 = arith.mulf %215, %219 : vector<8x256xf32>
    %c104 = arith.constant 104 : index
    %c0_84 = arith.constant 0 : index
    %221 = vector.load %arg2[%c104, %c0_84] : memref<544x1xf32, #tpu.memory_space<vmem>>, vector<8x1xf32>
    %222 = vector.broadcast %221 : vector<8x1xf32> to vector<8x256xf32>
    %223 = arith.addf %220, %222 : vector<8x256xf32>
    %cst_85 = arith.constant 0.000000e+00 : f32
    %224 = vector.broadcast %cst_85 : f32 to vector<8x256xf32>
    %225 = arith.maximumf %223, %224 : vector<8x256xf32>
    %c34_i32 = arith.constant 34 : i32
    %226 = tpu.dynamic_rotate %225 by %c34_i32 dim 1 : vector<8x256xf32>, i32 -> vector<8x256xf32>
    %cst_86 = arith.constant 0.000000e+00 : f32
    %227 = vector.shape_cast %21 : vector<1x256xi1> to vector<1x256xi1>
    %228 = vector.broadcast %227 : vector<1x256xi1> to vector<8x256xi1>
    %229 = vector.broadcast %cst_86 : f32 to vector<8x256xf32>
    %230 = arith.select %228, %226, %229 : vector<8x256xi1>, vector<8x256xf32>
    %231 = arith.truncf %230 : vector<8x256xf32> to vector<8x256xbf16>
    %c160 = arith.constant 160 : index
    %c0_87 = arith.constant 0 : index
    %232 = vector.load %arg10[%c160, %c0_87] : memref<432x256xbf16, #tpu.memory_space<vmem>>, vector<8x256xbf16>
    tpu.vector_store %arg10[%c160, %c0_87], %231 {strides = array<i32>} : memref<432x256xbf16, #tpu.memory_space<vmem>>, vector<8x256xbf16>,
    %c33_i32 = arith.constant 33 : i32
    %233 = tpu.dynamic_rotate %225 by %c33_i32 dim 1 : vector<8x256xf32>, i32 -> vector<8x256xf32>
    %cst_88 = arith.constant 0.000000e+00 : f32
    %234 = vector.shape_cast %26 : vector<1x256xi1> to vector<1x256xi1>
    %235 = vector.broadcast %234 : vector<1x256xi1> to vector<8x256xi1>
    %236 = vector.broadcast %cst_88 : f32 to vector<8x256xf32>
    %237 = arith.select %235, %233, %236 : vector<8x256xi1>, vector<8x256xf32>
    %238 = arith.truncf %237 : vector<8x256xf32> to vector<8x256xbf16>
    %c168 = arith.constant 168 : index
    %c0_89 = arith.constant 0 : index
    %239 = vector.load %arg10[%c168, %c0_89] : memref<432x256xbf16, #tpu.memory_space<vmem>>, vector<8x256xbf16>
    tpu.vector_store %arg10[%c168, %c0_89], %238 {strides = array<i32>} : memref<432x256xbf16, #tpu.memory_space<vmem>>, vector<8x256xbf16>,
    %c32_i32_90 = arith.constant 32 : i32
    %240 = tpu.dynamic_rotate %225 by %c32_i32_90 dim 1 : vector<8x256xf32>, i32 -> vector<8x256xf32>
    %cst_91 = arith.constant 0.000000e+00 : f32
    %241 = vector.shape_cast %28 : vector<1x256xi1> to vector<1x256xi1>
    %242 = vector.broadcast %241 : vector<1x256xi1> to vector<8x256xi1>
    %243 = vector.broadcast %cst_91 : f32 to vector<8x256xf32>
    %244 = arith.select %242, %240, %243 : vector<8x256xi1>, vector<8x256xf32>
    %245 = arith.truncf %244 : vector<8x256xf32> to vector<8x256xbf16>
    %c176 = arith.constant 176 : index
    %c0_92 = arith.constant 0 : index
    %246 = vector.load %arg10[%c176, %c0_92] : memref<432x256xbf16, #tpu.memory_space<vmem>>, vector<8x256xbf16>
    tpu.vector_store %arg10[%c176, %c0_92], %245 {strides = array<i32>} : memref<432x256xbf16, #tpu.memory_space<vmem>>, vector<8x256xbf16>,
    %c31_i32 = arith.constant 31 : i32
    %247 = tpu.dynamic_rotate %225 by %c31_i32 dim 1 : vector<8x256xf32>, i32 -> vector<8x256xf32>
    %cst_93 = arith.constant 0.000000e+00 : f32
    %248 = vector.shape_cast %33 : vector<1x256xi1> to vector<1x256xi1>
    %249 = vector.broadcast %248 : vector<1x256xi1> to vector<8x256xi1>
    %250 = vector.broadcast %cst_93 : f32 to vector<8x256xf32>
    %251 = arith.select %249, %247, %250 : vector<8x256xi1>, vector<8x256xf32>
    %252 = arith.truncf %251 : vector<8x256xf32> to vector<8x256xbf16>
    %c184 = arith.constant 184 : index
    %c0_94 = arith.constant 0 : index
    %253 = vector.load %arg10[%c184, %c0_94] : memref<432x256xbf16, #tpu.memory_space<vmem>>, vector<8x256xbf16>
    tpu.vector_store %arg10[%c184, %c0_94], %252 {strides = array<i32>} : memref<432x256xbf16, #tpu.memory_space<vmem>>, vector<8x256xbf16>,
    %c30_i32 = arith.constant 30 : i32
    %254 = tpu.dynamic_rotate %225 by %c30_i32 dim 1 : vector<8x256xf32>, i32 -> vector<8x256xf32>
    %cst_95 = arith.constant 0.000000e+00 : f32
    %255 = vector.shape_cast %38 : vector<1x256xi1> to vector<1x256xi1>
    %256 = vector.broadcast %255 : vector<1x256xi1> to vector<8x256xi1>
    %257 = vector.broadcast %cst_95 : f32 to vector<8x256xf32>
    %258 = arith.select %256, %254, %257 : vector<8x256xi1>, vector<8x256xf32>
    %259 = arith.truncf %258 : vector<8x256xf32> to vector<8x256xbf16>
    %c192 = arith.constant 192 : index
    %c0_96 = arith.constant 0 : index
    %260 = vector.load %arg10[%c192, %c0_96] : memref<432x256xbf16, #tpu.memory_space<vmem>>, vector<8x256xbf16>
    tpu.vector_store %arg10[%c192, %c0_96], %259 {strides = array<i32>} : memref<432x256xbf16, #tpu.memory_space<vmem>>, vector<8x256xbf16>,
    %c18_i32 = arith.constant 18 : i32
    %261 = tpu.dynamic_rotate %225 by %c18_i32 dim 1 : vector<8x256xf32>, i32 -> vector<8x256xf32>
    %cst_97 = arith.constant 0.000000e+00 : f32
    %262 = vector.shape_cast %43 : vector<1x256xi1> to vector<1x256xi1>
    %263 = vector.broadcast %262 : vector<1x256xi1> to vector<8x256xi1>
    %264 = vector.broadcast %cst_97 : f32 to vector<8x256xf32>
    %265 = arith.select %263, %261, %264 : vector<8x256xi1>, vector<8x256xf32>
    %266 = arith.truncf %265 : vector<8x256xf32> to vector<8x256xbf16>
    %c200 = arith.constant 200 : index
    %c0_98 = arith.constant 0 : index
    %267 = vector.load %arg10[%c200, %c0_98] : memref<432x256xbf16, #tpu.memory_space<vmem>>, vector<8x256xbf16>
    tpu.vector_store %arg10[%c200, %c0_98], %266 {strides = array<i32>} : memref<432x256xbf16, #tpu.memory_space<vmem>>, vector<8x256xbf16>,
    %c17_i32_99 = arith.constant 17 : i32
    %268 = tpu.dynamic_rotate %225 by %c17_i32_99 dim 1 : vector<8x256xf32>, i32 -> vector<8x256xf32>
    %cst_100 = arith.constant 0.000000e+00 : f32
    %269 = vector.shape_cast %48 : vector<1x256xi1> to vector<1x256xi1>
    %270 = vector.broadcast %269 : vector<1x256xi1> to vector<8x256xi1>
    %271 = vector.broadcast %cst_100 : f32 to vector<8x256xf32>
    %272 = arith.select %270, %268, %271 : vector<8x256xi1>, vector<8x256xf32>
    %273 = arith.truncf %272 : vector<8x256xf32> to vector<8x256xbf16>
    %c208 = arith.constant 208 : index
    %c0_101 = arith.constant 0 : index
    %274 = vector.load %arg10[%c208, %c0_101] : memref<432x256xbf16, #tpu.memory_space<vmem>>, vector<8x256xbf16>
    tpu.vector_store %arg10[%c208, %c0_101], %273 {strides = array<i32>} : memref<432x256xbf16, #tpu.memory_space<vmem>>, vector<8x256xbf16>,
    %c16_i32_102 = arith.constant 16 : i32
    %275 = tpu.dynamic_rotate %225 by %c16_i32_102 dim 1 : vector<8x256xf32>, i32 -> vector<8x256xf32>
    %cst_103 = arith.constant 0.000000e+00 : f32
    %276 = vector.shape_cast %50 : vector<1x256xi1> to vector<1x256xi1>
    %277 = vector.broadcast %276 : vector<1x256xi1> to vector<8x256xi1>
    %278 = vector.broadcast %cst_103 : f32 to vector<8x256xf32>
    %279 = arith.select %277, %275, %278 : vector<8x256xi1>, vector<8x256xf32>
    %280 = arith.truncf %279 : vector<8x256xf32> to vector<8x256xbf16>
    %c216 = arith.constant 216 : index
    %c0_104 = arith.constant 0 : index
    %281 = vector.load %arg10[%c216, %c0_104] : memref<432x256xbf16, #tpu.memory_space<vmem>>, vector<8x256xbf16>
    tpu.vector_store %arg10[%c216, %c0_104], %280 {strides = array<i32>} : memref<432x256xbf16, #tpu.memory_space<vmem>>, vector<8x256xbf16>,
    %c15_i32_105 = arith.constant 15 : i32
    %282 = tpu.dynamic_rotate %225 by %c15_i32_105 dim 1 : vector<8x256xf32>, i32 -> vector<8x256xf32>
    %cst_106 = arith.constant 0.000000e+00 : f32
    %283 = vector.shape_cast %55 : vector<1x256xi1> to vector<1x256xi1>
    %284 = vector.broadcast %283 : vector<1x256xi1> to vector<8x256xi1>
    %285 = vector.broadcast %cst_106 : f32 to vector<8x256xf32>
    %286 = arith.select %284, %282, %285 : vector<8x256xi1>, vector<8x256xf32>
    %287 = arith.truncf %286 : vector<8x256xf32> to vector<8x256xbf16>
    %c224 = arith.constant 224 : index
    %c0_107 = arith.constant 0 : index
    %288 = vector.load %arg10[%c224, %c0_107] : memref<432x256xbf16, #tpu.memory_space<vmem>>, vector<8x256xbf16>
    tpu.vector_store %arg10[%c224, %c0_107], %287 {strides = array<i32>} : memref<432x256xbf16, #tpu.memory_space<vmem>>, vector<8x256xbf16>,
    %c14_i32_108 = arith.constant 14 : i32
    %289 = tpu.dynamic_rotate %225 by %c14_i32_108 dim 1 : vector<8x256xf32>, i32 -> vector<8x256xf32>
    %cst_109 = arith.constant 0.000000e+00 : f32
    %290 = vector.shape_cast %60 : vector<1x256xi1> to vector<1x256xi1>
    %291 = vector.broadcast %290 : vector<1x256xi1> to vector<8x256xi1>
    %292 = vector.broadcast %cst_109 : f32 to vector<8x256xf32>
    %293 = arith.select %291, %289, %292 : vector<8x256xi1>, vector<8x256xf32>
    %294 = arith.truncf %293 : vector<8x256xf32> to vector<8x256xbf16>
    %c232 = arith.constant 232 : index
    %c0_110 = arith.constant 0 : index
    %295 = vector.load %arg10[%c232, %c0_110] : memref<432x256xbf16, #tpu.memory_space<vmem>>, vector<8x256xbf16>
    tpu.vector_store %arg10[%c232, %c0_110], %294 {strides = array<i32>} : memref<432x256xbf16, #tpu.memory_space<vmem>>, vector<8x256xbf16>,
    %c2_i32_111 = arith.constant 2 : i32
    %296 = tpu.dynamic_rotate %225 by %c2_i32_111 dim 1 : vector<8x256xf32>, i32 -> vector<8x256xf32>
    %cst_112 = arith.constant 0.000000e+00 : f32
    %297 = vector.shape_cast %62 : vector<1x256xi1> to vector<1x256xi1>
    %298 = vector.broadcast %297 : vector<1x256xi1> to vector<8x256xi1>
    %299 = vector.broadcast %cst_112 : f32 to vector<8x256xf32>
    %300 = arith.select %298, %296, %299 : vector<8x256xi1>, vector<8x256xf32>
    %301 = arith.truncf %300 : vector<8x256xf32> to vector<8x256xbf16>
    %c240 = arith.constant 240 : index
    %c0_113 = arith.constant 0 : index
    %302 = vector.load %arg10[%c240, %c0_113] : memref<432x256xbf16, #tpu.memory_space<vmem>>, vector<8x256xbf16>
    tpu.vector_store %arg10[%c240, %c0_113], %301 {strides = array<i32>} : memref<432x256xbf16, #tpu.memory_space<vmem>>, vector<8x256xbf16>,
    %c1_i32_114 = arith.constant 1 : i32
    %303 = tpu.dynamic_rotate %225 by %c1_i32_114 dim 1 : vector<8x256xf32>, i32 -> vector<8x256xf32>
    %cst_115 = arith.constant 0.000000e+00 : f32
    %304 = vector.shape_cast %64 : vector<1x256xi1> to vector<1x256xi1>
    %305 = vector.broadcast %304 : vector<1x256xi1> to vector<8x256xi1>
    %306 = vector.broadcast %cst_115 : f32 to vector<8x256xf32>
    %307 = arith.select %305, %303, %306 : vector<8x256xi1>, vector<8x256xf32>
    %308 = arith.truncf %307 : vector<8x256xf32> to vector<8x256xbf16>
    %c248 = arith.constant 248 : index
    %c0_116 = arith.constant 0 : index
    %309 = vector.load %arg10[%c248, %c0_116] : memref<432x256xbf16, #tpu.memory_space<vmem>>, vector<8x256xbf16>
    tpu.vector_store %arg10[%c248, %c0_116], %308 {strides = array<i32>} : memref<432x256xbf16, #tpu.memory_space<vmem>>, vector<8x256xbf16>,
    %310 = arith.truncf %225 : vector<8x256xf32> to vector<8x256xbf16>
    %c256 = arith.constant 256 : index
    %c0_117 = arith.constant 0 : index
    %311 = vector.load %arg10[%c256, %c0_117] : memref<432x256xbf16, #tpu.memory_space<vmem>>, vector<8x256xbf16>
    tpu.vector_store %arg10[%c256, %c0_117], %310 {strides = array<i32>} : memref<432x256xbf16, #tpu.memory_space<vmem>>, vector<8x256xbf16>,
    %c255_i32_118 = arith.constant 255 : i32
    %312 = tpu.dynamic_rotate %225 by %c255_i32_118 dim 1 : vector<8x256xf32>, i32 -> vector<8x256xf32>
    %cst_119 = arith.constant 0.000000e+00 : f32
    %313 = vector.shape_cast %66 : vector<1x256xi1> to vector<1x256xi1>
    %314 = vector.broadcast %313 : vector<1x256xi1> to vector<8x256xi1>
    %315 = vector.broadcast %cst_119 : f32 to vector<8x256xf32>
    %316 = arith.select %314, %312, %315 : vector<8x256xi1>, vector<8x256xf32>
    %317 = arith.truncf %316 : vector<8x256xf32> to vector<8x256xbf16>
    %c264 = arith.constant 264 : index
    %c0_120 = arith.constant 0 : index
    %318 = vector.load %arg10[%c264, %c0_120] : memref<432x256xbf16, #tpu.memory_space<vmem>>, vector<8x256xbf16>
    tpu.vector_store %arg10[%c264, %c0_120], %317 {strides = array<i32>} : memref<432x256xbf16, #tpu.memory_space<vmem>>, vector<8x256xbf16>,
    %c254_i32 = arith.constant 254 : i32
    %319 = tpu.dynamic_rotate %225 by %c254_i32 dim 1 : vector<8x256xf32>, i32 -> vector<8x256xf32>
    %cst_121 = arith.constant 0.000000e+00 : f32
    %320 = vector.shape_cast %68 : vector<1x256xi1> to vector<1x256xi1>
    %321 = vector.broadcast %320 : vector<1x256xi1> to vector<8x256xi1>
    %322 = vector.broadcast %cst_121 : f32 to vector<8x256xf32>
    %323 = arith.select %321, %319, %322 : vector<8x256xi1>, vector<8x256xf32>
    %324 = arith.truncf %323 : vector<8x256xf32> to vector<8x256xbf16>
    %c272 = arith.constant 272 : index
    %c0_122 = arith.constant 0 : index
    %325 = vector.load %arg10[%c272, %c0_122] : memref<432x256xbf16, #tpu.memory_space<vmem>>, vector<8x256xbf16>
    tpu.vector_store %arg10[%c272, %c0_122], %324 {strides = array<i32>} : memref<432x256xbf16, #tpu.memory_space<vmem>>, vector<8x256xbf16>,
    %c242_i32 = arith.constant 242 : i32
    %326 = tpu.dynamic_rotate %225 by %c242_i32 dim 1 : vector<8x256xf32>, i32 -> vector<8x256xf32>
    %cst_123 = arith.constant 0.000000e+00 : f32
    %327 = vector.shape_cast %73 : vector<1x256xi1> to vector<1x256xi1>
    %328 = vector.broadcast %327 : vector<1x256xi1> to vector<8x256xi1>
    %329 = vector.broadcast %cst_123 : f32 to vector<8x256xf32>
    %330 = arith.select %328, %326, %329 : vector<8x256xi1>, vector<8x256xf32>
    %331 = arith.truncf %330 : vector<8x256xf32> to vector<8x256xbf16>
    %c280 = arith.constant 280 : index
    %c0_124 = arith.constant 0 : index
    %332 = vector.load %arg10[%c280, %c0_124] : memref<432x256xbf16, #tpu.memory_space<vmem>>, vector<8x256xbf16>
    tpu.vector_store %arg10[%c280, %c0_124], %331 {strides = array<i32>} : memref<432x256xbf16, #tpu.memory_space<vmem>>, vector<8x256xbf16>,
    %c241_i32_125 = arith.constant 241 : i32
    %333 = tpu.dynamic_rotate %225 by %c241_i32_125 dim 1 : vector<8x256xf32>, i32 -> vector<8x256xf32>
    %cst_126 = arith.constant 0.000000e+00 : f32
    %334 = vector.shape_cast %78 : vector<1x256xi1> to vector<1x256xi1>
    %335 = vector.broadcast %334 : vector<1x256xi1> to vector<8x256xi1>
    %336 = vector.broadcast %cst_126 : f32 to vector<8x256xf32>
    %337 = arith.select %335, %333, %336 : vector<8x256xi1>, vector<8x256xf32>
    %338 = arith.truncf %337 : vector<8x256xf32> to vector<8x256xbf16>
    %c288 = arith.constant 288 : index
    %c0_127 = arith.constant 0 : index
    %339 = vector.load %arg10[%c288, %c0_127] : memref<432x256xbf16, #tpu.memory_space<vmem>>, vector<8x256xbf16>
    tpu.vector_store %arg10[%c288, %c0_127], %338 {strides = array<i32>} : memref<432x256xbf16, #tpu.memory_space<vmem>>, vector<8x256xbf16>,
    %c240_i32_128 = arith.constant 240 : i32
    %340 = tpu.dynamic_rotate %225 by %c240_i32_128 dim 1 : vector<8x256xf32>, i32 -> vector<8x256xf32>
    %cst_129 = arith.constant 0.000000e+00 : f32
    %341 = vector.shape_cast %80 : vector<1x256xi1> to vector<1x256xi1>
    %342 = vector.broadcast %341 : vector<1x256xi1> to vector<8x256xi1>
    %343 = vector.broadcast %cst_129 : f32 to vector<8x256xf32>
    %344 = arith.select %342, %340, %343 : vector<8x256xi1>, vector<8x256xf32>
    %345 = arith.truncf %344 : vector<8x256xf32> to vector<8x256xbf16>
    %c296 = arith.constant 296 : index
    %c0_130 = arith.constant 0 : index
    %346 = vector.load %arg10[%c296, %c0_130] : memref<432x256xbf16, #tpu.memory_space<vmem>>, vector<8x256xbf16>
    tpu.vector_store %arg10[%c296, %c0_130], %345 {strides = array<i32>} : memref<432x256xbf16, #tpu.memory_space<vmem>>, vector<8x256xbf16>,
    %c239_i32_131 = arith.constant 239 : i32
    %347 = tpu.dynamic_rotate %225 by %c239_i32_131 dim 1 : vector<8x256xf32>, i32 -> vector<8x256xf32>
    %cst_132 = arith.constant 0.000000e+00 : f32
    %348 = vector.shape_cast %85 : vector<1x256xi1> to vector<1x256xi1>
    %349 = vector.broadcast %348 : vector<1x256xi1> to vector<8x256xi1>
    %350 = vector.broadcast %cst_132 : f32 to vector<8x256xf32>
    %351 = arith.select %349, %347, %350 : vector<8x256xi1>, vector<8x256xf32>
    %352 = arith.truncf %351 : vector<8x256xf32> to vector<8x256xbf16>
    %c304 = arith.constant 304 : index
    %c0_133 = arith.constant 0 : index
    %353 = vector.load %arg10[%c304, %c0_133] : memref<432x256xbf16, #tpu.memory_space<vmem>>, vector<8x256xbf16>
    tpu.vector_store %arg10[%c304, %c0_133], %352 {strides = array<i32>} : memref<432x256xbf16, #tpu.memory_space<vmem>>, vector<8x256xbf16>,
    %c238_i32 = arith.constant 238 : i32
    %354 = tpu.dynamic_rotate %225 by %c238_i32 dim 1 : vector<8x256xf32>, i32 -> vector<8x256xf32>
    %cst_134 = arith.constant 0.000000e+00 : f32
    %355 = vector.shape_cast %90 : vector<1x256xi1> to vector<1x256xi1>
    %356 = vector.broadcast %355 : vector<1x256xi1> to vector<8x256xi1>
    %357 = vector.broadcast %cst_134 : f32 to vector<8x256xf32>
    %358 = arith.select %356, %354, %357 : vector<8x256xi1>, vector<8x256xf32>
    %359 = arith.truncf %358 : vector<8x256xf32> to vector<8x256xbf16>
    %c312 = arith.constant 312 : index
    %c0_135 = arith.constant 0 : index
    %360 = vector.load %arg10[%c312, %c0_135] : memref<432x256xbf16, #tpu.memory_space<vmem>>, vector<8x256xbf16>
    tpu.vector_store %arg10[%c312, %c0_135], %359 {strides = array<i32>} : memref<432x256xbf16, #tpu.memory_space<vmem>>, vector<8x256xbf16>,
    %c226_i32 = arith.constant 226 : i32
    %361 = tpu.dynamic_rotate %225 by %c226_i32 dim 1 : vector<8x256xf32>, i32 -> vector<8x256xf32>
    %cst_136 = arith.constant 0.000000e+00 : f32
    %362 = vector.shape_cast %95 : vector<1x256xi1> to vector<1x256xi1>
    %363 = vector.broadcast %362 : vector<1x256xi1> to vector<8x256xi1>
    %364 = vector.broadcast %cst_136 : f32 to vector<8x256xf32>
    %365 = arith.select %363, %361, %364 : vector<8x256xi1>, vector<8x256xf32>
    %366 = arith.truncf %365 : vector<8x256xf32> to vector<8x256xbf16>
    %c320 = arith.constant 320 : index
    %c0_137 = arith.constant 0 : index
    %367 = vector.load %arg10[%c320, %c0_137] : memref<432x256xbf16, #tpu.memory_space<vmem>>, vector<8x256xbf16>
    tpu.vector_store %arg10[%c320, %c0_137], %366 {strides = array<i32>} : memref<432x256xbf16, #tpu.memory_space<vmem>>, vector<8x256xbf16>,
    %c225_i32 = arith.constant 225 : i32
    %368 = tpu.dynamic_rotate %225 by %c225_i32 dim 1 : vector<8x256xf32>, i32 -> vector<8x256xf32>
    %cst_138 = arith.constant 0.000000e+00 : f32
    %369 = vector.shape_cast %100 : vector<1x256xi1> to vector<1x256xi1>
    %370 = vector.broadcast %369 : vector<1x256xi1> to vector<8x256xi1>
    %371 = vector.broadcast %cst_138 : f32 to vector<8x256xf32>
    %372 = arith.select %370, %368, %371 : vector<8x256xi1>, vector<8x256xf32>
    %373 = arith.truncf %372 : vector<8x256xf32> to vector<8x256xbf16>
    %c328 = arith.constant 328 : index
    %c0_139 = arith.constant 0 : index
    %374 = vector.load %arg10[%c328, %c0_139] : memref<432x256xbf16, #tpu.memory_space<vmem>>, vector<8x256xbf16>
    tpu.vector_store %arg10[%c328, %c0_139], %373 {strides = array<i32>} : memref<432x256xbf16, #tpu.memory_space<vmem>>, vector<8x256xbf16>,
    %c224_i32_140 = arith.constant 224 : i32
    %375 = tpu.dynamic_rotate %225 by %c224_i32_140 dim 1 : vector<8x256xf32>, i32 -> vector<8x256xf32>
    %cst_141 = arith.constant 0.000000e+00 : f32
    %376 = vector.shape_cast %102 : vector<1x256xi1> to vector<1x256xi1>
    %377 = vector.broadcast %376 : vector<1x256xi1> to vector<8x256xi1>
    %378 = vector.broadcast %cst_141 : f32 to vector<8x256xf32>
    %379 = arith.select %377, %375, %378 : vector<8x256xi1>, vector<8x256xf32>
    %380 = arith.truncf %379 : vector<8x256xf32> to vector<8x256xbf16>
    %c336 = arith.constant 336 : index
    %c0_142 = arith.constant 0 : index
    %381 = vector.load %arg10[%c336, %c0_142] : memref<432x256xbf16, #tpu.memory_space<vmem>>, vector<8x256xbf16>
    tpu.vector_store %arg10[%c336, %c0_142], %380 {strides = array<i32>} : memref<432x256xbf16, #tpu.memory_space<vmem>>, vector<8x256xbf16>,
    %c223_i32 = arith.constant 223 : i32
    %382 = tpu.dynamic_rotate %225 by %c223_i32 dim 1 : vector<8x256xf32>, i32 -> vector<8x256xf32>
    %cst_143 = arith.constant 0.000000e+00 : f32
    %383 = vector.shape_cast %107 : vector<1x256xi1> to vector<1x256xi1>
    %384 = vector.broadcast %383 : vector<1x256xi1> to vector<8x256xi1>
    %385 = vector.broadcast %cst_143 : f32 to vector<8x256xf32>
    %386 = arith.select %384, %382, %385 : vector<8x256xi1>, vector<8x256xf32>
    %387 = arith.truncf %386 : vector<8x256xf32> to vector<8x256xbf16>
    %c344 = arith.constant 344 : index
    %c0_144 = arith.constant 0 : index
    %388 = vector.load %arg10[%c344, %c0_144] : memref<432x256xbf16, #tpu.memory_space<vmem>>, vector<8x256xbf16>
    tpu.vector_store %arg10[%c344, %c0_144], %387 {strides = array<i32>} : memref<432x256xbf16, #tpu.memory_space<vmem>>, vector<8x256xbf16>,
    %c222_i32 = arith.constant 222 : i32
    %389 = tpu.dynamic_rotate %225 by %c222_i32 dim 1 : vector<8x256xf32>, i32 -> vector<8x256xf32>
    %cst_145 = arith.constant 0.000000e+00 : f32
    %390 = vector.shape_cast %112 : vector<1x256xi1> to vector<1x256xi1>
    %391 = vector.broadcast %390 : vector<1x256xi1> to vector<8x256xi1>
    %392 = vector.broadcast %cst_145 : f32 to vector<8x256xf32>
    %393 = arith.select %391, %389, %392 : vector<8x256xi1>, vector<8x256xf32>
    %394 = arith.truncf %393 : vector<8x256xf32> to vector<8x256xbf16>
    %c352 = arith.constant 352 : index
    %c0_146 = arith.constant 0 : index
    %395 = vector.load %arg10[%c352, %c0_146] : memref<432x256xbf16, #tpu.memory_space<vmem>>, vector<8x256xbf16>
    tpu.vector_store %arg10[%c352, %c0_146], %394 {strides = array<i32>} : memref<432x256xbf16, #tpu.memory_space<vmem>>, vector<8x256xbf16>,
    %c0_147 = arith.constant 0 : index
    %c0_148 = arith.constant 0 : index
    %396 = vector.load %arg4[%c0_147, %c0_148] : memref<8x200xbf16, #tpu.memory_space<vmem>>, vector<8x200xbf16>
    %c160_149 = arith.constant 160 : index
    %c0_150 = arith.constant 0 : index
    %397 = vector.load %arg10[%c160_149, %c0_150] : memref<432x256xbf16, #tpu.memory_space<vmem>>, vector<200x256xbf16>
    %cst_151 = arith.constant dense<0.000000e+00> : vector<8x256xf32>
    %398 = tpu.matmul %396, %397, %cst_151 {dimension_numbers = #tpu.dot_dimension_numbers<[1], [0], [0], [1], [0, 0, 1, 1], [], []>} : vector<8x200xbf16>, vector<200x256xbf16>, vector<8x256xf32> -> vector<8x256xf32>
    %c112 = arith.constant 112 : index
    %c0_152 = arith.constant 0 : index
    %399 = vector.load %arg2[%c112, %c0_152] : memref<544x1xf32, #tpu.memory_space<vmem>>, vector<8x1xf32>
    %400 = vector.broadcast %399 : vector<8x1xf32> to vector<8x256xf32>
    %401 = arith.addf %398, %400 : vector<8x256xf32>
    %c120 = arith.constant 120 : index
    %c0_153 = arith.constant 0 : index
    %402 = vector.load %arg2[%c120, %c0_153] : memref<544x1xf32, #tpu.memory_space<vmem>>, vector<8x1xf32>
    %403 = vector.broadcast %402 : vector<8x1xf32> to vector<8x256xf32>
    %404 = arith.mulf %216, %403 : vector<8x256xf32>
    %c128 = arith.constant 128 : index
    %c0_154 = arith.constant 0 : index
    %405 = vector.load %arg2[%c128, %c0_154] : memref<544x1xf32, #tpu.memory_space<vmem>>, vector<8x1xf32>
    %406 = vector.broadcast %405 : vector<8x1xf32> to vector<8x256xf32>
    %407 = arith.addf %404, %406 : vector<8x256xf32>
    %cst_155 = arith.constant 0.000000e+00 : f32
    %408 = vector.broadcast %cst_155 : f32 to vector<8x256xf32>
    %409 = arith.maximumf %407, %408 : vector<8x256xf32>
    %c17_i32_156 = arith.constant 17 : i32
    %410 = tpu.dynamic_rotate %409 by %c17_i32_156 dim 1 : vector<8x256xf32>, i32 -> vector<8x256xf32>
    %cst_157 = arith.constant 0.000000e+00 : f32
    %411 = vector.shape_cast %48 : vector<1x256xi1> to vector<1x256xi1>
    %412 = vector.broadcast %411 : vector<1x256xi1> to vector<8x256xi1>
    %413 = vector.broadcast %cst_157 : f32 to vector<8x256xf32>
    %414 = arith.select %412, %410, %413 : vector<8x256xi1>, vector<8x256xf32>
    %415 = arith.truncf %414 : vector<8x256xf32> to vector<8x256xbf16>
    %c360 = arith.constant 360 : index
    %c0_158 = arith.constant 0 : index
    %416 = vector.load %arg10[%c360, %c0_158] : memref<432x256xbf16, #tpu.memory_space<vmem>>, vector<8x256xbf16>
    tpu.vector_store %arg10[%c360, %c0_158], %415 {strides = array<i32>} : memref<432x256xbf16, #tpu.memory_space<vmem>>, vector<8x256xbf16>,
    %c16_i32_159 = arith.constant 16 : i32
    %417 = tpu.dynamic_rotate %409 by %c16_i32_159 dim 1 : vector<8x256xf32>, i32 -> vector<8x256xf32>
    %cst_160 = arith.constant 0.000000e+00 : f32
    %418 = vector.shape_cast %50 : vector<1x256xi1> to vector<1x256xi1>
    %419 = vector.broadcast %418 : vector<1x256xi1> to vector<8x256xi1>
    %420 = vector.broadcast %cst_160 : f32 to vector<8x256xf32>
    %421 = arith.select %419, %417, %420 : vector<8x256xi1>, vector<8x256xf32>
    %422 = arith.truncf %421 : vector<8x256xf32> to vector<8x256xbf16>
    %c368 = arith.constant 368 : index
    %c0_161 = arith.constant 0 : index
    %423 = vector.load %arg10[%c368, %c0_161] : memref<432x256xbf16, #tpu.memory_space<vmem>>, vector<8x256xbf16>
    tpu.vector_store %arg10[%c368, %c0_161], %422 {strides = array<i32>} : memref<432x256xbf16, #tpu.memory_space<vmem>>, vector<8x256xbf16>,
    %c15_i32_162 = arith.constant 15 : i32
    %424 = tpu.dynamic_rotate %409 by %c15_i32_162 dim 1 : vector<8x256xf32>, i32 -> vector<8x256xf32>
    %cst_163 = arith.constant 0.000000e+00 : f32
    %425 = vector.shape_cast %55 : vector<1x256xi1> to vector<1x256xi1>
    %426 = vector.broadcast %425 : vector<1x256xi1> to vector<8x256xi1>
    %427 = vector.broadcast %cst_163 : f32 to vector<8x256xf32>
    %428 = arith.select %426, %424, %427 : vector<8x256xi1>, vector<8x256xf32>
    %429 = arith.truncf %428 : vector<8x256xf32> to vector<8x256xbf16>
    %c376 = arith.constant 376 : index
    %c0_164 = arith.constant 0 : index
    %430 = vector.load %arg10[%c376, %c0_164] : memref<432x256xbf16, #tpu.memory_space<vmem>>, vector<8x256xbf16>
    tpu.vector_store %arg10[%c376, %c0_164], %429 {strides = array<i32>} : memref<432x256xbf16, #tpu.memory_space<vmem>>, vector<8x256xbf16>,
    %c1_i32_165 = arith.constant 1 : i32
    %431 = tpu.dynamic_rotate %409 by %c1_i32_165 dim 1 : vector<8x256xf32>, i32 -> vector<8x256xf32>
    %cst_166 = arith.constant 0.000000e+00 : f32
    %432 = vector.shape_cast %64 : vector<1x256xi1> to vector<1x256xi1>
    %433 = vector.broadcast %432 : vector<1x256xi1> to vector<8x256xi1>
    %434 = vector.broadcast %cst_166 : f32 to vector<8x256xf32>
    %435 = arith.select %433, %431, %434 : vector<8x256xi1>, vector<8x256xf32>
    %436 = arith.truncf %435 : vector<8x256xf32> to vector<8x256xbf16>
    %c384 = arith.constant 384 : index
    %c0_167 = arith.constant 0 : index
    %437 = vector.load %arg10[%c384, %c0_167] : memref<432x256xbf16, #tpu.memory_space<vmem>>, vector<8x256xbf16>
    tpu.vector_store %arg10[%c384, %c0_167], %436 {strides = array<i32>} : memref<432x256xbf16, #tpu.memory_space<vmem>>, vector<8x256xbf16>,
    %438 = arith.truncf %409 : vector<8x256xf32> to vector<8x256xbf16>
    %c392 = arith.constant 392 : index
    %c0_168 = arith.constant 0 : index
    %439 = vector.load %arg10[%c392, %c0_168] : memref<432x256xbf16, #tpu.memory_space<vmem>>, vector<8x256xbf16>
    tpu.vector_store %arg10[%c392, %c0_168], %438 {strides = array<i32>} : memref<432x256xbf16, #tpu.memory_space<vmem>>, vector<8x256xbf16>,
    %c255_i32_169 = arith.constant 255 : i32
    %440 = tpu.dynamic_rotate %409 by %c255_i32_169 dim 1 : vector<8x256xf32>, i32 -> vector<8x256xf32>
    %cst_170 = arith.constant 0.000000e+00 : f32
    %441 = vector.shape_cast %66 : vector<1x256xi1> to vector<1x256xi1>
    %442 = vector.broadcast %441 : vector<1x256xi1> to vector<8x256xi1>
    %443 = vector.broadcast %cst_170 : f32 to vector<8x256xf32>
    %444 = arith.select %442, %440, %443 : vector<8x256xi1>, vector<8x256xf32>
    %445 = arith.truncf %444 : vector<8x256xf32> to vector<8x256xbf16>
    %c400 = arith.constant 400 : index
    %c0_171 = arith.constant 0 : index
    %446 = vector.load %arg10[%c400, %c0_171] : memref<432x256xbf16, #tpu.memory_space<vmem>>, vector<8x256xbf16>
    tpu.vector_store %arg10[%c400, %c0_171], %445 {strides = array<i32>} : memref<432x256xbf16, #tpu.memory_space<vmem>>, vector<8x256xbf16>,
    %c241_i32_172 = arith.constant 241 : i32
    %447 = tpu.dynamic_rotate %409 by %c241_i32_172 dim 1 : vector<8x256xf32>, i32 -> vector<8x256xf32>
    %cst_173 = arith.constant 0.000000e+00 : f32
    %448 = vector.shape_cast %78 : vector<1x256xi1> to vector<1x256xi1>
    %449 = vector.broadcast %448 : vector<1x256xi1> to vector<8x256xi1>
    %450 = vector.broadcast %cst_173 : f32 to vector<8x256xf32>
    %451 = arith.select %449, %447, %450 : vector<8x256xi1>, vector<8x256xf32>
    %452 = arith.truncf %451 : vector<8x256xf32> to vector<8x256xbf16>
    %c408 = arith.constant 408 : index
    %c0_174 = arith.constant 0 : index
    %453 = vector.load %arg10[%c408, %c0_174] : memref<432x256xbf16, #tpu.memory_space<vmem>>, vector<8x256xbf16>
    tpu.vector_store %arg10[%c408, %c0_174], %452 {strides = array<i32>} : memref<432x256xbf16, #tpu.memory_space<vmem>>, vector<8x256xbf16>,
    %c240_i32_175 = arith.constant 240 : i32
    %454 = tpu.dynamic_rotate %409 by %c240_i32_175 dim 1 : vector<8x256xf32>, i32 -> vector<8x256xf32>
    %cst_176 = arith.constant 0.000000e+00 : f32
    %455 = vector.shape_cast %80 : vector<1x256xi1> to vector<1x256xi1>
    %456 = vector.broadcast %455 : vector<1x256xi1> to vector<8x256xi1>
    %457 = vector.broadcast %cst_176 : f32 to vector<8x256xf32>
    %458 = arith.select %456, %454, %457 : vector<8x256xi1>, vector<8x256xf32>
    %459 = arith.truncf %458 : vector<8x256xf32> to vector<8x256xbf16>
    %c416 = arith.constant 416 : index
    %c0_177 = arith.constant 0 : index
    %460 = vector.load %arg10[%c416, %c0_177] : memref<432x256xbf16, #tpu.memory_space<vmem>>, vector<8x256xbf16>
    tpu.vector_store %arg10[%c416, %c0_177], %459 {strides = array<i32>} : memref<432x256xbf16, #tpu.memory_space<vmem>>, vector<8x256xbf16>,
    %c239_i32_178 = arith.constant 239 : i32
    %461 = tpu.dynamic_rotate %409 by %c239_i32_178 dim 1 : vector<8x256xf32>, i32 -> vector<8x256xf32>
    %cst_179 = arith.constant 0.000000e+00 : f32
    %462 = vector.shape_cast %85 : vector<1x256xi1> to vector<1x256xi1>
    %463 = vector.broadcast %462 : vector<1x256xi1> to vector<8x256xi1>
    %464 = vector.broadcast %cst_179 : f32 to vector<8x256xf32>
    %465 = arith.select %463, %461, %464 : vector<8x256xi1>, vector<8x256xf32>
    %466 = arith.truncf %465 : vector<8x256xf32> to vector<8x256xbf16>
    %c424 = arith.constant 424 : index
    %c0_180 = arith.constant 0 : index
    %467 = vector.load %arg10[%c424, %c0_180] : memref<432x256xbf16, #tpu.memory_space<vmem>>, vector<8x256xbf16>
    tpu.vector_store %arg10[%c424, %c0_180], %466 {strides = array<i32>} : memref<432x256xbf16, #tpu.memory_space<vmem>>, vector<8x256xbf16>,
    %c0_181 = arith.constant 0 : index
    %c0_182 = arith.constant 0 : index
    %468 = vector.load %arg5[%c0_181, %c0_182] : memref<8x72xbf16, #tpu.memory_space<vmem>>, vector<8x72xbf16>
    %c360_183 = arith.constant 360 : index
    %c0_184 = arith.constant 0 : index
    %469 = vector.load %arg10[%c360_183, %c0_184] : memref<432x256xbf16, #tpu.memory_space<vmem>>, vector<72x256xbf16>
    %cst_185 = arith.constant dense<0.000000e+00> : vector<8x256xf32>
    %470 = tpu.matmul %468, %469, %cst_185 {dimension_numbers = #tpu.dot_dimension_numbers<[1], [0], [0], [1], [0, 0, 1, 1], [], []>} : vector<8x72xbf16>, vector<72x256xbf16>, vector<8x256xf32> -> vector<8x256xf32>
    %c136 = arith.constant 136 : index
    %c0_186 = arith.constant 0 : index
    %471 = vector.load %arg2[%c136, %c0_186] : memref<544x1xf32, #tpu.memory_space<vmem>>, vector<8x1xf32>
    %472 = vector.broadcast %471 : vector<8x1xf32> to vector<8x256xf32>
    %473 = arith.addf %470, %472 : vector<8x256xf32>
    %c0_187 = arith.constant 0 : index
    %c8_188 = arith.constant 8 : index
    %c0_189 = arith.constant 0 : index
    %474 = vector.load %arg9[%c0_187, %c8_188, %c0_189] : memref<1x72x256xf32, #tpu.memory_space<vmem>>, vector<1x8x256xf32>
    %475 = vector.shape_cast %474 : vector<1x8x256xf32> to vector<8x256xf32>
    %476 = vector.shape_cast %214 : vector<8x256xf32> to vector<1x8x256xf32>
    tpu.vector_store %arg9[%c0_187, %c8_188, %c0_189], %476 {strides = array<i32>} : memref<1x72x256xf32, #tpu.memory_space<vmem>>, vector<1x8x256xf32>,
    %c0_190 = arith.constant 0 : index
    %c16_191 = arith.constant 16 : index
    %c0_192 = arith.constant 0 : index
    %477 = vector.load %arg9[%c0_190, %c16_191, %c0_192] : memref<1x72x256xf32, #tpu.memory_space<vmem>>, vector<1x8x256xf32>
    %478 = vector.shape_cast %477 : vector<1x8x256xf32> to vector<8x256xf32>
    %479 = vector.shape_cast %401 : vector<8x256xf32> to vector<1x8x256xf32>
    tpu.vector_store %arg9[%c0_190, %c16_191, %c0_192], %479 {strides = array<i32>} : memref<1x72x256xf32, #tpu.memory_space<vmem>>, vector<1x8x256xf32>,
    %c0_193 = arith.constant 0 : index
    %c24_194 = arith.constant 24 : index
    %c0_195 = arith.constant 0 : index
    %480 = vector.load %arg9[%c0_193, %c24_194, %c0_195] : memref<1x72x256xf32, #tpu.memory_space<vmem>>, vector<1x8x256xf32>
    %481 = vector.shape_cast %480 : vector<1x8x256xf32> to vector<8x256xf32>
    %482 = vector.shape_cast %473 : vector<8x256xf32> to vector<1x8x256xf32>
    tpu.vector_store %arg9[%c0_193, %c24_194, %c0_195], %482 {strides = array<i32>} : memref<1x72x256xf32, #tpu.memory_space<vmem>>, vector<1x8x256xf32>,
    %c0_196 = arith.constant 0 : index
    %c32_197 = arith.constant 32 : index
    %c0_198 = arith.constant 0 : index
    %483 = vector.load %arg9[%c0_196, %c32_197, %c0_198] : memref<1x72x256xf32, #tpu.memory_space<vmem>>, vector<1x8x256xf32>
    %484 = vector.shape_cast %483 : vector<1x8x256xf32> to vector<8x256xf32>
    %485 = vector.shape_cast %217 : vector<8x256xf32> to vector<1x8x256xf32>
    tpu.vector_store %arg9[%c0_196, %c32_197, %c0_198], %485 {strides = array<i32>} : memref<1x72x256xf32, #tpu.memory_space<vmem>>, vector<1x8x256xf32>,
    %c0_199 = arith.constant 0 : index
    %c0_200 = arith.constant 0 : index
    %c0_201 = arith.constant 0 : index
    %486 = vector.load %arg9[%c0_199, %c0_200, %c0_201] : memref<1x72x256xf32, #tpu.memory_space<vmem>>, vector<1x40x256xf32>
    %487 = vector.shape_cast %486 : vector<1x40x256xf32> to vector<40x256xf32>
    %c17_i32_202 = arith.constant 17 : i32
    %488 = tpu.dynamic_rotate %487 by %c17_i32_202 dim 1 : vector<40x256xf32>, i32 -> vector<40x256xf32>
    %cst_203 = arith.constant 0xFF800000 : f32
    %489 = vector.shape_cast %48 : vector<1x256xi1> to vector<1x256xi1>
    %490 = vector.broadcast %489 : vector<1x256xi1> to vector<40x256xi1>
    %491 = vector.broadcast %cst_203 : f32 to vector<40x256xf32>
    %492 = arith.select %490, %488, %491 : vector<40x256xi1>, vector<40x256xf32>
    %493 = arith.maximumf %487, %492 : vector<40x256xf32>
    %c16_i32_204 = arith.constant 16 : i32
    %494 = tpu.dynamic_rotate %487 by %c16_i32_204 dim 1 : vector<40x256xf32>, i32 -> vector<40x256xf32>
    %cst_205 = arith.constant 0xFF800000 : f32
    %495 = vector.shape_cast %50 : vector<1x256xi1> to vector<1x256xi1>
    %496 = vector.broadcast %495 : vector<1x256xi1> to vector<40x256xi1>
    %497 = vector.broadcast %cst_205 : f32 to vector<40x256xf32>
    %498 = arith.select %496, %494, %497 : vector<40x256xi1>, vector<40x256xf32>
    %499 = arith.maximumf %493, %498 : vector<40x256xf32>
    %c15_i32_206 = arith.constant 15 : i32
    %500 = tpu.dynamic_rotate %487 by %c15_i32_206 dim 1 : vector<40x256xf32>, i32 -> vector<40x256xf32>
    %cst_207 = arith.constant 0xFF800000 : f32
    %501 = vector.shape_cast %55 : vector<1x256xi1> to vector<1x256xi1>
    %502 = vector.broadcast %501 : vector<1x256xi1> to vector<40x256xi1>
    %503 = vector.broadcast %cst_207 : f32 to vector<40x256xf32>
    %504 = arith.select %502, %500, %503 : vector<40x256xi1>, vector<40x256xf32>
    %505 = arith.maximumf %499, %504 : vector<40x256xf32>
    %c1_i32_208 = arith.constant 1 : i32
    %506 = tpu.dynamic_rotate %487 by %c1_i32_208 dim 1 : vector<40x256xf32>, i32 -> vector<40x256xf32>
    %cst_209 = arith.constant 0xFF800000 : f32
    %507 = vector.shape_cast %64 : vector<1x256xi1> to vector<1x256xi1>
    %508 = vector.broadcast %507 : vector<1x256xi1> to vector<40x256xi1>
    %509 = vector.broadcast %cst_209 : f32 to vector<40x256xf32>
    %510 = arith.select %508, %506, %509 : vector<40x256xi1>, vector<40x256xf32>
    %511 = arith.maximumf %505, %510 : vector<40x256xf32>
    %c255_i32_210 = arith.constant 255 : i32
    %512 = tpu.dynamic_rotate %487 by %c255_i32_210 dim 1 : vector<40x256xf32>, i32 -> vector<40x256xf32>
    %cst_211 = arith.constant 0xFF800000 : f32
    %513 = vector.shape_cast %66 : vector<1x256xi1> to vector<1x256xi1>
    %514 = vector.broadcast %513 : vector<1x256xi1> to vector<40x256xi1>
    %515 = vector.broadcast %cst_211 : f32 to vector<40x256xf32>
    %516 = arith.select %514, %512, %515 : vector<40x256xi1>, vector<40x256xf32>
    %517 = arith.maximumf %511, %516 : vector<40x256xf32>
    %c241_i32_212 = arith.constant 241 : i32
    %518 = tpu.dynamic_rotate %487 by %c241_i32_212 dim 1 : vector<40x256xf32>, i32 -> vector<40x256xf32>
    %cst_213 = arith.constant 0xFF800000 : f32
    %519 = vector.shape_cast %78 : vector<1x256xi1> to vector<1x256xi1>
    %520 = vector.broadcast %519 : vector<1x256xi1> to vector<40x256xi1>
    %521 = vector.broadcast %cst_213 : f32 to vector<40x256xf32>
    %522 = arith.select %520, %518, %521 : vector<40x256xi1>, vector<40x256xf32>
    %523 = arith.maximumf %517, %522 : vector<40x256xf32>
    %c240_i32_214 = arith.constant 240 : i32
    %524 = tpu.dynamic_rotate %487 by %c240_i32_214 dim 1 : vector<40x256xf32>, i32 -> vector<40x256xf32>
    %cst_215 = arith.constant 0xFF800000 : f32
    %525 = vector.shape_cast %80 : vector<1x256xi1> to vector<1x256xi1>
    %526 = vector.broadcast %525 : vector<1x256xi1> to vector<40x256xi1>
    %527 = vector.broadcast %cst_215 : f32 to vector<40x256xf32>
    %528 = arith.select %526, %524, %527 : vector<40x256xi1>, vector<40x256xf32>
    %529 = arith.maximumf %523, %528 : vector<40x256xf32>
    %c239_i32_216 = arith.constant 239 : i32
    %530 = tpu.dynamic_rotate %487 by %c239_i32_216 dim 1 : vector<40x256xf32>, i32 -> vector<40x256xf32>
    %cst_217 = arith.constant 0xFF800000 : f32
    %531 = vector.shape_cast %85 : vector<1x256xi1> to vector<1x256xi1>
    %532 = vector.broadcast %531 : vector<1x256xi1> to vector<40x256xi1>
    %533 = vector.broadcast %cst_217 : f32 to vector<40x256xf32>
    %534 = arith.select %532, %530, %533 : vector<40x256xi1>, vector<40x256xf32>
    %535 = arith.maximumf %529, %534 : vector<40x256xf32>
    %c144 = arith.constant 144 : index
    %c0_218 = arith.constant 0 : index
    %536 = vector.load %arg2[%c144, %c0_218] : memref<544x1xf32, #tpu.memory_space<vmem>>, vector<40x1xf32>
    %c184_219 = arith.constant 184 : index
    %c0_220 = arith.constant 0 : index
    %537 = vector.load %arg2[%c184_219, %c0_220] : memref<544x1xf32, #tpu.memory_space<vmem>>, vector<40x1xf32>
    %538 = vector.broadcast %536 : vector<40x1xf32> to vector<40x256xf32>
    %539 = arith.mulf %487, %538 : vector<40x256xf32>
    %540 = vector.broadcast %537 : vector<40x1xf32> to vector<40x256xf32>
    %541 = arith.addf %539, %540 : vector<40x256xf32>
    %cst_221 = arith.constant 0.000000e+00 : f32
    %542 = vector.broadcast %cst_221 : f32 to vector<40x256xf32>
    %543 = arith.maximumf %541, %542 : vector<40x256xf32>
    %544 = arith.truncf %543 : vector<40x256xf32> to vector<40x256xbf16>
    %c0_222 = arith.constant 0 : index
    %c0_223 = arith.constant 0 : index
    %545 = vector.load %arg10[%c0_222, %c0_223] : memref<432x256xbf16, #tpu.memory_space<vmem>>, vector<40x256xbf16>
    tpu.vector_store %arg10[%c0_222, %c0_223], %544 {strides = array<i32>} : memref<432x256xbf16, #tpu.memory_space<vmem>>, vector<40x256xbf16>,
    %c224_224 = arith.constant 224 : index
    %c0_225 = arith.constant 0 : index
    %546 = vector.load %arg2[%c224_224, %c0_225] : memref<544x1xf32, #tpu.memory_space<vmem>>, vector<40x1xf32>
    %c264_226 = arith.constant 264 : index
    %c0_227 = arith.constant 0 : index
    %547 = vector.load %arg2[%c264_226, %c0_227] : memref<544x1xf32, #tpu.memory_space<vmem>>, vector<40x1xf32>
    %548 = vector.broadcast %546 : vector<40x1xf32> to vector<40x256xf32>
    %549 = arith.mulf %487, %548 : vector<40x256xf32>
    %550 = vector.broadcast %547 : vector<40x1xf32> to vector<40x256xf32>
    %551 = arith.addf %549, %550 : vector<40x256xf32>
    %cst_228 = arith.constant 0.000000e+00 : f32
    %552 = vector.broadcast %cst_228 : f32 to vector<40x256xf32>
    %553 = arith.maximumf %551, %552 : vector<40x256xf32>
    %554 = arith.truncf %553 : vector<40x256xf32> to vector<40x256xbf16>
    %c40_229 = arith.constant 40 : index
    %c0_230 = arith.constant 0 : index
    %555 = vector.load %arg10[%c40_229, %c0_230] : memref<432x256xbf16, #tpu.memory_space<vmem>>, vector<40x256xbf16>
    tpu.vector_store %arg10[%c40_229, %c0_230], %554 {strides = array<i32>} : memref<432x256xbf16, #tpu.memory_space<vmem>>, vector<40x256xbf16>,
    %c304_231 = arith.constant 304 : index
    %c0_232 = arith.constant 0 : index
    %556 = vector.load %arg2[%c304_231, %c0_232] : memref<544x1xf32, #tpu.memory_space<vmem>>, vector<40x1xf32>
    %c344_233 = arith.constant 344 : index
    %c0_234 = arith.constant 0 : index
    %557 = vector.load %arg2[%c344_233, %c0_234] : memref<544x1xf32, #tpu.memory_space<vmem>>, vector<40x1xf32>
    %558 = vector.broadcast %556 : vector<40x1xf32> to vector<40x256xf32>
    %559 = arith.mulf %487, %558 : vector<40x256xf32>
    %560 = vector.broadcast %557 : vector<40x1xf32> to vector<40x256xf32>
    %561 = arith.addf %559, %560 : vector<40x256xf32>
    %cst_235 = arith.constant 0.000000e+00 : f32
    %562 = vector.broadcast %cst_235 : f32 to vector<40x256xf32>
    %563 = arith.maximumf %561, %562 : vector<40x256xf32>
    %564 = arith.truncf %563 : vector<40x256xf32> to vector<40x256xbf16>
    %c80 = arith.constant 80 : index
    %c0_236 = arith.constant 0 : index
    %565 = vector.load %arg10[%c80, %c0_236] : memref<432x256xbf16, #tpu.memory_space<vmem>>, vector<40x256xbf16>
    tpu.vector_store %arg10[%c80, %c0_236], %564 {strides = array<i32>} : memref<432x256xbf16, #tpu.memory_space<vmem>>, vector<40x256xbf16>,
    %c384_237 = arith.constant 384 : index
    %c0_238 = arith.constant 0 : index
    %566 = vector.load %arg2[%c384_237, %c0_238] : memref<544x1xf32, #tpu.memory_space<vmem>>, vector<40x1xf32>
    %c424_239 = arith.constant 424 : index
    %c0_240 = arith.constant 0 : index
    %567 = vector.load %arg2[%c424_239, %c0_240] : memref<544x1xf32, #tpu.memory_space<vmem>>, vector<40x1xf32>
    %568 = vector.broadcast %566 : vector<40x1xf32> to vector<40x256xf32>
    %569 = arith.mulf %535, %568 : vector<40x256xf32>
    %570 = vector.broadcast %567 : vector<40x1xf32> to vector<40x256xf32>
    %571 = arith.addf %569, %570 : vector<40x256xf32>
    %cst_241 = arith.constant 0.000000e+00 : f32
    %572 = vector.broadcast %cst_241 : f32 to vector<40x256xf32>
    %573 = arith.maximumf %571, %572 : vector<40x256xf32>
    %574 = arith.truncf %573 : vector<40x256xf32> to vector<40x256xbf16>
    %c120_242 = arith.constant 120 : index
    %c0_243 = arith.constant 0 : index
    %575 = vector.load %arg10[%c120_242, %c0_243] : memref<432x256xbf16, #tpu.memory_space<vmem>>, vector<40x256xbf16>
    tpu.vector_store %arg10[%c120_242, %c0_243], %574 {strides = array<i32>} : memref<432x256xbf16, #tpu.memory_space<vmem>>, vector<40x256xbf16>,
    %c0_244 = arith.constant 0 : index
    %c0_245 = arith.constant 0 : index
    %576 = vector.load %arg6[%c0_244, %c0_245] : memref<32x160xbf16, #tpu.memory_space<vmem>>, vector<32x160xbf16>
    %c0_246 = arith.constant 0 : index
    %c0_247 = arith.constant 0 : index
    %577 = vector.load %arg10[%c0_246, %c0_247] : memref<432x256xbf16, #tpu.memory_space<vmem>>, vector<160x256xbf16>
    %cst_248 = arith.constant dense<0.000000e+00> : vector<32x256xf32>
    %578 = tpu.matmul %576, %577, %cst_248 {dimension_numbers = #tpu.dot_dimension_numbers<[1], [0], [0], [1], [0, 0, 1, 1], [], []>} : vector<32x160xbf16>, vector<160x256xbf16>, vector<32x256xf32> -> vector<32x256xf32>
    %c464 = arith.constant 464 : index
    %c0_249 = arith.constant 0 : index
    %579 = vector.load %arg2[%c464, %c0_249] : memref<544x1xf32, #tpu.memory_space<vmem>>, vector<32x1xf32>
    %580 = vector.broadcast %579 : vector<32x1xf32> to vector<32x256xf32>
    %581 = arith.addf %578, %580 : vector<32x256xf32>
    %582 = vector.extract_strided_slice %581 {offsets = [0, 0], sizes = [8, 256], strides = [1, 1]} : vector<32x256xf32> to vector<8x256xf32>
    %583 = vector.extract_strided_slice %581 {offsets = [8, 0], sizes = [8, 256], strides = [1, 1]} : vector<32x256xf32> to vector<8x256xf32>
    %584 = vector.extract_strided_slice %581 {offsets = [16, 0], sizes = [8, 256], strides = [1, 1]} : vector<32x256xf32> to vector<8x256xf32>
    %585 = vector.extract_strided_slice %581 {offsets = [24, 0], sizes = [8, 256], strides = [1, 1]} : vector<32x256xf32> to vector<8x256xf32>
    %c496 = arith.constant 496 : index
    %c0_250 = arith.constant 0 : index
    %586 = vector.load %arg2[%c496, %c0_250] : memref<544x1xf32, #tpu.memory_space<vmem>>, vector<8x1xf32>
    %587 = vector.broadcast %586 : vector<8x1xf32> to vector<8x256xf32>
    %588 = arith.mulf %583, %587 : vector<8x256xf32>
    %c504 = arith.constant 504 : index
    %c0_251 = arith.constant 0 : index
    %589 = vector.load %arg2[%c504, %c0_251] : memref<544x1xf32, #tpu.memory_space<vmem>>, vector<8x1xf32>
    %590 = vector.broadcast %589 : vector<8x1xf32> to vector<8x256xf32>
    %591 = arith.addf %588, %590 : vector<8x256xf32>
    %cst_252 = arith.constant 0.000000e+00 : f32
    %592 = vector.broadcast %cst_252 : f32 to vector<8x256xf32>
    %593 = arith.maximumf %591, %592 : vector<8x256xf32>
    %c34_i32_253 = arith.constant 34 : i32
    %594 = tpu.dynamic_rotate %593 by %c34_i32_253 dim 1 : vector<8x256xf32>, i32 -> vector<8x256xf32>
    %cst_254 = arith.constant 0.000000e+00 : f32
    %595 = vector.shape_cast %21 : vector<1x256xi1> to vector<1x256xi1>
    %596 = vector.broadcast %595 : vector<1x256xi1> to vector<8x256xi1>
    %597 = vector.broadcast %cst_254 : f32 to vector<8x256xf32>
    %598 = arith.select %596, %594, %597 : vector<8x256xi1>, vector<8x256xf32>
    %599 = arith.truncf %598 : vector<8x256xf32> to vector<8x256xbf16>
    %c160_255 = arith.constant 160 : index
    %c0_256 = arith.constant 0 : index
    %600 = vector.load %arg10[%c160_255, %c0_256] : memref<432x256xbf16, #tpu.memory_space<vmem>>, vector<8x256xbf16>
    tpu.vector_store %arg10[%c160_255, %c0_256], %599 {strides = array<i32>} : memref<432x256xbf16, #tpu.memory_space<vmem>>, vector<8x256xbf16>,
    %c33_i32_257 = arith.constant 33 : i32
    %601 = tpu.dynamic_rotate %593 by %c33_i32_257 dim 1 : vector<8x256xf32>, i32 -> vector<8x256xf32>
    %cst_258 = arith.constant 0.000000e+00 : f32
    %602 = vector.shape_cast %26 : vector<1x256xi1> to vector<1x256xi1>
    %603 = vector.broadcast %602 : vector<1x256xi1> to vector<8x256xi1>
    %604 = vector.broadcast %cst_258 : f32 to vector<8x256xf32>
    %605 = arith.select %603, %601, %604 : vector<8x256xi1>, vector<8x256xf32>
    %606 = arith.truncf %605 : vector<8x256xf32> to vector<8x256xbf16>
    %c168_259 = arith.constant 168 : index
    %c0_260 = arith.constant 0 : index
    %607 = vector.load %arg10[%c168_259, %c0_260] : memref<432x256xbf16, #tpu.memory_space<vmem>>, vector<8x256xbf16>
    tpu.vector_store %arg10[%c168_259, %c0_260], %606 {strides = array<i32>} : memref<432x256xbf16, #tpu.memory_space<vmem>>, vector<8x256xbf16>,
    %c32_i32_261 = arith.constant 32 : i32
    %608 = tpu.dynamic_rotate %593 by %c32_i32_261 dim 1 : vector<8x256xf32>, i32 -> vector<8x256xf32>
    %cst_262 = arith.constant 0.000000e+00 : f32
    %609 = vector.shape_cast %28 : vector<1x256xi1> to vector<1x256xi1>
    %610 = vector.broadcast %609 : vector<1x256xi1> to vector<8x256xi1>
    %611 = vector.broadcast %cst_262 : f32 to vector<8x256xf32>
    %612 = arith.select %610, %608, %611 : vector<8x256xi1>, vector<8x256xf32>
    %613 = arith.truncf %612 : vector<8x256xf32> to vector<8x256xbf16>
    %c176_263 = arith.constant 176 : index
    %c0_264 = arith.constant 0 : index
    %614 = vector.load %arg10[%c176_263, %c0_264] : memref<432x256xbf16, #tpu.memory_space<vmem>>, vector<8x256xbf16>
    tpu.vector_store %arg10[%c176_263, %c0_264], %613 {strides = array<i32>} : memref<432x256xbf16, #tpu.memory_space<vmem>>, vector<8x256xbf16>,
    %c31_i32_265 = arith.constant 31 : i32
    %615 = tpu.dynamic_rotate %593 by %c31_i32_265 dim 1 : vector<8x256xf32>, i32 -> vector<8x256xf32>
    %cst_266 = arith.constant 0.000000e+00 : f32
    %616 = vector.shape_cast %33 : vector<1x256xi1> to vector<1x256xi1>
    %617 = vector.broadcast %616 : vector<1x256xi1> to vector<8x256xi1>
    %618 = vector.broadcast %cst_266 : f32 to vector<8x256xf32>
    %619 = arith.select %617, %615, %618 : vector<8x256xi1>, vector<8x256xf32>
    %620 = arith.truncf %619 : vector<8x256xf32> to vector<8x256xbf16>
    %c184_267 = arith.constant 184 : index
    %c0_268 = arith.constant 0 : index
    %621 = vector.load %arg10[%c184_267, %c0_268] : memref<432x256xbf16, #tpu.memory_space<vmem>>, vector<8x256xbf16>
    tpu.vector_store %arg10[%c184_267, %c0_268], %620 {strides = array<i32>} : memref<432x256xbf16, #tpu.memory_space<vmem>>, vector<8x256xbf16>,
    %c30_i32_269 = arith.constant 30 : i32
    %622 = tpu.dynamic_rotate %593 by %c30_i32_269 dim 1 : vector<8x256xf32>, i32 -> vector<8x256xf32>
    %cst_270 = arith.constant 0.000000e+00 : f32
    %623 = vector.shape_cast %38 : vector<1x256xi1> to vector<1x256xi1>
    %624 = vector.broadcast %623 : vector<1x256xi1> to vector<8x256xi1>
    %625 = vector.broadcast %cst_270 : f32 to vector<8x256xf32>
    %626 = arith.select %624, %622, %625 : vector<8x256xi1>, vector<8x256xf32>
    %627 = arith.truncf %626 : vector<8x256xf32> to vector<8x256xbf16>
    %c192_271 = arith.constant 192 : index
    %c0_272 = arith.constant 0 : index
    %628 = vector.load %arg10[%c192_271, %c0_272] : memref<432x256xbf16, #tpu.memory_space<vmem>>, vector<8x256xbf16>
    tpu.vector_store %arg10[%c192_271, %c0_272], %627 {strides = array<i32>} : memref<432x256xbf16, #tpu.memory_space<vmem>>, vector<8x256xbf16>,
    %c18_i32_273 = arith.constant 18 : i32
    %629 = tpu.dynamic_rotate %593 by %c18_i32_273 dim 1 : vector<8x256xf32>, i32 -> vector<8x256xf32>
    %cst_274 = arith.constant 0.000000e+00 : f32
    %630 = vector.shape_cast %43 : vector<1x256xi1> to vector<1x256xi1>
    %631 = vector.broadcast %630 : vector<1x256xi1> to vector<8x256xi1>
    %632 = vector.broadcast %cst_274 : f32 to vector<8x256xf32>
    %633 = arith.select %631, %629, %632 : vector<8x256xi1>, vector<8x256xf32>
    %634 = arith.truncf %633 : vector<8x256xf32> to vector<8x256xbf16>
    %c200_275 = arith.constant 200 : index
    %c0_276 = arith.constant 0 : index
    %635 = vector.load %arg10[%c200_275, %c0_276] : memref<432x256xbf16, #tpu.memory_space<vmem>>, vector<8x256xbf16>
    tpu.vector_store %arg10[%c200_275, %c0_276], %634 {strides = array<i32>} : memref<432x256xbf16, #tpu.memory_space<vmem>>, vector<8x256xbf16>,
    %c17_i32_277 = arith.constant 17 : i32
    %636 = tpu.dynamic_rotate %593 by %c17_i32_277 dim 1 : vector<8x256xf32>, i32 -> vector<8x256xf32>
    %cst_278 = arith.constant 0.000000e+00 : f32
    %637 = vector.shape_cast %48 : vector<1x256xi1> to vector<1x256xi1>
    %638 = vector.broadcast %637 : vector<1x256xi1> to vector<8x256xi1>
    %639 = vector.broadcast %cst_278 : f32 to vector<8x256xf32>
    %640 = arith.select %638, %636, %639 : vector<8x256xi1>, vector<8x256xf32>
    %641 = arith.truncf %640 : vector<8x256xf32> to vector<8x256xbf16>
    %c208_279 = arith.constant 208 : index
    %c0_280 = arith.constant 0 : index
    %642 = vector.load %arg10[%c208_279, %c0_280] : memref<432x256xbf16, #tpu.memory_space<vmem>>, vector<8x256xbf16>
    tpu.vector_store %arg10[%c208_279, %c0_280], %641 {strides = array<i32>} : memref<432x256xbf16, #tpu.memory_space<vmem>>, vector<8x256xbf16>,
    %c16_i32_281 = arith.constant 16 : i32
    %643 = tpu.dynamic_rotate %593 by %c16_i32_281 dim 1 : vector<8x256xf32>, i32 -> vector<8x256xf32>
    %cst_282 = arith.constant 0.000000e+00 : f32
    %644 = vector.shape_cast %50 : vector<1x256xi1> to vector<1x256xi1>
    %645 = vector.broadcast %644 : vector<1x256xi1> to vector<8x256xi1>
    %646 = vector.broadcast %cst_282 : f32 to vector<8x256xf32>
    %647 = arith.select %645, %643, %646 : vector<8x256xi1>, vector<8x256xf32>
    %648 = arith.truncf %647 : vector<8x256xf32> to vector<8x256xbf16>
    %c216_283 = arith.constant 216 : index
    %c0_284 = arith.constant 0 : index
    %649 = vector.load %arg10[%c216_283, %c0_284] : memref<432x256xbf16, #tpu.memory_space<vmem>>, vector<8x256xbf16>
    tpu.vector_store %arg10[%c216_283, %c0_284], %648 {strides = array<i32>} : memref<432x256xbf16, #tpu.memory_space<vmem>>, vector<8x256xbf16>,
    %c15_i32_285 = arith.constant 15 : i32
    %650 = tpu.dynamic_rotate %593 by %c15_i32_285 dim 1 : vector<8x256xf32>, i32 -> vector<8x256xf32>
    %cst_286 = arith.constant 0.000000e+00 : f32
    %651 = vector.shape_cast %55 : vector<1x256xi1> to vector<1x256xi1>
    %652 = vector.broadcast %651 : vector<1x256xi1> to vector<8x256xi1>
    %653 = vector.broadcast %cst_286 : f32 to vector<8x256xf32>
    %654 = arith.select %652, %650, %653 : vector<8x256xi1>, vector<8x256xf32>
    %655 = arith.truncf %654 : vector<8x256xf32> to vector<8x256xbf16>
    %c224_287 = arith.constant 224 : index
    %c0_288 = arith.constant 0 : index
    %656 = vector.load %arg10[%c224_287, %c0_288] : memref<432x256xbf16, #tpu.memory_space<vmem>>, vector<8x256xbf16>
    tpu.vector_store %arg10[%c224_287, %c0_288], %655 {strides = array<i32>} : memref<432x256xbf16, #tpu.memory_space<vmem>>, vector<8x256xbf16>,
    %c14_i32_289 = arith.constant 14 : i32
    %657 = tpu.dynamic_rotate %593 by %c14_i32_289 dim 1 : vector<8x256xf32>, i32 -> vector<8x256xf32>
    %cst_290 = arith.constant 0.000000e+00 : f32
    %658 = vector.shape_cast %60 : vector<1x256xi1> to vector<1x256xi1>
    %659 = vector.broadcast %658 : vector<1x256xi1> to vector<8x256xi1>
    %660 = vector.broadcast %cst_290 : f32 to vector<8x256xf32>
    %661 = arith.select %659, %657, %660 : vector<8x256xi1>, vector<8x256xf32>
    %662 = arith.truncf %661 : vector<8x256xf32> to vector<8x256xbf16>
    %c232_291 = arith.constant 232 : index
    %c0_292 = arith.constant 0 : index
    %663 = vector.load %arg10[%c232_291, %c0_292] : memref<432x256xbf16, #tpu.memory_space<vmem>>, vector<8x256xbf16>
    tpu.vector_store %arg10[%c232_291, %c0_292], %662 {strides = array<i32>} : memref<432x256xbf16, #tpu.memory_space<vmem>>, vector<8x256xbf16>,
    %c2_i32_293 = arith.constant 2 : i32
    %664 = tpu.dynamic_rotate %593 by %c2_i32_293 dim 1 : vector<8x256xf32>, i32 -> vector<8x256xf32>
    %cst_294 = arith.constant 0.000000e+00 : f32
    %665 = vector.shape_cast %62 : vector<1x256xi1> to vector<1x256xi1>
    %666 = vector.broadcast %665 : vector<1x256xi1> to vector<8x256xi1>
    %667 = vector.broadcast %cst_294 : f32 to vector<8x256xf32>
    %668 = arith.select %666, %664, %667 : vector<8x256xi1>, vector<8x256xf32>
    %669 = arith.truncf %668 : vector<8x256xf32> to vector<8x256xbf16>
    %c240_295 = arith.constant 240 : index
    %c0_296 = arith.constant 0 : index
    %670 = vector.load %arg10[%c240_295, %c0_296] : memref<432x256xbf16, #tpu.memory_space<vmem>>, vector<8x256xbf16>
    tpu.vector_store %arg10[%c240_295, %c0_296], %669 {strides = array<i32>} : memref<432x256xbf16, #tpu.memory_space<vmem>>, vector<8x256xbf16>,
    %c1_i32_297 = arith.constant 1 : i32
    %671 = tpu.dynamic_rotate %593 by %c1_i32_297 dim 1 : vector<8x256xf32>, i32 -> vector<8x256xf32>
    %cst_298 = arith.constant 0.000000e+00 : f32
    %672 = vector.shape_cast %64 : vector<1x256xi1> to vector<1x256xi1>
    %673 = vector.broadcast %672 : vector<1x256xi1> to vector<8x256xi1>
    %674 = vector.broadcast %cst_298 : f32 to vector<8x256xf32>
    %675 = arith.select %673, %671, %674 : vector<8x256xi1>, vector<8x256xf32>
    %676 = arith.truncf %675 : vector<8x256xf32> to vector<8x256xbf16>
    %c248_299 = arith.constant 248 : index
    %c0_300 = arith.constant 0 : index
    %677 = vector.load %arg10[%c248_299, %c0_300] : memref<432x256xbf16, #tpu.memory_space<vmem>>, vector<8x256xbf16>
    tpu.vector_store %arg10[%c248_299, %c0_300], %676 {strides = array<i32>} : memref<432x256xbf16, #tpu.memory_space<vmem>>, vector<8x256xbf16>,
    %678 = arith.truncf %593 : vector<8x256xf32> to vector<8x256xbf16>
    %c256_301 = arith.constant 256 : index
    %c0_302 = arith.constant 0 : index
    %679 = vector.load %arg10[%c256_301, %c0_302] : memref<432x256xbf16, #tpu.memory_space<vmem>>, vector<8x256xbf16>
    tpu.vector_store %arg10[%c256_301, %c0_302], %678 {strides = array<i32>} : memref<432x256xbf16, #tpu.memory_space<vmem>>, vector<8x256xbf16>,
    %c255_i32_303 = arith.constant 255 : i32
    %680 = tpu.dynamic_rotate %593 by %c255_i32_303 dim 1 : vector<8x256xf32>, i32 -> vector<8x256xf32>
    %cst_304 = arith.constant 0.000000e+00 : f32
    %681 = vector.shape_cast %66 : vector<1x256xi1> to vector<1x256xi1>
    %682 = vector.broadcast %681 : vector<1x256xi1> to vector<8x256xi1>
    %683 = vector.broadcast %cst_304 : f32 to vector<8x256xf32>
    %684 = arith.select %682, %680, %683 : vector<8x256xi1>, vector<8x256xf32>
    %685 = arith.truncf %684 : vector<8x256xf32> to vector<8x256xbf16>
    %c264_305 = arith.constant 264 : index
    %c0_306 = arith.constant 0 : index
    %686 = vector.load %arg10[%c264_305, %c0_306] : memref<432x256xbf16, #tpu.memory_space<vmem>>, vector<8x256xbf16>
    tpu.vector_store %arg10[%c264_305, %c0_306], %685 {strides = array<i32>} : memref<432x256xbf16, #tpu.memory_space<vmem>>, vector<8x256xbf16>,
    %c254_i32_307 = arith.constant 254 : i32
    %687 = tpu.dynamic_rotate %593 by %c254_i32_307 dim 1 : vector<8x256xf32>, i32 -> vector<8x256xf32>
    %cst_308 = arith.constant 0.000000e+00 : f32
    %688 = vector.shape_cast %68 : vector<1x256xi1> to vector<1x256xi1>
    %689 = vector.broadcast %688 : vector<1x256xi1> to vector<8x256xi1>
    %690 = vector.broadcast %cst_308 : f32 to vector<8x256xf32>
    %691 = arith.select %689, %687, %690 : vector<8x256xi1>, vector<8x256xf32>
    %692 = arith.truncf %691 : vector<8x256xf32> to vector<8x256xbf16>
    %c272_309 = arith.constant 272 : index
    %c0_310 = arith.constant 0 : index
    %693 = vector.load %arg10[%c272_309, %c0_310] : memref<432x256xbf16, #tpu.memory_space<vmem>>, vector<8x256xbf16>
    tpu.vector_store %arg10[%c272_309, %c0_310], %692 {strides = array<i32>} : memref<432x256xbf16, #tpu.memory_space<vmem>>, vector<8x256xbf16>,
    %c242_i32_311 = arith.constant 242 : i32
    %694 = tpu.dynamic_rotate %593 by %c242_i32_311 dim 1 : vector<8x256xf32>, i32 -> vector<8x256xf32>
    %cst_312 = arith.constant 0.000000e+00 : f32
    %695 = vector.shape_cast %73 : vector<1x256xi1> to vector<1x256xi1>
    %696 = vector.broadcast %695 : vector<1x256xi1> to vector<8x256xi1>
    %697 = vector.broadcast %cst_312 : f32 to vector<8x256xf32>
    %698 = arith.select %696, %694, %697 : vector<8x256xi1>, vector<8x256xf32>
    %699 = arith.truncf %698 : vector<8x256xf32> to vector<8x256xbf16>
    %c280_313 = arith.constant 280 : index
    %c0_314 = arith.constant 0 : index
    %700 = vector.load %arg10[%c280_313, %c0_314] : memref<432x256xbf16, #tpu.memory_space<vmem>>, vector<8x256xbf16>
    tpu.vector_store %arg10[%c280_313, %c0_314], %699 {strides = array<i32>} : memref<432x256xbf16, #tpu.memory_space<vmem>>, vector<8x256xbf16>,
    %c241_i32_315 = arith.constant 241 : i32
    %701 = tpu.dynamic_rotate %593 by %c241_i32_315 dim 1 : vector<8x256xf32>, i32 -> vector<8x256xf32>
    %cst_316 = arith.constant 0.000000e+00 : f32
    %702 = vector.shape_cast %78 : vector<1x256xi1> to vector<1x256xi1>
    %703 = vector.broadcast %702 : vector<1x256xi1> to vector<8x256xi1>
    %704 = vector.broadcast %cst_316 : f32 to vector<8x256xf32>
    %705 = arith.select %703, %701, %704 : vector<8x256xi1>, vector<8x256xf32>
    %706 = arith.truncf %705 : vector<8x256xf32> to vector<8x256xbf16>
    %c288_317 = arith.constant 288 : index
    %c0_318 = arith.constant 0 : index
    %707 = vector.load %arg10[%c288_317, %c0_318] : memref<432x256xbf16, #tpu.memory_space<vmem>>, vector<8x256xbf16>
    tpu.vector_store %arg10[%c288_317, %c0_318], %706 {strides = array<i32>} : memref<432x256xbf16, #tpu.memory_space<vmem>>, vector<8x256xbf16>,
    %c240_i32_319 = arith.constant 240 : i32
    %708 = tpu.dynamic_rotate %593 by %c240_i32_319 dim 1 : vector<8x256xf32>, i32 -> vector<8x256xf32>
    %cst_320 = arith.constant 0.000000e+00 : f32
    %709 = vector.shape_cast %80 : vector<1x256xi1> to vector<1x256xi1>
    %710 = vector.broadcast %709 : vector<1x256xi1> to vector<8x256xi1>
    %711 = vector.broadcast %cst_320 : f32 to vector<8x256xf32>
    %712 = arith.select %710, %708, %711 : vector<8x256xi1>, vector<8x256xf32>
    %713 = arith.truncf %712 : vector<8x256xf32> to vector<8x256xbf16>
    %c296_321 = arith.constant 296 : index
    %c0_322 = arith.constant 0 : index
    %714 = vector.load %arg10[%c296_321, %c0_322] : memref<432x256xbf16, #tpu.memory_space<vmem>>, vector<8x256xbf16>
    tpu.vector_store %arg10[%c296_321, %c0_322], %713 {strides = array<i32>} : memref<432x256xbf16, #tpu.memory_space<vmem>>, vector<8x256xbf16>,
    %c239_i32_323 = arith.constant 239 : i32
    %715 = tpu.dynamic_rotate %593 by %c239_i32_323 dim 1 : vector<8x256xf32>, i32 -> vector<8x256xf32>
    %cst_324 = arith.constant 0.000000e+00 : f32
    %716 = vector.shape_cast %85 : vector<1x256xi1> to vector<1x256xi1>
    %717 = vector.broadcast %716 : vector<1x256xi1> to vector<8x256xi1>
    %718 = vector.broadcast %cst_324 : f32 to vector<8x256xf32>
    %719 = arith.select %717, %715, %718 : vector<8x256xi1>, vector<8x256xf32>
    %720 = arith.truncf %719 : vector<8x256xf32> to vector<8x256xbf16>
    %c304_325 = arith.constant 304 : index
    %c0_326 = arith.constant 0 : index
    %721 = vector.load %arg10[%c304_325, %c0_326] : memref<432x256xbf16, #tpu.memory_space<vmem>>, vector<8x256xbf16>
    tpu.vector_store %arg10[%c304_325, %c0_326], %720 {strides = array<i32>} : memref<432x256xbf16, #tpu.memory_space<vmem>>, vector<8x256xbf16>,
    %c238_i32_327 = arith.constant 238 : i32
    %722 = tpu.dynamic_rotate %593 by %c238_i32_327 dim 1 : vector<8x256xf32>, i32 -> vector<8x256xf32>
    %cst_328 = arith.constant 0.000000e+00 : f32
    %723 = vector.shape_cast %90 : vector<1x256xi1> to vector<1x256xi1>
    %724 = vector.broadcast %723 : vector<1x256xi1> to vector<8x256xi1>
    %725 = vector.broadcast %cst_328 : f32 to vector<8x256xf32>
    %726 = arith.select %724, %722, %725 : vector<8x256xi1>, vector<8x256xf32>
    %727 = arith.truncf %726 : vector<8x256xf32> to vector<8x256xbf16>
    %c312_329 = arith.constant 312 : index
    %c0_330 = arith.constant 0 : index
    %728 = vector.load %arg10[%c312_329, %c0_330] : memref<432x256xbf16, #tpu.memory_space<vmem>>, vector<8x256xbf16>
    tpu.vector_store %arg10[%c312_329, %c0_330], %727 {strides = array<i32>} : memref<432x256xbf16, #tpu.memory_space<vmem>>, vector<8x256xbf16>,
    %c226_i32_331 = arith.constant 226 : i32
    %729 = tpu.dynamic_rotate %593 by %c226_i32_331 dim 1 : vector<8x256xf32>, i32 -> vector<8x256xf32>
    %cst_332 = arith.constant 0.000000e+00 : f32
    %730 = vector.shape_cast %95 : vector<1x256xi1> to vector<1x256xi1>
    %731 = vector.broadcast %730 : vector<1x256xi1> to vector<8x256xi1>
    %732 = vector.broadcast %cst_332 : f32 to vector<8x256xf32>
    %733 = arith.select %731, %729, %732 : vector<8x256xi1>, vector<8x256xf32>
    %734 = arith.truncf %733 : vector<8x256xf32> to vector<8x256xbf16>
    %c320_333 = arith.constant 320 : index
    %c0_334 = arith.constant 0 : index
    %735 = vector.load %arg10[%c320_333, %c0_334] : memref<432x256xbf16, #tpu.memory_space<vmem>>, vector<8x256xbf16>
    tpu.vector_store %arg10[%c320_333, %c0_334], %734 {strides = array<i32>} : memref<432x256xbf16, #tpu.memory_space<vmem>>, vector<8x256xbf16>,
    %c225_i32_335 = arith.constant 225 : i32
    %736 = tpu.dynamic_rotate %593 by %c225_i32_335 dim 1 : vector<8x256xf32>, i32 -> vector<8x256xf32>
    %cst_336 = arith.constant 0.000000e+00 : f32
    %737 = vector.shape_cast %100 : vector<1x256xi1> to vector<1x256xi1>
    %738 = vector.broadcast %737 : vector<1x256xi1> to vector<8x256xi1>
    %739 = vector.broadcast %cst_336 : f32 to vector<8x256xf32>
    %740 = arith.select %738, %736, %739 : vector<8x256xi1>, vector<8x256xf32>
    %741 = arith.truncf %740 : vector<8x256xf32> to vector<8x256xbf16>
    %c328_337 = arith.constant 328 : index
    %c0_338 = arith.constant 0 : index
    %742 = vector.load %arg10[%c328_337, %c0_338] : memref<432x256xbf16, #tpu.memory_space<vmem>>, vector<8x256xbf16>
    tpu.vector_store %arg10[%c328_337, %c0_338], %741 {strides = array<i32>} : memref<432x256xbf16, #tpu.memory_space<vmem>>, vector<8x256xbf16>,
    %c224_i32_339 = arith.constant 224 : i32
    %743 = tpu.dynamic_rotate %593 by %c224_i32_339 dim 1 : vector<8x256xf32>, i32 -> vector<8x256xf32>
    %cst_340 = arith.constant 0.000000e+00 : f32
    %744 = vector.shape_cast %102 : vector<1x256xi1> to vector<1x256xi1>
    %745 = vector.broadcast %744 : vector<1x256xi1> to vector<8x256xi1>
    %746 = vector.broadcast %cst_340 : f32 to vector<8x256xf32>
    %747 = arith.select %745, %743, %746 : vector<8x256xi1>, vector<8x256xf32>
    %748 = arith.truncf %747 : vector<8x256xf32> to vector<8x256xbf16>
    %c336_341 = arith.constant 336 : index
    %c0_342 = arith.constant 0 : index
    %749 = vector.load %arg10[%c336_341, %c0_342] : memref<432x256xbf16, #tpu.memory_space<vmem>>, vector<8x256xbf16>
    tpu.vector_store %arg10[%c336_341, %c0_342], %748 {strides = array<i32>} : memref<432x256xbf16, #tpu.memory_space<vmem>>, vector<8x256xbf16>,
    %c223_i32_343 = arith.constant 223 : i32
    %750 = tpu.dynamic_rotate %593 by %c223_i32_343 dim 1 : vector<8x256xf32>, i32 -> vector<8x256xf32>
    %cst_344 = arith.constant 0.000000e+00 : f32
    %751 = vector.shape_cast %107 : vector<1x256xi1> to vector<1x256xi1>
    %752 = vector.broadcast %751 : vector<1x256xi1> to vector<8x256xi1>
    %753 = vector.broadcast %cst_344 : f32 to vector<8x256xf32>
    %754 = arith.select %752, %750, %753 : vector<8x256xi1>, vector<8x256xf32>
    %755 = arith.truncf %754 : vector<8x256xf32> to vector<8x256xbf16>
    %c344_345 = arith.constant 344 : index
    %c0_346 = arith.constant 0 : index
    %756 = vector.load %arg10[%c344_345, %c0_346] : memref<432x256xbf16, #tpu.memory_space<vmem>>, vector<8x256xbf16>
    tpu.vector_store %arg10[%c344_345, %c0_346], %755 {strides = array<i32>} : memref<432x256xbf16, #tpu.memory_space<vmem>>, vector<8x256xbf16>,
    %c222_i32_347 = arith.constant 222 : i32
    %757 = tpu.dynamic_rotate %593 by %c222_i32_347 dim 1 : vector<8x256xf32>, i32 -> vector<8x256xf32>
    %cst_348 = arith.constant 0.000000e+00 : f32
    %758 = vector.shape_cast %112 : vector<1x256xi1> to vector<1x256xi1>
    %759 = vector.broadcast %758 : vector<1x256xi1> to vector<8x256xi1>
    %760 = vector.broadcast %cst_348 : f32 to vector<8x256xf32>
    %761 = arith.select %759, %757, %760 : vector<8x256xi1>, vector<8x256xf32>
    %762 = arith.truncf %761 : vector<8x256xf32> to vector<8x256xbf16>
    %c352_349 = arith.constant 352 : index
    %c0_350 = arith.constant 0 : index
    %763 = vector.load %arg10[%c352_349, %c0_350] : memref<432x256xbf16, #tpu.memory_space<vmem>>, vector<8x256xbf16>
    tpu.vector_store %arg10[%c352_349, %c0_350], %762 {strides = array<i32>} : memref<432x256xbf16, #tpu.memory_space<vmem>>, vector<8x256xbf16>,
    %c0_351 = arith.constant 0 : index
    %c0_352 = arith.constant 0 : index
    %764 = vector.load %arg7[%c0_351, %c0_352] : memref<8x200xbf16, #tpu.memory_space<vmem>>, vector<8x200xbf16>
    %c160_353 = arith.constant 160 : index
    %c0_354 = arith.constant 0 : index
    %765 = vector.load %arg10[%c160_353, %c0_354] : memref<432x256xbf16, #tpu.memory_space<vmem>>, vector<200x256xbf16>
    %cst_355 = arith.constant dense<0.000000e+00> : vector<8x256xf32>
    %766 = tpu.matmul %764, %765, %cst_355 {dimension_numbers = #tpu.dot_dimension_numbers<[1], [0], [0], [1], [0, 0, 1, 1], [], []>} : vector<8x200xbf16>, vector<200x256xbf16>, vector<8x256xf32> -> vector<8x256xf32>
    %c512 = arith.constant 512 : index
    %c0_356 = arith.constant 0 : index
    %767 = vector.load %arg2[%c512, %c0_356] : memref<544x1xf32, #tpu.memory_space<vmem>>, vector<8x1xf32>
    %768 = vector.broadcast %767 : vector<8x1xf32> to vector<8x256xf32>
    %769 = arith.addf %766, %768 : vector<8x256xf32>
    %c520 = arith.constant 520 : index
    %c0_357 = arith.constant 0 : index
    %770 = vector.load %arg2[%c520, %c0_357] : memref<544x1xf32, #tpu.memory_space<vmem>>, vector<8x1xf32>
    %771 = vector.broadcast %770 : vector<8x1xf32> to vector<8x256xf32>
    %772 = arith.mulf %584, %771 : vector<8x256xf32>
    %c528 = arith.constant 528 : index
    %c0_358 = arith.constant 0 : index
    %773 = vector.load %arg2[%c528, %c0_358] : memref<544x1xf32, #tpu.memory_space<vmem>>, vector<8x1xf32>
    %774 = vector.broadcast %773 : vector<8x1xf32> to vector<8x256xf32>
    %775 = arith.addf %772, %774 : vector<8x256xf32>
    %cst_359 = arith.constant 0.000000e+00 : f32
    %776 = vector.broadcast %cst_359 : f32 to vector<8x256xf32>
    %777 = arith.maximumf %775, %776 : vector<8x256xf32>
    %c17_i32_360 = arith.constant 17 : i32
    %778 = tpu.dynamic_rotate %777 by %c17_i32_360 dim 1 : vector<8x256xf32>, i32 -> vector<8x256xf32>
    %cst_361 = arith.constant 0.000000e+00 : f32
    %779 = vector.shape_cast %48 : vector<1x256xi1> to vector<1x256xi1>
    %780 = vector.broadcast %779 : vector<1x256xi1> to vector<8x256xi1>
    %781 = vector.broadcast %cst_361 : f32 to vector<8x256xf32>
    %782 = arith.select %780, %778, %781 : vector<8x256xi1>, vector<8x256xf32>
    %783 = arith.truncf %782 : vector<8x256xf32> to vector<8x256xbf16>
    %c360_362 = arith.constant 360 : index
    %c0_363 = arith.constant 0 : index
    %784 = vector.load %arg10[%c360_362, %c0_363] : memref<432x256xbf16, #tpu.memory_space<vmem>>, vector<8x256xbf16>
    tpu.vector_store %arg10[%c360_362, %c0_363], %783 {strides = array<i32>} : memref<432x256xbf16, #tpu.memory_space<vmem>>, vector<8x256xbf16>,
    %c16_i32_364 = arith.constant 16 : i32
    %785 = tpu.dynamic_rotate %777 by %c16_i32_364 dim 1 : vector<8x256xf32>, i32 -> vector<8x256xf32>
    %cst_365 = arith.constant 0.000000e+00 : f32
    %786 = vector.shape_cast %50 : vector<1x256xi1> to vector<1x256xi1>
    %787 = vector.broadcast %786 : vector<1x256xi1> to vector<8x256xi1>
    %788 = vector.broadcast %cst_365 : f32 to vector<8x256xf32>
    %789 = arith.select %787, %785, %788 : vector<8x256xi1>, vector<8x256xf32>
    %790 = arith.truncf %789 : vector<8x256xf32> to vector<8x256xbf16>
    %c368_366 = arith.constant 368 : index
    %c0_367 = arith.constant 0 : index
    %791 = vector.load %arg10[%c368_366, %c0_367] : memref<432x256xbf16, #tpu.memory_space<vmem>>, vector<8x256xbf16>
    tpu.vector_store %arg10[%c368_366, %c0_367], %790 {strides = array<i32>} : memref<432x256xbf16, #tpu.memory_space<vmem>>, vector<8x256xbf16>,
    %c15_i32_368 = arith.constant 15 : i32
    %792 = tpu.dynamic_rotate %777 by %c15_i32_368 dim 1 : vector<8x256xf32>, i32 -> vector<8x256xf32>
    %cst_369 = arith.constant 0.000000e+00 : f32
    %793 = vector.shape_cast %55 : vector<1x256xi1> to vector<1x256xi1>
    %794 = vector.broadcast %793 : vector<1x256xi1> to vector<8x256xi1>
    %795 = vector.broadcast %cst_369 : f32 to vector<8x256xf32>
    %796 = arith.select %794, %792, %795 : vector<8x256xi1>, vector<8x256xf32>
    %797 = arith.truncf %796 : vector<8x256xf32> to vector<8x256xbf16>
    %c376_370 = arith.constant 376 : index
    %c0_371 = arith.constant 0 : index
    %798 = vector.load %arg10[%c376_370, %c0_371] : memref<432x256xbf16, #tpu.memory_space<vmem>>, vector<8x256xbf16>
    tpu.vector_store %arg10[%c376_370, %c0_371], %797 {strides = array<i32>} : memref<432x256xbf16, #tpu.memory_space<vmem>>, vector<8x256xbf16>,
    %c1_i32_372 = arith.constant 1 : i32
    %799 = tpu.dynamic_rotate %777 by %c1_i32_372 dim 1 : vector<8x256xf32>, i32 -> vector<8x256xf32>
    %cst_373 = arith.constant 0.000000e+00 : f32
    %800 = vector.shape_cast %64 : vector<1x256xi1> to vector<1x256xi1>
    %801 = vector.broadcast %800 : vector<1x256xi1> to vector<8x256xi1>
    %802 = vector.broadcast %cst_373 : f32 to vector<8x256xf32>
    %803 = arith.select %801, %799, %802 : vector<8x256xi1>, vector<8x256xf32>
    %804 = arith.truncf %803 : vector<8x256xf32> to vector<8x256xbf16>
    %c384_374 = arith.constant 384 : index
    %c0_375 = arith.constant 0 : index
    %805 = vector.load %arg10[%c384_374, %c0_375] : memref<432x256xbf16, #tpu.memory_space<vmem>>, vector<8x256xbf16>
    tpu.vector_store %arg10[%c384_374, %c0_375], %804 {strides = array<i32>} : memref<432x256xbf16, #tpu.memory_space<vmem>>, vector<8x256xbf16>,
    %806 = arith.truncf %777 : vector<8x256xf32> to vector<8x256xbf16>
    %c392_376 = arith.constant 392 : index
    %c0_377 = arith.constant 0 : index
    %807 = vector.load %arg10[%c392_376, %c0_377] : memref<432x256xbf16, #tpu.memory_space<vmem>>, vector<8x256xbf16>
    tpu.vector_store %arg10[%c392_376, %c0_377], %806 {strides = array<i32>} : memref<432x256xbf16, #tpu.memory_space<vmem>>, vector<8x256xbf16>,
    %c255_i32_378 = arith.constant 255 : i32
    %808 = tpu.dynamic_rotate %777 by %c255_i32_378 dim 1 : vector<8x256xf32>, i32 -> vector<8x256xf32>
    %cst_379 = arith.constant 0.000000e+00 : f32
    %809 = vector.shape_cast %66 : vector<1x256xi1> to vector<1x256xi1>
    %810 = vector.broadcast %809 : vector<1x256xi1> to vector<8x256xi1>
    %811 = vector.broadcast %cst_379 : f32 to vector<8x256xf32>
    %812 = arith.select %810, %808, %811 : vector<8x256xi1>, vector<8x256xf32>
    %813 = arith.truncf %812 : vector<8x256xf32> to vector<8x256xbf16>
    %c400_380 = arith.constant 400 : index
    %c0_381 = arith.constant 0 : index
    %814 = vector.load %arg10[%c400_380, %c0_381] : memref<432x256xbf16, #tpu.memory_space<vmem>>, vector<8x256xbf16>
    tpu.vector_store %arg10[%c400_380, %c0_381], %813 {strides = array<i32>} : memref<432x256xbf16, #tpu.memory_space<vmem>>, vector<8x256xbf16>,
    %c241_i32_382 = arith.constant 241 : i32
    %815 = tpu.dynamic_rotate %777 by %c241_i32_382 dim 1 : vector<8x256xf32>, i32 -> vector<8x256xf32>
    %cst_383 = arith.constant 0.000000e+00 : f32
    %816 = vector.shape_cast %78 : vector<1x256xi1> to vector<1x256xi1>
    %817 = vector.broadcast %816 : vector<1x256xi1> to vector<8x256xi1>
    %818 = vector.broadcast %cst_383 : f32 to vector<8x256xf32>
    %819 = arith.select %817, %815, %818 : vector<8x256xi1>, vector<8x256xf32>
    %820 = arith.truncf %819 : vector<8x256xf32> to vector<8x256xbf16>
    %c408_384 = arith.constant 408 : index
    %c0_385 = arith.constant 0 : index
    %821 = vector.load %arg10[%c408_384, %c0_385] : memref<432x256xbf16, #tpu.memory_space<vmem>>, vector<8x256xbf16>
    tpu.vector_store %arg10[%c408_384, %c0_385], %820 {strides = array<i32>} : memref<432x256xbf16, #tpu.memory_space<vmem>>, vector<8x256xbf16>,
    %c240_i32_386 = arith.constant 240 : i32
    %822 = tpu.dynamic_rotate %777 by %c240_i32_386 dim 1 : vector<8x256xf32>, i32 -> vector<8x256xf32>
    %cst_387 = arith.constant 0.000000e+00 : f32
    %823 = vector.shape_cast %80 : vector<1x256xi1> to vector<1x256xi1>
    %824 = vector.broadcast %823 : vector<1x256xi1> to vector<8x256xi1>
    %825 = vector.broadcast %cst_387 : f32 to vector<8x256xf32>
    %826 = arith.select %824, %822, %825 : vector<8x256xi1>, vector<8x256xf32>
    %827 = arith.truncf %826 : vector<8x256xf32> to vector<8x256xbf16>
    %c416_388 = arith.constant 416 : index
    %c0_389 = arith.constant 0 : index
    %828 = vector.load %arg10[%c416_388, %c0_389] : memref<432x256xbf16, #tpu.memory_space<vmem>>, vector<8x256xbf16>
    tpu.vector_store %arg10[%c416_388, %c0_389], %827 {strides = array<i32>} : memref<432x256xbf16, #tpu.memory_space<vmem>>, vector<8x256xbf16>,
    %c239_i32_390 = arith.constant 239 : i32
    %829 = tpu.dynamic_rotate %777 by %c239_i32_390 dim 1 : vector<8x256xf32>, i32 -> vector<8x256xf32>
    %cst_391 = arith.constant 0.000000e+00 : f32
    %830 = vector.shape_cast %85 : vector<1x256xi1> to vector<1x256xi1>
    %831 = vector.broadcast %830 : vector<1x256xi1> to vector<8x256xi1>
    %832 = vector.broadcast %cst_391 : f32 to vector<8x256xf32>
    %833 = arith.select %831, %829, %832 : vector<8x256xi1>, vector<8x256xf32>
    %834 = arith.truncf %833 : vector<8x256xf32> to vector<8x256xbf16>
    %c424_392 = arith.constant 424 : index
    %c0_393 = arith.constant 0 : index
    %835 = vector.load %arg10[%c424_392, %c0_393] : memref<432x256xbf16, #tpu.memory_space<vmem>>, vector<8x256xbf16>
    tpu.vector_store %arg10[%c424_392, %c0_393], %834 {strides = array<i32>} : memref<432x256xbf16, #tpu.memory_space<vmem>>, vector<8x256xbf16>,
    %c0_394 = arith.constant 0 : index
    %c0_395 = arith.constant 0 : index
    %836 = vector.load %arg8[%c0_394, %c0_395] : memref<8x72xbf16, #tpu.memory_space<vmem>>, vector<8x72xbf16>
    %c360_396 = arith.constant 360 : index
    %c0_397 = arith.constant 0 : index
    %837 = vector.load %arg10[%c360_396, %c0_397] : memref<432x256xbf16, #tpu.memory_space<vmem>>, vector<72x256xbf16>
    %cst_398 = arith.constant dense<0.000000e+00> : vector<8x256xf32>
    %838 = tpu.matmul %836, %837, %cst_398 {dimension_numbers = #tpu.dot_dimension_numbers<[1], [0], [0], [1], [0, 0, 1, 1], [], []>} : vector<8x72xbf16>, vector<72x256xbf16>, vector<8x256xf32> -> vector<8x256xf32>
    %c536 = arith.constant 536 : index
    %c0_399 = arith.constant 0 : index
    %839 = vector.load %arg2[%c536, %c0_399] : memref<544x1xf32, #tpu.memory_space<vmem>>, vector<8x1xf32>
    %840 = vector.broadcast %839 : vector<8x1xf32> to vector<8x256xf32>
    %841 = arith.addf %838, %840 : vector<8x256xf32>
    %c0_400 = arith.constant 0 : index
    %c40_401 = arith.constant 40 : index
    %c0_402 = arith.constant 0 : index
    %842 = vector.load %arg9[%c0_400, %c40_401, %c0_402] : memref<1x72x256xf32, #tpu.memory_space<vmem>>, vector<1x8x256xf32>
    %843 = vector.shape_cast %842 : vector<1x8x256xf32> to vector<8x256xf32>
    %844 = vector.shape_cast %582 : vector<8x256xf32> to vector<1x8x256xf32>
    tpu.vector_store %arg9[%c0_400, %c40_401, %c0_402], %844 {strides = array<i32>} : memref<1x72x256xf32, #tpu.memory_space<vmem>>, vector<1x8x256xf32>,
    %c0_403 = arith.constant 0 : index
    %c48_404 = arith.constant 48 : index
    %c0_405 = arith.constant 0 : index
    %845 = vector.load %arg9[%c0_403, %c48_404, %c0_405] : memref<1x72x256xf32, #tpu.memory_space<vmem>>, vector<1x8x256xf32>
    %846 = vector.shape_cast %845 : vector<1x8x256xf32> to vector<8x256xf32>
    %847 = vector.shape_cast %769 : vector<8x256xf32> to vector<1x8x256xf32>
    tpu.vector_store %arg9[%c0_403, %c48_404, %c0_405], %847 {strides = array<i32>} : memref<1x72x256xf32, #tpu.memory_space<vmem>>, vector<1x8x256xf32>,
    %c0_406 = arith.constant 0 : index
    %c56_407 = arith.constant 56 : index
    %c0_408 = arith.constant 0 : index
    %848 = vector.load %arg9[%c0_406, %c56_407, %c0_408] : memref<1x72x256xf32, #tpu.memory_space<vmem>>, vector<1x8x256xf32>
    %849 = vector.shape_cast %848 : vector<1x8x256xf32> to vector<8x256xf32>
    %850 = vector.shape_cast %841 : vector<8x256xf32> to vector<1x8x256xf32>
    tpu.vector_store %arg9[%c0_406, %c56_407, %c0_408], %850 {strides = array<i32>} : memref<1x72x256xf32, #tpu.memory_space<vmem>>, vector<1x8x256xf32>,
    %c0_409 = arith.constant 0 : index
    %c64_410 = arith.constant 64 : index
    %c0_411 = arith.constant 0 : index
    %851 = vector.load %arg9[%c0_409, %c64_410, %c0_411] : memref<1x72x256xf32, #tpu.memory_space<vmem>>, vector<1x8x256xf32>
    %852 = vector.shape_cast %851 : vector<1x8x256xf32> to vector<8x256xf32>
    %853 = vector.shape_cast %585 : vector<8x256xf32> to vector<1x8x256xf32>
    tpu.vector_store %arg9[%c0_409, %c64_410, %c0_411], %853 {strides = array<i32>} : memref<1x72x256xf32, #tpu.memory_space<vmem>>, vector<1x8x256xf32>,
    return
  }
  func.func @transform_0(%arg0: i32) -> (i32, i32, i32) {
    %c0_i32 = arith.constant 0 : i32
    %c0_i32_0 = arith.constant 0 : i32
    %c0_i32_1 = arith.constant 0 : i32
    return %arg0, %c0_i32, %c0_i32_0 : i32, i32, i32
  }
  func.func @transform_1(%arg0: i32) -> (i32, i32) {
    %c0_i32 = arith.constant 0 : i32
    %c0_i32_0 = arith.constant 0 : i32
    %c0_i32_1 = arith.constant 0 : i32
    return %c0_i32, %c0_i32_0 : i32, i32
  }
  func.func @transform_2(%arg0: i32) -> (i32, i32) {
    %c0_i32 = arith.constant 0 : i32
    %c0_i32_0 = arith.constant 0 : i32
    %c0_i32_1 = arith.constant 0 : i32
    return %c0_i32, %c0_i32_0 : i32, i32
  }
  func.func @transform_3(%arg0: i32) -> (i32, i32) {
    %c0_i32 = arith.constant 0 : i32
    %c0_i32_0 = arith.constant 0 : i32
    %c0_i32_1 = arith.constant 0 : i32
    return %c0_i32, %c0_i32_0 : i32, i32
  }
  func.func @transform_4(%arg0: i32) -> (i32, i32) {
    %c0_i32 = arith.constant 0 : i32
    %c0_i32_0 = arith.constant 0 : i32
    %c0_i32_1 = arith.constant 0 : i32
    return %c0_i32, %c0_i32_0 : i32, i32
  }
  func.func @transform_5(%arg0: i32) -> (i32, i32) {
    %c0_i32 = arith.constant 0 : i32
    %c0_i32_0 = arith.constant 0 : i32
    %c0_i32_1 = arith.constant 0 : i32
    return %c0_i32, %c0_i32_0 : i32, i32
  }
  func.func @transform_6(%arg0: i32) -> (i32, i32) {
    %c0_i32 = arith.constant 0 : i32
    %c0_i32_0 = arith.constant 0 : i32
    %c0_i32_1 = arith.constant 0 : i32
    return %c0_i32, %c0_i32_0 : i32, i32
  }
  func.func @transform_7(%arg0: i32) -> (i32, i32) {
    %c0_i32 = arith.constant 0 : i32
    %c0_i32_0 = arith.constant 0 : i32
    %c0_i32_1 = arith.constant 0 : i32
    return %c0_i32, %c0_i32_0 : i32, i32
  }
  func.func @transform_8(%arg0: i32) -> (i32, i32, i32) {
    %c0_i32 = arith.constant 0 : i32
    %c0_i32_0 = arith.constant 0 : i32
    %c0_i32_1 = arith.constant 0 : i32
    return %arg0, %c0_i32, %c0_i32_0 : i32, i32, i32
  }
}

</mosaic_0001>

<llo_original>
// kernel: dense_module_forward.1
$region0: #{dense_module_forward.1}
  #allocation0 [shape = 'u32[]', space=smem, size = 0x4, offset = 0x4, fixed_abs, tag = 'smem constant byte address 0x4 - core index']
  #allocation1 [shape = 'u32[144,128]{1,0:T(1,128)}', space=vmem, size = 0x12000, scoped, tag = 'internal scratch']
  #allocation2 [shape = 'bf16[432,256]{1,0:T(8,128)(2,1)}', space=vmem, size = 0x36000, scoped, tag = 'scratch operand']
  %s0 = inlined_call_operand.vmem [shape: f32[2,8,256], index: 0, kind: input, shape index: {}]
  %s1 = inlined_call_operand.vmem [shape: f32[544,1], index: 1, kind: input, shape index: {}]
  %s2 = inlined_call_operand.vmem [shape: bf16[32,32], index: 2, kind: input, shape index: {}]
  %s3 = inlined_call_operand.vmem [shape: bf16[8,200], index: 3, kind: input, shape index: {}]
  %s4 = inlined_call_operand.vmem [shape: bf16[8,72], index: 4, kind: input, shape index: {}]
  %s5 = inlined_call_operand.vmem [shape: bf16[32,160], index: 5, kind: input, shape index: {}]
  %s6 = inlined_call_operand.vmem [shape: bf16[8,200], index: 6, kind: input, shape index: {}]
  %s7 = inlined_call_operand.vmem [shape: bf16[8,72], index: 7, kind: input, shape index: {}]
  %s8 = inlined_call_operand.vmem [shape: f32[2,72,256], index: 8, kind: output, shape index: {}]
  %s9 = sld [smem:[#allocation0]]
  $region65: #{dense_module_forward.1} parent=0
    _
  %s11 = ssub.s32 1, %s9
  %s12 = scalar_select 0, %s11, %s9
  loop: start=0, step=1, limit=4
  $region2: #{dense_module_forward.1} parent=0 // loop_pre_header
    _
  $region3: #{dense_module_forward.1} parent=0 // loop_header
    %s14 = sphi 0, %s18
    %p15 = scmp.ge.s32.totalorder %s14, 4
    %s24 = sphi 0, %s26
    %s27 = sphi 0, %s24
    %s28 = sphi 0, %s27
    %s44 = sphi 0, %s28
    %s48 = sphi 0, %s48
    %s50 = sphi 0, %s48
    %s51 = sphi 0, %s50
    %s65 = sphi 0, %s51
    %s69 = sphi 0, %s69
    %s71 = sphi 0, %s69
    %s72 = sphi 0, %s71
    %s86 = sphi 0, %s72
    %s90 = sphi 0, %s90
    %s92 = sphi 0, %s90
    %s93 = sphi 0, %s92
    %s107 = sphi 0, %s93
    %s111 = sphi 0, %s111
    %s113 = sphi 0, %s111
    %s114 = sphi 0, %s113
    %s128 = sphi 0, %s114
    %s132 = sphi 0, %s132
    %s134 = sphi 0, %s132
    %s135 = sphi 0, %s134
    %s149 = sphi 0, %s135
    %s153 = sphi 0, %s153
    %s155 = sphi 0, %s153
    %s156 = sphi 0, %s155
    %s170 = sphi 0, %s156
    %s174 = sphi 0, %s174
    %s176 = sphi 0, %s174
    %s177 = sphi 0, %s176
    %s191 = sphi 0, %s177
    %s197 = sphi 0, %s199
    %s200 = sphi 0, %s197
    %s201 = sphi 0, %s200
    %s217 = sphi 0, %s201
  $region4: #{dense_module_forward.1} parent=0 // loop_header_branch
    %17 = sbr.rel (%p15) target = $region8
  $region5: #{dense_module_forward.1} parent=0 // loop_body
    %s19 = ssub.s32 %s14, 1
    %s20 = ssub.s32 %s14, 2
    %s21 = sadd.s32 %s14, 1
    %s22 = ssub.s32 %s14, %s21
    %p23 = scmp.eq.s32.totalorder %s22, 0
    %s25 = sadd.s32 %s24, 1
    %s26 = scalar_select %p23, %s24, %s25
    %p29 = pneg %p23
    %p30 = scmp.eq.s32.totalorder %s14, 1
    %p31 = por %p29, %p30
    %p32 = scmp.ne.s32.totalorder %s24, %s27
    %p33 = scmp.eq.s32.totalorder %s14, 0
    %p34 = por %p32, %p33
    %p35 = scmp.ne.s32.totalorder %s24, %s27
    %p36 = scmp.eq.s32.totalorder %s19, 1
    %p37 = por %p35, %p36
    %p38 = scmp.ne.s32.totalorder %s27, %s28
    %p39 = scmp.eq.s32.totalorder %s19, 0
    %p40 = por %p38, %p39
    %p41 = scmp.ne.s32.totalorder %s27, %s28
    %p42 = scmp.eq.s32.totalorder %s20, 1
    %p43 = por %p41, %p42
    %p45 = scmp.ne.s32.totalorder %s28, %s44
    %p46 = scmp.eq.s32.totalorder %s20, 0
    %p47 = por %p45, %p46
    %s49 = sadd.s32 %s48, 1
    %p52 = scmp.eq.s32.totalorder %s14, 1
    %p53 = scmp.ne.s32.totalorder %s48, %s50
    %p54 = scmp.eq.s32.totalorder %s14, 0
    %p55 = por %p53, %p54
    %p56 = scmp.ne.s32.totalorder %s48, %s50
    %p57 = scmp.eq.s32.totalorder %s19, 1
    %p58 = por %p56, %p57
    %p59 = scmp.ne.s32.totalorder %s50, %s51
    %p60 = scmp.eq.s32.totalorder %s19, 0
    %p61 = por %p59, %p60
    %p62 = scmp.ne.s32.totalorder %s50, %s51
    %p63 = scmp.eq.s32.totalorder %s20, 1
    %p64 = por %p62, %p63
    %p66 = scmp.ne.s32.totalorder %s51, %s65
    %p67 = scmp.eq.s32.totalorder %s20, 0
    %p68 = por %p66, %p67
    %s70 = sadd.s32 %s69, 1
    %p73 = scmp.eq.s32.totalorder %s14, 1
    %p74 = scmp.ne.s32.totalorder %s69, %s71
    %p75 = scmp.eq.s32.totalorder %s14, 0
    %p76 = por %p74, %p75
    %p77 = scmp.ne.s32.totalorder %s69, %s71
    %p78 = scmp.eq.s32.totalorder %s19, 1
    %p79 = por %p77, %p78
    %p80 = scmp.ne.s32.totalorder %s71, %s72
    %p81 = scmp.eq.s32.totalorder %s19, 0
    %p82 = por %p80, %p81
    %p83 = scmp.ne.s32.totalorder %s71, %s72
    %p84 = scmp.eq.s32.totalorder %s20, 1
    %p85 = por %p83, %p84
    %p87 = scmp.ne.s32.totalorder %s72, %s86
    %p88 = scmp.eq.s32.totalorder %s20, 0
    %p89 = por %p87, %p88
    %s91 = sadd.s32 %s90, 1
    %p94 = scmp.eq.s32.totalorder %s14, 1
    %p95 = scmp.ne.s32.totalorder %s90, %s92
    %p96 = scmp.eq.s32.totalorder %s14, 0
    %p97 = por %p95, %p96
    %p98 = scmp.ne.s32.totalorder %s90, %s92
    %p99 = scmp.eq.s32.totalorder %s19, 1
    %p100 = por %p98, %p99
    %p101 = scmp.ne.s32.totalorder %s92, %s93
    %p102 = scmp.eq.s32.totalorder %s19, 0
    %p103 = por %p101, %p102
    %p104 = scmp.ne.s32.totalorder %s92, %s93
    %p105 = scmp.eq.s32.totalorder %s20, 1
    %p106 = por %p104, %p105
    %p108 = scmp.ne.s32.totalorder %s93, %s107
    %p109 = scmp.eq.s32.totalorder %s20, 0
    %p110 = por %p108, %p109
    %s112 = sadd.s32 %s111, 1
    %p115 = scmp.eq.s32.totalorder %s14, 1
    %p116 = scmp.ne.s32.totalorder %s111, %s113
    %p117 = scmp.eq.s32.totalorder %s14, 0
    %p118 = por %p116, %p117
    %p119 = scmp.ne.s32.totalorder %s111, %s113
    %p120 = scmp.eq.s32.totalorder %s19, 1
    %p121 = por %p119, %p120
    %p122 = scmp.ne.s32.totalorder %s113, %s114
    %p123 = scmp.eq.s32.totalorder %s19, 0
    %p124 = por %p122, %p123
    %p125 = scmp.ne.s32.totalorder %s113, %s114
    %p126 = scmp.eq.s32.totalorder %s20, 1
    %p127 = por %p125, %p126
    %p129 = scmp.ne.s32.totalorder %s114, %s128
    %p130 = scmp.eq.s32.totalorder %s20, 0
    %p131 = por %p129, %p130
    %s133 = sadd.s32 %s132, 1
    %p136 = scmp.eq.s32.totalorder %s14, 1
    %p137 = scmp.ne.s32.totalorder %s132, %s134
    %p138 = scmp.eq.s32.totalorder %s14, 0
    %p139 = por %p137, %p138
    %p140 = scmp.ne.s32.totalorder %s132, %s134
    %p141 = scmp.eq.s32.totalorder %s19, 1
    %p142 = por %p140, %p141
    %p143 = scmp.ne.s32.totalorder %s134, %s135
    %p144 = scmp.eq.s32.totalorder %s19, 0
    %p145 = por %p143, %p144
    %p146 = scmp.ne.s32.totalorder %s134, %s135
    %p147 = scmp.eq.s32.totalorder %s20, 1
    %p148 = por %p146, %p147
    %p150 = scmp.ne.s32.totalorder %s135, %s149
    %p151 = scmp.eq.s32.totalorder %s20, 0
    %p152 = por %p150, %p151
    %s154 = sadd.s32 %s153, 1
    %p157 = scmp.eq.s32.totalorder %s14, 1
    %p158 = scmp.ne.s32.totalorder %s153, %s155
    %p159 = scmp.eq.s32.totalorder %s14, 0
    %p160 = por %p158, %p159
    %p161 = scmp.ne.s32.totalorder %s153, %s155
    %p162 = scmp.eq.s32.totalorder %s19, 1
    %p163 = por %p161, %p162
    %p164 = scmp.ne.s32.totalorder %s155, %s156
    %p165 = scmp.eq.s32.totalorder %s19, 0
    %p166 = por %p164, %p165
    %p167 = scmp.ne.s32.totalorder %s155, %s156
    %p168 = scmp.eq.s32.totalorder %s20, 1
    %p169 = por %p167, %p168
    %p171 = scmp.ne.s32.totalorder %s156, %s170
    %p172 = scmp.eq.s32.totalorder %s20, 0
    %p173 = por %p171, %p172
    %s175 = sadd.s32 %s174, 1
    %p178 = scmp.eq.s32.totalorder %s14, 1
    %p179 = scmp.ne.s32.totalorder %s174, %s176
    %p180 = scmp.eq.s32.totalorder %s14, 0
    %p181 = por %p179, %p180
    %p182 = scmp.ne.s32.totalorder %s174, %s176
    %p183 = scmp.eq.s32.totalorder %s19, 1
    %p184 = por %p182, %p183
    %p185 = scmp.ne.s32.totalorder %s176, %s177
    %p186 = scmp.eq.s32.totalorder %s19, 0
    %p187 = por %p185, %p186
    %p188 = scmp.ne.s32.totalorder %s176, %s177
    %p189 = scmp.eq.s32.totalorder %s20, 1
    %p190 = por %p188, %p189
    %p192 = scmp.ne.s32.totalorder %s177, %s191
    %p193 = scmp.eq.s32.totalorder %s20, 0
    %p194 = por %p192, %p193
    %s195 = ssub.s32 %s14, %s21
    %p196 = scmp.eq.s32.totalorder %s195, 0
    %s198 = sadd.s32 %s197, 1
    %s199 = scalar_select %p196, %s197, %s198
    %p202 = pneg %p196
    %p203 = scmp.eq.s32.totalorder %s14, 1
    %p204 = por %p202, %p203
    %p205 = scmp.ne.s32.totalorder %s197, %s200
    %p206 = scmp.eq.s32.totalorder %s14, 0
    %p207 = por %p205, %p206
    %p208 = scmp.ne.s32.totalorder %s197, %s200
    %p209 = scmp.eq.s32.totalorder %s19, 1
    %p210 = por %p208, %p209
    %p211 = scmp.ne.s32.totalorder %s200, %s201
    %p212 = scmp.eq.s32.totalorder %s19, 0
    %p213 = por %p211, %p212
    %p214 = scmp.ne.s32.totalorder %s200, %s201
    %p215 = scmp.eq.s32.totalorder %s20, 1
    %p216 = por %p214, %p215
    %p218 = scmp.ne.s32.totalorder %s201, %s217
    %p219 = scmp.eq.s32.totalorder %s20, 0
    %p220 = por %p218, %p219
    %p221 = scmp.le.s32.totalorder 1, %s14
    %p222 = scmp.lt.s32.totalorder %s14, 3
    %p223 = pnand %p221, %p222
    %p224 = pneg %p223
    // Predicated region
    $region9: #{dense_module_forward.1} parent=5 // pred_check
      _
    $region10: #{dense_module_forward.1} parent=5 // pred_check_branch
      %226 = sbr.rel (%p223) target = $region12
    $region11: #{dense_module_forward.1} parent=5 // pred_region
      %s227 = ssub.s32 %s14, 1
      // Predicated region
      $region13: #{dense_module_forward.1} parent=11 // pred_check
        %p228 = pneg %p61
      $region14: #{dense_module_forward.1} parent=11 // pred_check_branch
        %230 = sbr.rel (%p228) target = $region16
      $region15: #{dense_module_forward.1} parent=11 // pred_region
        _
      $region16: #{dense_module_forward.1} parent=11 // pred_fallthru
        _
      // Predicated region
      $region17: #{dense_module_forward.1} parent=11 // pred_check
        %p231 = pneg %p82
      $region18: #{dense_module_forward.1} parent=11 // pred_check_branch
        %233 = sbr.rel (%p231) target = $region20
      $region19: #{dense_module_forward.1} parent=11 // pred_region
        _
      $region20: #{dense_module_forward.1} parent=11 // pred_fallthru
        _
      // Predicated region
      $region21: #{dense_module_forward.1} parent=11 // pred_check
        %p234 = pneg %p103
      $region22: #{dense_module_forward.1} parent=11 // pred_check_branch
        %236 = sbr.rel (%p234) target = $region24
      $region23: #{dense_module_forward.1} parent=11 // pred_region
        _
      $region24: #{dense_module_forward.1} parent=11 // pred_fallthru
        _
      // Predicated region
      $region25: #{dense_module_forward.1} parent=11 // pred_check
        %p237 = pneg %p124
      $region26: #{dense_module_forward.1} parent=11 // pred_check_branch
        %239 = sbr.rel (%p237) target = $region28
      $region27: #{dense_module_forward.1} parent=11 // pred_region
        _
      $region28: #{dense_module_forward.1} parent=11 // pred_fallthru
        _
      // Predicated region
      $region29: #{dense_module_forward.1} parent=11 // pred_check
        %p240 = pneg %p145
      $region30: #{dense_module_forward.1} parent=11 // pred_check_branch
        %242 = sbr.rel (%p240) target = $region32
      $region31: #{dense_module_forward.1} parent=11 // pred_region
        _
      $region32: #{dense_module_forward.1} parent=11 // pred_fallthru
        _
      // Predicated region
      $region33: #{dense_module_forward.1} parent=11 // pred_check
        %p243 = pneg %p166
      $region34: #{dense_module_forward.1} parent=11 // pred_check_branch
        %245 = sbr.rel (%p243) target = $region36
      $region35: #{dense_module_forward.1} parent=11 // pred_region
        _
      $region36: #{dense_module_forward.1} parent=11 // pred_fallthru
        _
      // Predicated region
      $region37: #{dense_module_forward.1} parent=11 // pred_check
        %p246 = pneg %p187
      $region38: #{dense_module_forward.1} parent=11 // pred_check_branch
        %248 = sbr.rel (%p246) target = $region40
      $region39: #{dense_module_forward.1} parent=11 // pred_region
        _
      $region40: #{dense_module_forward.1} parent=11 // pred_fallthru
        _
    $region12: #{dense_module_forward.1} parent=5 // pred_fallthru
      _
    %p249 = scmp.lt.s32.totalorder %s14, 2
    // Predicated region
    $region41: #{dense_module_forward.1} parent=5 // pred_check
      %p250 = pneg %p249
    $region42: #{dense_module_forward.1} parent=5 // pred_check_branch
      %252 = sbr.rel (%p250) target = $region44
    $region43: #{dense_module_forward.1} parent=5 // pred_region
      // Predicated region
      $region45: #{dense_module_forward.1} parent=43 // pred_check
        %p253 = pneg %p34
      $region46: #{dense_module_forward.1} parent=43 // pred_check_branch
        %255 = sbr.rel (%p253) target = $region48
      $region47: #{dense_module_forward.1} parent=43 // pred_region
        %p256 = scmp.lt.s32.totalorder %s14, 1
        %s257 = scalar_select %p256, %s14, 1
        %s258 = smul.addr %s257, 2
        %s259 = smul.addr %s258, 8
        %s260 = scalar_lea.vmem %s0, %s259
      $region48: #{dense_module_forward.1} parent=43 // pred_fallthru
        _
    $region44: #{dense_module_forward.1} parent=5 // pred_fallthru
      _
    %p261 = scmp.le.s32.totalorder 1, %s14
    %p262 = scmp.lt.s32.totalorder %s14, 3
    %p263 = pnand %p261, %p262
    %p264 = pneg %p263
    // Predicated region
    $region49: #{dense_module_forward.1} parent=5 // pred_check
      _
    $region50: #{dense_module_forward.1} parent=5 // pred_check_branch
      %266 = sbr.rel (%p263) target = $region52
    $region51: #{dense_module_forward.1} parent=5 // pred_region
      %s267 = ssub.s32 %s14, 1
      %p268 = scmp.lt.s32.totalorder %s19, 1
      %s269 = scalar_select %p268, %s19, 1
      %s270 = smul.addr %s269, 2
      %s271 = smul.addr %s270, 8
      %s272 = scalar_lea.vmem %s0, %s271
      %p273 = pneg %p40
      %p274 = pneg %p37
      %p275 = pneg %p61
      %p276 = pneg %p58
      %p277 = pneg %p82
      %p278 = pneg %p79
      %p279 = pneg %p103
      %p280 = pneg %p100
      %p281 = pneg %p124
      %p282 = pneg %p121
      %p283 = pneg %p145
      %p284 = pneg %p142
      %p285 = pneg %p166
      %p286 = pneg %p163
      %p287 = pneg %p187
      %p288 = pneg %p184
      %p289 = pneg %p213
      %p290 = pneg %p210
      %p291 = scmp.lt.s32.totalorder %s19, 1
      %s292 = scalar_select %p291, %s19, 1
      %s293 = smul.addr %s292, 18
      %s294 = smul.addr %s293, 8
      %s295 = scalar_lea.vmem %s8, %s294
      %p296 = scmp.lt.s32.totalorder %s19, 1
      %s297 = scalar_select %p296, %s19, 1
      %s298 = smul.addr %s297, 2
      %s299 = smul.addr %s298, 8
      %s300 = scalar_lea.vmem %s0, %s299
      %p301 = scmp.lt.s32.totalorder %s19, 1
      %s302 = scalar_select %p301, %s19, 1
      %s303 = smul.addr %s302, 18
      %s304 = smul.addr %s303, 8
      %s305 = scalar_lea.vmem %s8, %s304
      %v307 = vlaneseq
      %v308 = vand.u32 %v307, 127
      %v309 = vadd.s32 %v308, 128
      %vm310 = vcmp.lt.s32.totalorder %v308, 0
      %v311 = vsub.s32 0, %v308
      %v312 = vsel %vm310, %v311, %v308
      %v313 = vshrl.u32 %v312, 4
      %v314 = vand.u32 %v312, 15
      %v315 = vsub.s32 0, %v314
      %v316 = vsel %vm310, %v315, %v314
      %vm317 = vcmp.lt.s32.totalorder %v309, 0
      %v318 = vsub.s32 0, %v309
      %v319 = vsel %vm317, %v318, %v309
      %v320 = vshrl.u32 %v319, 4
      %v321 = vand.u32 %v319, 15
      %v322 = vsub.s32 0, %v321
      %v323 = vsel %vm317, %v322, %v321
      %vm324 = vcmp.ne.s32.totalorder %v316, 0
      %vm325 = vcmp.ne.s32.totalorder %v323, 0
      %vm326 = vcmp.lt.s32.totalorder %v316, 0
      %vm327 = vcmp.lt.s32.totalorder %v323, 0
      %vm328 = vmand %vm326, %vm324
      %vm329 = vmand %vm327, %vm325
      %v330 = vadd.s32 %v316, 16
      %v331 = vadd.s32 %v323, 16
      %v332 = vsel %vm328, %v330, %v316
      %v333 = vsel %vm329, %v331, %v323
      %vm334 = vcmp.ge.s32.totalorder %v308, 32
      %vm335 = vcmp.ge.s32.totalorder %v309, 32
      %vm336 = vcmp.ge.s32.totalorder %v332, 2
      %vm337 = vcmp.ge.s32.totalorder %v333, 2
      %vm338 = vmand %vm334, %vm336
      %vm339 = vmand %vm335, %vm337
      %vm340 = vcmp.ge.s32.totalorder %v332, 1
      %vm341 = vcmp.ge.s32.totalorder %v333, 1
      %vm342 = vmand %vm334, %vm340
      %vm343 = vmand %vm335, %vm341
      %vm344 = vcmp.lt.s32.totalorder %v332, 15
      %vm345 = vcmp.lt.s32.totalorder %v333, 15
      %vm346 = vmand %vm334, %vm344
      %vm347 = vmand %vm335, %vm345
      %vm348 = vcmp.lt.s32.totalorder %v332, 14
      %vm349 = vcmp.lt.s32.totalorder %v333, 14
      %vm350 = vmand %vm334, %vm348
      %vm351 = vmand %vm335, %vm349
      %vm352 = vcmp.ge.s32.totalorder %v308, 16
      %vm353 = vcmp.ge.s32.totalorder %v309, 16
      %vm354 = vmand %vm352, %vm336
      %vm355 = vmand %vm353, %vm337
      %vm356 = vmand %vm352, %vm340
      %vm357 = vmand %vm353, %vm341
      %vm358 = vmand %vm352, %vm344
      %vm359 = vmand %vm353, %vm345
      %vm360 = vmand %vm352, %vm348
      %vm361 = vmand %vm353, %vm349
      %vm362 = vcmp.lt.s32.totalorder %v308, 240
      %vm363 = vcmp.lt.s32.totalorder %v309, 240
      %vm364 = vmand %vm362, %vm336
      %vm365 = vmand %vm363, %vm337
      %vm366 = vmand %vm362, %vm340
      %vm367 = vmand %vm363, %vm341
      %vm368 = vmand %vm362, %vm344
      %vm369 = vmand %vm363, %vm345
      %vm370 = vmand %vm362, %vm348
      %vm371 = vmand %vm363, %vm349
      %vm372 = vcmp.lt.s32.totalorder %v308, 224
      %vm373 = vcmp.lt.s32.totalorder %v309, 224
      %vm374 = vmand %vm372, %vm336
      %vm375 = vmand %vm373, %vm337
      %vm376 = vmand %vm372, %vm340
      %vm377 = vmand %vm373, %vm341
      %vm378 = vmand %vm372, %vm344
      %vm379 = vmand %vm373, %vm345
      %vm380 = vmand %vm372, %vm348
      %vm381 = vmand %vm373, %vm349
      %v382 = vld [vmem:[%s300] sm:$0xff]
      %v383 = vld [vmem:[%s300 + $0x8] sm:$0xff]
      %384 = vst [vmem:[%s305] sm:$0xff] %v382
      %385 = vst [vmem:[%s305 + $0x8] sm:$0xff] %v383
      %v386 = vld [vmem:[%s305] sm:$0xff]
      %v387 = vld [vmem:[%s305 + $0x8] sm:$0xff]
      %388 = vrot.lane.b32.xlu0 %v386, 17
      %v389 = vpop.permute.xlu0 %388
      %390 = vrot.lane.b32.xlu0 %v387, 17
      %v391 = vpop.permute.xlu0 %390
      %vm392 = vcmp.lt.s32.totalorder %v308, 17
      %v393 = vsel %vm392, %v389, %v391
      %v394 = vsel %vm392, %v391, %v389
      %v395 = vsel %vm356, 1, 0
      %v396 = vsel %vm357, 1, 0
      %vm397 = vcmp.eq.s32.totalorder %v395, 1
      %vm398 = vcmp.eq.s32.totalorder %v396, 1
      %v399 = vsel %vm397, %v394, -inf
      %v400 = vsel %vm398, %v393, -inf
      %v401 = vmax.f32 %v386, %v399
      %v402 = vmax.f32 %v387, %v400
      %403 = vrot.lane.b32.xlu0 %v386, 16
      %v404 = vpop.permute.xlu0 %403
      %405 = vrot.lane.b32.xlu0 %v387, 16
      %v406 = vpop.permute.xlu0 %405
      %vm407 = vcmp.lt.s32.totalorder %v308, 16
      %v408 = vsel %vm407, %v404, %v406
      %v409 = vsel %vm407, %v406, %v404
      %v410 = vsel %vm352, 1, 0
      %v411 = vsel %vm353, 1, 0
      %vm412 = vcmp.eq.s32.totalorder %v410, 1
      %vm413 = vcmp.eq.s32.totalorder %v411, 1
      %v414 = vsel %vm412, %v409, -inf
      %v415 = vsel %vm413, %v408, -inf
      %v416 = vmax.f32 %v401, %v414
      %v417 = vmax.f32 %v402, %v415
      %418 = vrot.lane.b32.xlu0 %v386, 15
      %v419 = vpop.permute.xlu0 %418
      %420 = vrot.lane.b32.xlu0 %v387, 15
      %v421 = vpop.permute.xlu0 %420
      %vm422 = vcmp.lt.s32.totalorder %v308, 15
      %v423 = vsel %vm422, %v419, %v421
      %v424 = vsel %vm422, %v421, %v419
      %v425 = vsel %vm358, 1, 0
      %v426 = vsel %vm359, 1, 0
      %vm427 = vcmp.eq.s32.totalorder %v425, 1
      %vm428 = vcmp.eq.s32.totalorder %v426, 1
      %v429 = vsel %vm427, %v424, -inf
      %v430 = vsel %vm428, %v423, -inf
      %v431 = vmax.f32 %v416, %v429
      %v432 = vmax.f32 %v417, %v430
      %433 = vrot.lane.b32.xlu0 %v386, 1
      %v434 = vpop.permute.xlu0 %433
      %435 = vrot.lane.b32.xlu0 %v387, 1
      %v436 = vpop.permute.xlu0 %435
      %vm437 = vcmp.lt.s32.totalorder %v308, 1
      %v438 = vsel %vm437, %v434, %v436
      %v439 = vsel %vm437, %v436, %v434
      %v440 = vsel %vm340, 1, 0
      %v441 = vsel %vm341, 1, 0
      %vm442 = vcmp.eq.s32.totalorder %v440, 1
      %vm443 = vcmp.eq.s32.totalorder %v441, 1
      %v444 = vsel %vm442, %v439, -inf
      %v445 = vsel %vm443, %v438, -inf
      %v446 = vmax.f32 %v431, %v444
      %v447 = vmax.f32 %v432, %v445
      %448 = vrot.lane.b32.xlu0 %v386, 127
      %v449 = vpop.permute.xlu0 %448
      %450 = vrot.lane.b32.xlu0 %v387, 127
      %v451 = vpop.permute.xlu0 %450
      %vm452 = vcmp.lt.s32.totalorder %v308, 127
      %v453 = vsel %vm452, %v449, %v451
      %v454 = vsel %vm452, %v451, %v449
      %v455 = vsel %vm344, 1, 0
      %v456 = vsel %vm345, 1, 0
      %vm457 = vcmp.eq.s32.totalorder %v455, 1
      %vm458 = vcmp.eq.s32.totalorder %v456, 1
      %v459 = vsel %vm457, %v453, -inf
      %v460 = vsel %vm458, %v454, -inf
      %v461 = vmax.f32 %v446, %v459
      %v462 = vmax.f32 %v447, %v460
      %463 = vrot.lane.b32.xlu0 %v386, 113
      %v464 = vpop.permute.xlu0 %463
      %465 = vrot.lane.b32.xlu0 %v387, 113
      %v466 = vpop.permute.xlu0 %465
      %vm467 = vcmp.lt.s32.totalorder %v308, 113
      %v468 = vsel %vm467, %v464, %v466
      %v469 = vsel %vm467, %v466, %v464
      %v470 = vsel %vm366, 1, 0
      %v471 = vsel %vm367, 1, 0
      %vm472 = vcmp.eq.s32.totalorder %v470, 1
      %vm473 = vcmp.eq.s32.totalorder %v471, 1
      %v474 = vsel %vm472, %v468, -inf
      %v475 = vsel %vm473, %v469, -inf
      %v476 = vmax.f32 %v461, %v474
      %v477 = vmax.f32 %v462, %v475
      %478 = vrot.lane.b32.xlu0 %v386, 112
      %v479 = vpop.permute.xlu0 %478
      %480 = vrot.lane.b32.xlu0 %v387, 112
      %v481 = vpop.permute.xlu0 %480
      %vm482 = vcmp.lt.s32.totalorder %v308, 112
      %v483 = vsel %vm482, %v479, %v481
      %v484 = vsel %vm482, %v481, %v479
      %v485 = vsel %vm362, 1, 0
      %v486 = vsel %vm363, 1, 0
      %vm487 = vcmp.eq.s32.totalorder %v485, 1
      %vm488 = vcmp.eq.s32.totalorder %v486, 1
      %v489 = vsel %vm487, %v483, -inf
      %v490 = vsel %vm488, %v484, -inf
      %v491 = vmax.f32 %v476, %v489
      %v492 = vmax.f32 %v477, %v490
      %493 = vrot.lane.b32.xlu0 %v386, 111
      %v494 = vpop.permute.xlu0 %493
      %495 = vrot.lane.b32.xlu0 %v387, 111
      %v496 = vpop.permute.xlu0 %495
      %vm497 = vcmp.lt.s32.totalorder %v308, 111
      %v498 = vsel %vm497, %v494, %v496
      %v499 = vsel %vm497, %v496, %v494
      %v500 = vsel %vm368, 1, 0
      %v501 = vsel %vm369, 1, 0
      %vm502 = vcmp.eq.s32.totalorder %v500, 1
      %vm503 = vcmp.eq.s32.totalorder %v501, 1
      %v504 = vsel %vm502, %v498, -inf
      %v505 = vsel %vm503, %v499, -inf
      %v506 = vmax.f32 %v491, %v504
      %v507 = vmax.f32 %v492, %v505
      %v508 = vld [vmem:[%s1] sm:$0xff]
      %v509 = vld [vmem:[%s1 + $0x8] sm:$0xff]
      %511 = vset.pattern.permute.xlu0 0
      %512 = vperm.xlu0 %511, %v508
      %v513 = vpop.permute.xlu0 %512
      %v515 = vmul.f32 %v386, %v513
      %v516 = vmul.f32 %v387, %v513
      %518 = vset.pattern.permute.xlu0 0
      %519 = vperm.xlu0 %518, %v509
      %v520 = vpop.permute.xlu0 %519
      %v522 = vadd.f32 %v515, %v520
      %v523 = vadd.f32 %v516, %v520
      %v524 = vmax.f32 %v522, 0.0
      %v525 = vmax.f32 %v523, 0.0
      %v526 = vpack.c.bf16 %v524, %v524
      %v527 = vpack.c.bf16 %v525, %v525
      %v530 = vunpack.c.l.b16 %v526
      %v531 = vunpack.c.l.b16 %v527
      %v532 = vpack.c.b16 %v531, %v530
      %534 = vst [vmem:[#allocation2] sm:$0xff] %v532
      %v535 = vld [vmem:[%s1 + $0x10] sm:$0xff]
      %v536 = vld [vmem:[%s1 + $0x18] sm:$0xff]
      %538 = vset.pattern.permute.xlu0 0
      %539 = vperm.xlu0 %538, %v535
      %v540 = vpop.permute.xlu0 %539
      %v542 = vmul.f32 %v386, %v540
      %v543 = vmul.f32 %v387, %v540
      %545 = vset.pattern.permute.xlu0 0
      %546 = vperm.xlu0 %545, %v536
      %v547 = vpop.permute.xlu0 %546
      %v549 = vadd.f32 %v542, %v547
      %v550 = vadd.f32 %v543, %v547
      %v551 = vmax.f32 %v549, 0.0
      %v552 = vmax.f32 %v550, 0.0
      %v553 = vpack.c.bf16 %v551, %v551
      %v554 = vpack.c.bf16 %v552, %v552
      %v557 = vunpack.c.l.b16 %v553
      %v558 = vunpack.c.l.b16 %v554
      %v559 = vpack.c.b16 %v558, %v557
      %561 = vst [vmem:[#allocation2 + $0x8] sm:$0xff] %v559
      %v562 = vld [vmem:[%s1 + $0x20] sm:$0xff]
      %v563 = vld [vmem:[%s1 + $0x28] sm:$0xff]
      %565 = vset.pattern.permute.xlu0 0
      %566 = vperm.xlu0 %565, %v562
      %v567 = vpop.permute.xlu0 %566
      %v569 = vmul.f32 %v386, %v567
      %v570 = vmul.f32 %v387, %v567
      %572 = vset.pattern.permute.xlu0 0
      %573 = vperm.xlu0 %572, %v563
      %v574 = vpop.permute.xlu0 %573
      %v576 = vadd.f32 %v569, %v574
      %v577 = vadd.f32 %v570, %v574
      %v578 = vmax.f32 %v576, 0.0
      %v579 = vmax.f32 %v577, 0.0
      %v580 = vpack.c.bf16 %v578, %v578
      %v581 = vpack.c.bf16 %v579, %v579
      %v584 = vunpack.c.l.b16 %v580
      %v585 = vunpack.c.l.b16 %v581
      %v586 = vpack.c.b16 %v585, %v584
      %588 = vst [vmem:[#allocation2 + $0x10] sm:$0xff] %v586
      %v589 = vld [vmem:[%s1 + $0x30] sm:$0xff]
      %v590 = vld [vmem:[%s1 + $0x38] sm:$0xff]
      %592 = vset.pattern.permute.xlu0 0
      %593 = vperm.xlu0 %592, %v589
      %v594 = vpop.permute.xlu0 %593
      %v596 = vmul.f32 %v506, %v594
      %v597 = vmul.f32 %v507, %v594
      %599 = vset.pattern.permute.xlu0 0
      %600 = vperm.xlu0 %599, %v590
      %v601 = vpop.permute.xlu0 %600
      %v603 = vadd.f32 %v596, %v601
      %v604 = vadd.f32 %v597, %v601
      %v605 = vmax.f32 %v603, 0.0
      %v606 = vmax.f32 %v604, 0.0
      %v607 = vpack.c.bf16 %v605, %v605
      %v608 = vpack.c.bf16 %v606, %v606
      %v611 = vunpack.c.l.b16 %v607
      %v612 = vunpack.c.l.b16 %v608
      %v613 = vpack.c.b16 %v612, %v611
      %615 = vst [vmem:[#allocation2 + $0x18] sm:$0xff] %v613
      %v616 = vld [vmem:[%s2] sm:$0xf]
      %v617 = vld [vmem:[%s2 + $0x4] sm:$0xf]
      %v618 = vld [vmem:[%s2 + $0x8] sm:$0xf]
      %v619 = vld [vmem:[%s2 + $0xc] sm:$0xf]
      %v620 = vld [vmem:[#allocation2] sm:$0xff]
      %v621 = vld [vmem:[#allocation2 + $0x8] sm:$0xff]
      %v622 = vld [vmem:[#allocation2 + $0x10] sm:$0xff]
      %v623 = vld [vmem:[#allocation2 + $0x18] sm:$0xff]
      %v624 = vld [vmem:[%s1 + $0x40] sm:$0xff]
      %v625 = vld [vmem:[%s1 + $0x48] sm:$0xff]
      %v626 = vld [vmem:[%s1 + $0x50] sm:$0xff]
      %v627 = vld [vmem:[%s1 + $0x58] sm:$0xff]
      %629 = vset.pattern.permute.xlu0 0
      %630 = vperm.xlu0 %629, %v624
      %v631 = vpop.permute.xlu0 %630
      %634 = vset.pattern.permute.xlu0 0
      %635 = vperm.xlu0 %634, %v625
      %v636 = vpop.permute.xlu0 %635
      %639 = vset.pattern.permute.xlu0 0
      %640 = vperm.xlu0 %639, %v626
      %v641 = vpop.permute.xlu0 %640
      %644 = vset.pattern.permute.xlu0 0
      %645 = vperm.xlu0 %644, %v627
      %v646 = vpop.permute.xlu0 %645
      %v652 = vunpack.c.l.b16 %v616
      %v653 = vunpack.c.l.b16 %v617
      %v654 = vunpack.c.l.b16 %v618
      %v655 = vunpack.c.l.b16 %v619
      %v656 = vpack.c.b16 %v653, %v652
      %v657 = vpack.c.b16 %v655, %v654
      %v662 = vunpack.c.l.b16 %v620
      %v663 = vunpack.c.h.b16 %v620
      %v664 = vunpack.c.l.b16 %v621
      %v665 = vunpack.c.h.b16 %v621
      %v666 = vunpack.c.l.b16 %v622
      %v667 = vunpack.c.h.b16 %v622
      %v668 = vunpack.c.l.b16 %v623
      %v669 = vunpack.c.h.b16 %v623
      %v670 = vpack.c.b16 %v664, %v662
      %v671 = vpack.c.b16 %v665, %v663
      %v672 = vpack.c.b16 %v668, %v666
      %v673 = vpack.c.b16 %v669, %v667
      %vm678 = vcmask 261120
      %v680 = vsel %vm678, %v656, 0
      %v683 = vsel %vm678, %v657, 0
      %685 = vmatprep.subr.bf16.mxu0 0
      %686 = vmatpush1.bf16.msra.mxu0 0
      %687 = vmatprep.subr.bf16.mxu0 0
      %688 = vmatpush1.bf16.msra.mxu0 0
      %689 = vmatprep.subr.bf16.mxu0 0
      %690 = vmatpush1.bf16.msra.mxu0 0
      %691 = vmatprep.subr.bf16.mxu0 0
      %692 = vmatpush1.bf16.msra.mxu0 0
      %693 = vmatprep.subr.bf16.mxu0 0
      %694 = vmatpush1.bf16.msra.mxu0 0
      %695 = vmatprep.subr.bf16.mxu0 0
      %696 = vmatpush1.bf16.msra.mxu0 0
      %697 = vmatprep.subr.bf16.mxu0 %v673
      %698 = vmatpush1.bf16.msra.mxu0 %v672
      %699 = vmatprep.subr.bf16.mxu0 %v671
      %700 = vmatpush1.bf16.msra.mxu0 %v670
      %701 = vmatprep.subr.bf16.mxu0 0
      %702 = vmatpush2.bf16.msra.mxu0 0
      %703 = vmatprep.subr.bf16.mxu0 0
      %704 = vmatpush2.bf16.msra.mxu0 0
      %705 = vmatprep.subr.bf16.mxu0 0
      %706 = vmatpush2.bf16.msra.mxu0 0
      %707 = vmatprep.subr.bf16.mxu0 0
      %708 = vmatpush2.bf16.msra.mxu0 0
      %709 = vmatprep.subr.bf16.mxu0 0
      %710 = vmatpush2.bf16.msra.mxu0 0
      %711 = vmatprep.subr.bf16.mxu0 0
      %712 = vmatpush2.bf16.msra.mxu0 0
      %713 = vmatprep.subr.bf16.mxu0 0
      %714 = vmatpush2.bf16.msra.mxu0 0
      %715 = vmatprep.subr.bf16.mxu0 0
      %716 = vmatpush2.bf16.msra.mxu0 0
      %717 = vmatprep.mubr.bf16.mxu0 0
      %718 = vmatmul.mubr.bf16.gmra.mxu0 %v680
      %v719 = vpop.f32.mrf.mxu0
      %v720 = vadd.f32 %v631, %v719
      %v721 = vpop.f32.mrf.mxu0
      %v722 = vadd.f32 %v631, %v721
      %v723 = vpop.f32.mrf.mxu0
      %v724 = vadd.f32 %v636, %v723
      %v725 = vpop.f32.mrf.mxu0
      %v726 = vadd.f32 %v636, %v725
      %727 = vmatprep.mubr.bf16.mxu0 0
      %728 = vmatmul.mubr.bf16.gmra.mxu0 %v683
      %v729 = vpop.f32.mrf.mxu0
      %v730 = vadd.f32 %v641, %v729
      %v731 = vpop.f32.mrf.mxu0
      %v732 = vadd.f32 %v641, %v731
      %v733 = vpop.f32.mrf.mxu0
      %v734 = vadd.f32 %v646, %v733
      %v735 = vpop.f32.mrf.mxu0
      %v736 = vadd.f32 %v646, %v735
      %737 = vdwg.mxu0
      %v738 = vld [vmem:[%s1 + $0x60] sm:$0xff]
      %740 = vset.pattern.permute.xlu0 0
      %741 = vperm.xlu0 %740, %v738
      %v742 = vpop.permute.xlu0 %741
      %v744 = vmul.f32 %v724, %v742
      %v745 = vmul.f32 %v726, %v742
      %v746 = vld [vmem:[%s1 + $0x68] sm:$0xff]
      %748 = vset.pattern.permute.xlu0 0
      %749 = vperm.xlu0 %748, %v746
      %v750 = vpop.permute.xlu0 %749
      %v752 = vadd.f32 %v744, %v750
      %v753 = vadd.f32 %v745, %v750
      %v754 = vmax.f32 %v752, 0.0
      %v755 = vmax.f32 %v753, 0.0
      %756 = vrot.lane.b32.xlu0 %v754, 34
      %v757 = vpop.permute.xlu0 %756
      %758 = vrot.lane.b32.xlu0 %v755, 34
      %v759 = vpop.permute.xlu0 %758
      %vm760 = vcmp.lt.s32.totalorder %v308, 34
      %v761 = vsel %vm760, %v757, %v759
      %v762 = vsel %vm760, %v759, %v757
      %v763 = vsel %vm338, 1, 0
      %v764 = vsel %vm339, 1, 0
      %vm765 = vcmp.eq.s32.totalorder %v763, 1
      %vm766 = vcmp.eq.s32.totalorder %v764, 1
      %v767 = vsel %vm765, %v762, 0.0
      %v768 = vsel %vm766, %v761, 0.0
      %v769 = vpack.c.bf16 %v767, %v767
      %v770 = vpack.c.bf16 %v768, %v768
      %v773 = vunpack.c.l.b16 %v769
      %v774 = vunpack.c.l.b16 %v770
      %v775 = vpack.c.b16 %v774, %v773
      %777 = vst [vmem:[#allocation2 + $0xa0] sm:$0xff] %v775
      %778 = vrot.lane.b32.xlu0 %v754, 33
      %v779 = vpop.permute.xlu0 %778
      %780 = vrot.lane.b32.xlu0 %v755, 33
      %v781 = vpop.permute.xlu0 %780
      %vm782 = vcmp.lt.s32.totalorder %v308, 33
      %v783 = vsel %vm782, %v779, %v781
      %v784 = vsel %vm782, %v781, %v779
      %v785 = vsel %vm342, 1, 0
      %v786 = vsel %vm343, 1, 0
      %vm787 = vcmp.eq.s32.totalorder %v785, 1
      %vm788 = vcmp.eq.s32.totalorder %v786, 1
      %v789 = vsel %vm787, %v784, 0.0
      %v790 = vsel %vm788, %v783, 0.0
      %v791 = vpack.c.bf16 %v789, %v789
      %v792 = vpack.c.bf16 %v790, %v790
      %v795 = vunpack.c.l.b16 %v791
      %v796 = vunpack.c.l.b16 %v792
      %v797 = vpack.c.b16 %v796, %v795
      %799 = vst [vmem:[#allocation2 + $0xa8] sm:$0xff] %v797
      %800 = vrot.lane.b32.xlu0 %v754, 32
      %v801 = vpop.permute.xlu0 %800
      %802 = vrot.lane.b32.xlu0 %v755, 32
      %v803 = vpop.permute.xlu0 %802
      %vm804 = vcmp.lt.s32.totalorder %v308, 32
      %v805 = vsel %vm804, %v801, %v803
      %v806 = vsel %vm804, %v803, %v801
      %v807 = vsel %vm334, 1, 0
      %v808 = vsel %vm335, 1, 0
      %vm809 = vcmp.eq.s32.totalorder %v807, 1
      %vm810 = vcmp.eq.s32.totalorder %v808, 1
      %v811 = vsel %vm809, %v806, 0.0
      %v812 = vsel %vm810, %v805, 0.0
      %v813 = vpack.c.bf16 %v811, %v811
      %v814 = vpack.c.bf16 %v812, %v812
      %v817 = vunpack.c.l.b16 %v813
      %v818 = vunpack.c.l.b16 %v814
      %v819 = vpack.c.b16 %v818, %v817
      %821 = vst [vmem:[#allocation2 + $0xb0] sm:$0xff] %v819
      %822 = vrot.lane.b32.xlu0 %v754, 31
      %v823 = vpop.permute.xlu0 %822
      %824 = vrot.lane.b32.xlu0 %v755, 31
      %v825 = vpop.permute.xlu0 %824
      %vm826 = vcmp.lt.s32.totalorder %v308, 31
      %v827 = vsel %vm826, %v823, %v825
      %v828 = vsel %vm826, %v825, %v823
      %v829 = vsel %vm346, 1, 0
      %v830 = vsel %vm347, 1, 0
      %vm831 = vcmp.eq.s32.totalorder %v829, 1
      %vm832 = vcmp.eq.s32.totalorder %v830, 1
      %v833 = vsel %vm831, %v828, 0.0
      %v834 = vsel %vm832, %v827, 0.0
      %v835 = vpack.c.bf16 %v833, %v833
      %v836 = vpack.c.bf16 %v834, %v834
      %v839 = vunpack.c.l.b16 %v835
      %v840 = vunpack.c.l.b16 %v836
      %v841 = vpack.c.b16 %v840, %v839
      %843 = vst [vmem:[#allocation2 + $0xb8] sm:$0xff] %v841
      %844 = vrot.lane.b32.xlu0 %v754, 30
      %v845 = vpop.permute.xlu0 %844
      %846 = vrot.lane.b32.xlu0 %v755, 30
      %v847 = vpop.permute.xlu0 %846
      %vm848 = vcmp.lt.s32.totalorder %v308, 30
      %v849 = vsel %vm848, %v845, %v847
      %v850 = vsel %vm848, %v847, %v845
      %v851 = vsel %vm350, 1, 0
      %v852 = vsel %vm351, 1, 0
      %vm853 = vcmp.eq.s32.totalorder %v851, 1
      %vm854 = vcmp.eq.s32.totalorder %v852, 1
      %v855 = vsel %vm853, %v850, 0.0
      %v856 = vsel %vm854, %v849, 0.0
      %v857 = vpack.c.bf16 %v855, %v855
      %v858 = vpack.c.bf16 %v856, %v856
      %v861 = vunpack.c.l.b16 %v857
      %v862 = vunpack.c.l.b16 %v858
      %v863 = vpack.c.b16 %v862, %v861
      %865 = vst [vmem:[#allocation2 + $0xc0] sm:$0xff] %v863
      %866 = vrot.lane.b32.xlu0 %v754, 18
      %v867 = vpop.permute.xlu0 %866
      %868 = vrot.lane.b32.xlu0 %v755, 18
      %v869 = vpop.permute.xlu0 %868
      %vm870 = vcmp.lt.s32.totalorder %v308, 18
      %v871 = vsel %vm870, %v867, %v869
      %v872 = vsel %vm870, %v869, %v867
      %v873 = vsel %vm354, 1, 0
      %v874 = vsel %vm355, 1, 0
      %vm875 = vcmp.eq.s32.totalorder %v873, 1
      %vm876 = vcmp.eq.s32.totalorder %v874, 1
      %v877 = vsel %vm875, %v872, 0.0
      %v878 = vsel %vm876, %v871, 0.0
      %v879 = vpack.c.bf16 %v877, %v877
      %v880 = vpack.c.bf16 %v878, %v878
      %v883 = vunpack.c.l.b16 %v879
      %v884 = vunpack.c.l.b16 %v880
      %v885 = vpack.c.b16 %v884, %v883
      %887 = vst [vmem:[#allocation2 + $0xc8] sm:$0xff] %v885
      %888 = vrot.lane.b32.xlu0 %v754, 17
      %v889 = vpop.permute.xlu0 %888
      %890 = vrot.lane.b32.xlu0 %v755, 17
      %v891 = vpop.permute.xlu0 %890
      %v892 = vsel %vm392, %v889, %v891
      %v893 = vsel %vm392, %v891, %v889
      %v894 = vsel %vm397, %v893, 0.0
      %v895 = vsel %vm398, %v892, 0.0
      %v896 = vpack.c.bf16 %v894, %v894
      %v897 = vpack.c.bf16 %v895, %v895
      %v900 = vunpack.c.l.b16 %v896
      %v901 = vunpack.c.l.b16 %v897
      %v902 = vpack.c.b16 %v901, %v900
      %904 = vst [vmem:[#allocation2 + $0xd0] sm:$0xff] %v902
      %905 = vrot.lane.b32.xlu0 %v754, 16
      %v906 = vpop.permute.xlu0 %905
      %907 = vrot.lane.b32.xlu0 %v755, 16
      %v908 = vpop.permute.xlu0 %907
      %v909 = vsel %vm407, %v906, %v908
      %v910 = vsel %vm407, %v908, %v906
      %v911 = vsel %vm412, %v910, 0.0
      %v912 = vsel %vm413, %v909, 0.0
      %v913 = vpack.c.bf16 %v911, %v911
      %v914 = vpack.c.bf16 %v912, %v912
      %v917 = vunpack.c.l.b16 %v913
      %v918 = vunpack.c.l.b16 %v914
      %v919 = vpack.c.b16 %v918, %v917
      %921 = vst [vmem:[#allocation2 + $0xd8] sm:$0xff] %v919
      %922 = vrot.lane.b32.xlu0 %v754, 15
      %v923 = vpop.permute.xlu0 %922
      %924 = vrot.lane.b32.xlu0 %v755, 15
      %v925 = vpop.permute.xlu0 %924
      %v926 = vsel %vm422, %v923, %v925
      %v927 = vsel %vm422, %v925, %v923
      %v928 = vsel %vm427, %v927, 0.0
      %v929 = vsel %vm428, %v926, 0.0
      %v930 = vpack.c.bf16 %v928, %v928
      %v931 = vpack.c.bf16 %v929, %v929
      %v934 = vunpack.c.l.b16 %v930
      %v935 = vunpack.c.l.b16 %v931
      %v936 = vpack.c.b16 %v935, %v934
      %938 = vst [vmem:[#allocation2 + $0xe0] sm:$0xff] %v936
      %939 = vrot.lane.b32.xlu0 %v754, 14
      %v940 = vpop.permute.xlu0 %939
      %941 = vrot.lane.b32.xlu0 %v755, 14
      %v942 = vpop.permute.xlu0 %941
      %vm943 = vcmp.lt.s32.totalorder %v308, 14
      %v944 = vsel %vm943, %v940, %v942
      %v945 = vsel %vm943, %v942, %v940
      %v946 = vsel %vm360, 1, 0
      %v947 = vsel %vm361, 1, 0
      %vm948 = vcmp.eq.s32.totalorder %v946, 1
      %vm949 = vcmp.eq.s32.totalorder %v947, 1
      %v950 = vsel %vm948, %v945, 0.0
      %v951 = vsel %vm949, %v944, 0.0
      %v952 = vpack.c.bf16 %v950, %v950
      %v953 = vpack.c.bf16 %v951, %v951
      %v956 = vunpack.c.l.b16 %v952
      %v957 = vunpack.c.l.b16 %v953
      %v958 = vpack.c.b16 %v957, %v956
      %960 = vst [vmem:[#allocation2 + $0xe8] sm:$0xff] %v958
      %961 = vrot.lane.b32.xlu0 %v754, 2
      %v962 = vpop.permute.xlu0 %961
      %963 = vrot.lane.b32.xlu0 %v755, 2
      %v964 = vpop.permute.xlu0 %963
      %vm965 = vcmp.lt.s32.totalorder %v308, 2
      %v966 = vsel %vm965, %v962, %v964
      %v967 = vsel %vm965, %v964, %v962
      %v968 = vsel %vm336, 1, 0
      %v969 = vsel %vm337, 1, 0
      %vm970 = vcmp.eq.s32.totalorder %v968, 1
      %vm971 = vcmp.eq.s32.totalorder %v969, 1
      %v972 = vsel %vm970, %v967, 0.0
      %v973 = vsel %vm971, %v966, 0.0
      %v974 = vpack.c.bf16 %v972, %v972
      %v975 = vpack.c.bf16 %v973, %v973
      %v978 = vunpack.c.l.b16 %v974
      %v979 = vunpack.c.l.b16 %v975
      %v980 = vpack.c.b16 %v979, %v978
      %982 = vst [vmem:[#allocation2 + $0xf0] sm:$0xff] %v980
      %983 = vrot.lane.b32.xlu0 %v754, 1
      %v984 = vpop.permute.xlu0 %983
      %985 = vrot.lane.b32.xlu0 %v755, 1
      %v986 = vpop.permute.xlu0 %985
      %v987 = vsel %vm437, %v984, %v986
      %v988 = vsel %vm437, %v986, %v984
      %v989 = vsel %vm442, %v988, 0.0
      %v990 = vsel %vm443, %v987, 0.0
      %v991 = vpack.c.bf16 %v989, %v989
      %v992 = vpack.c.bf16 %v990, %v990
      %v995 = vunpack.c.l.b16 %v991
      %v996 = vunpack.c.l.b16 %v992
      %v997 = vpack.c.b16 %v996, %v995
      %999 = vst [vmem:[#allocation2 + $0xf8] sm:$0xff] %v997
      %v1000 = vpack.c.bf16 %v754, %v754
      %v1001 = vpack.c.bf16 %v755, %v755
      %v1004 = vunpack.c.l.b16 %v1000
      %v1005 = vunpack.c.l.b16 %v1001
      %v1006 = vpack.c.b16 %v1005, %v1004
      %1008 = vst [vmem:[#allocation2 + $0x100] sm:$0xff] %v1006
      %1009 = vrot.lane.b32.xlu0 %v754, 127
      %v1010 = vpop.permute.xlu0 %1009
      %1011 = vrot.lane.b32.xlu0 %v755, 127
      %v1012 = vpop.permute.xlu0 %1011
      %v1013 = vsel %vm452, %v1010, %v1012
      %v1014 = vsel %vm452, %v1012, %v1010
      %v1015 = vsel %vm457, %v1013, 0.0
      %v1016 = vsel %vm458, %v1014, 0.0
      %v1017 = vpack.c.bf16 %v1015, %v1015
      %v1018 = vpack.c.bf16 %v1016, %v1016
      %v1021 = vunpack.c.l.b16 %v1017
      %v1022 = vunpack.c.l.b16 %v1018
      %v1023 = vpack.c.b16 %v1022, %v1021
      %1025 = vst [vmem:[#allocation2 + $0x108] sm:$0xff] %v1023
      %1026 = vrot.lane.b32.xlu0 %v754, 126
      %v1027 = vpop.permute.xlu0 %1026
      %1028 = vrot.lane.b32.xlu0 %v755, 126
      %v1029 = vpop.permute.xlu0 %1028
      %vm1030 = vcmp.lt.s32.totalorder %v308, 126
      %v1031 = vsel %vm1030, %v1027, %v1029
      %v1032 = vsel %vm1030, %v1029, %v1027
      %v1033 = vsel %vm348, 1, 0
      %v1034 = vsel %vm349, 1, 0
      %vm1035 = vcmp.eq.s32.totalorder %v1033, 1
      %vm1036 = vcmp.eq.s32.totalorder %v1034, 1
      %v1037 = vsel %vm1035, %v1031, 0.0
      %v1038 = vsel %vm1036, %v1032, 0.0
      %v1039 = vpack.c.bf16 %v1037, %v1037
      %v1040 = vpack.c.bf16 %v1038, %v1038
      %v1043 = vunpack.c.l.b16 %v1039
      %v1044 = vunpack.c.l.b16 %v1040
      %v1045 = vpack.c.b16 %v1044, %v1043
      %1047 = vst [vmem:[#allocation2 + $0x110] sm:$0xff] %v1045
      %1048 = vrot.lane.b32.xlu0 %v754, 114
      %v1049 = vpop.permute.xlu0 %1048
      %1050 = vrot.lane.b32.xlu0 %v755, 114
      %v1051 = vpop.permute.xlu0 %1050
      %vm1052 = vcmp.lt.s32.totalorder %v308, 114
      %v1053 = vsel %vm1052, %v1049, %v1051
      %v1054 = vsel %vm1052, %v1051, %v1049
      %v1055 = vsel %vm364, 1, 0
      %v1056 = vsel %vm365, 1, 0
      %vm1057 = vcmp.eq.s32.totalorder %v1055, 1
      %vm1058 = vcmp.eq.s32.totalorder %v1056, 1
      %v1059 = vsel %vm1057, %v1053, 0.0
      %v1060 = vsel %vm1058, %v1054, 0.0
      %v1061 = vpack.c.bf16 %v1059, %v1059
      %v1062 = vpack.c.bf16 %v1060, %v1060
      %v1065 = vunpack.c.l.b16 %v1061
      %v1066 = vunpack.c.l.b16 %v1062
      %v1067 = vpack.c.b16 %v1066, %v1065
      %1069 = vst [vmem:[#allocation2 + $0x118] sm:$0xff] %v1067
      %1070 = vrot.lane.b32.xlu0 %v754, 113
      %v1071 = vpop.permute.xlu0 %1070
      %1072 = vrot.lane.b32.xlu0 %v755, 113
      %v1073 = vpop.permute.xlu0 %1072
      %v1074 = vsel %vm467, %v1071, %v1073
      %v1075 = vsel %vm467, %v1073, %v1071
      %v1076 = vsel %vm472, %v1074, 0.0
      %v1077 = vsel %vm473, %v1075, 0.0
      %v1078 = vpack.c.bf16 %v1076, %v1076
      %v1079 = vpack.c.bf16 %v1077, %v1077
      %v1082 = vunpack.c.l.b16 %v1078
      %v1083 = vunpack.c.l.b16 %v1079
      %v1084 = vpack.c.b16 %v1083, %v1082
      %1086 = vst [vmem:[#allocation2 + $0x120] sm:$0xff] %v1084
      %1087 = vrot.lane.b32.xlu0 %v754, 112
      %v1088 = vpop.permute.xlu0 %1087
      %1089 = vrot.lane.b32.xlu0 %v755, 112
      %v1090 = vpop.permute.xlu0 %1089
      %v1091 = vsel %vm482, %v1088, %v1090
      %v1092 = vsel %vm482, %v1090, %v1088
      %v1093 = vsel %vm487, %v1091, 0.0
      %v1094 = vsel %vm488, %v1092, 0.0
      %v1095 = vpack.c.bf16 %v1093, %v1093
      %v1096 = vpack.c.bf16 %v1094, %v1094
      %v1099 = vunpack.c.l.b16 %v1095
      %v1100 = vunpack.c.l.b16 %v1096
      %v1101 = vpack.c.b16 %v1100, %v1099
      %1103 = vst [vmem:[#allocation2 + $0x128] sm:$0xff] %v1101
      %1104 = vrot.lane.b32.xlu0 %v754, 111
      %v1105 = vpop.permute.xlu0 %1104
      %1106 = vrot.lane.b32.xlu0 %v755, 111
      %v1107 = vpop.permute.xlu0 %1106
      %v1108 = vsel %vm497, %v1105, %v1107
      %v1109 = vsel %vm497, %v1107, %v1105
      %v1110 = vsel %vm502, %v1108, 0.0
      %v1111 = vsel %vm503, %v1109, 0.0
      %v1112 = vpack.c.bf16 %v1110, %v1110
      %v1113 = vpack.c.bf16 %v1111, %v1111
      %v1116 = vunpack.c.l.b16 %v1112
      %v1117 = vunpack.c.l.b16 %v1113
      %v1118 = vpack.c.b16 %v1117, %v1116
      %1120 = vst [vmem:[#allocation2 + $0x130] sm:$0xff] %v1118
      %1121 = vrot.lane.b32.xlu0 %v754, 110
      %v1122 = vpop.permute.xlu0 %1121
      %1123 = vrot.lane.b32.xlu0 %v755, 110
      %v1124 = vpop.permute.xlu0 %1123
      %vm1125 = vcmp.lt.s32.totalorder %v308, 110
      %v1126 = vsel %vm1125, %v1122, %v1124
      %v1127 = vsel %vm1125, %v1124, %v1122
      %v1128 = vsel %vm370, 1, 0
      %v1129 = vsel %vm371, 1, 0
      %vm1130 = vcmp.eq.s32.totalorder %v1128, 1
      %vm1131 = vcmp.eq.s32.totalorder %v1129, 1
      %v1132 = vsel %vm1130, %v1126, 0.0
      %v1133 = vsel %vm1131, %v1127, 0.0
      %v1134 = vpack.c.bf16 %v1132, %v1132
      %v1135 = vpack.c.bf16 %v1133, %v1133
      %v1138 = vunpack.c.l.b16 %v1134
      %v1139 = vunpack.c.l.b16 %v1135
      %v1140 = vpack.c.b16 %v1139, %v1138
      %1142 = vst [vmem:[#allocation2 + $0x138] sm:$0xff] %v1140
      %1143 = vrot.lane.b32.xlu0 %v754, 98
      %v1144 = vpop.permute.xlu0 %1143
      %1145 = vrot.lane.b32.xlu0 %v755, 98
      %v1146 = vpop.permute.xlu0 %1145
      %vm1147 = vcmp.lt.s32.totalorder %v308, 98
      %v1148 = vsel %vm1147, %v1144, %v1146
      %v1149 = vsel %vm1147, %v1146, %v1144
      %v1150 = vsel %vm374, 1, 0
      %v1151 = vsel %vm375, 1, 0
      %vm1152 = vcmp.eq.s32.totalorder %v1150, 1
      %vm1153 = vcmp.eq.s32.totalorder %v1151, 1
      %v1154 = vsel %vm1152, %v1148, 0.0
      %v1155 = vsel %vm1153, %v1149, 0.0
      %v1156 = vpack.c.bf16 %v1154, %v1154
      %v1157 = vpack.c.bf16 %v1155, %v1155
      %v1160 = vunpack.c.l.b16 %v1156
      %v1161 = vunpack.c.l.b16 %v1157
      %v1162 = vpack.c.b16 %v1161, %v1160
      %1164 = vst [vmem:[#allocation2 + $0x140] sm:$0xff] %v1162
      %1165 = vrot.lane.b32.xlu0 %v754, 97
      %v1166 = vpop.permute.xlu0 %1165
      %1167 = vrot.lane.b32.xlu0 %v755, 97
      %v1168 = vpop.permute.xlu0 %1167
      %vm1169 = vcmp.lt.s32.totalorder %v308, 97
      %v1170 = vsel %vm1169, %v1166, %v1168
      %v1171 = vsel %vm1169, %v1168, %v1166
      %v1172 = vsel %vm376, 1, 0
      %v1173 = vsel %vm377, 1, 0
      %vm1174 = vcmp.eq.s32.totalorder %v1172, 1
      %vm1175 = vcmp.eq.s32.totalorder %v1173, 1
      %v1176 = vsel %vm1174, %v1170, 0.0
      %v1177 = vsel %vm1175, %v1171, 0.0
      %v1178 = vpack.c.bf16 %v1176, %v1176
      %v1179 = vpack.c.bf16 %v1177, %v1177
      %v1182 = vunpack.c.l.b16 %v1178
      %v1183 = vunpack.c.l.b16 %v1179
      %v1184 = vpack.c.b16 %v1183, %v1182
      %1186 = vst [vmem:[#allocation2 + $0x148] sm:$0xff] %v1184
      %1187 = vrot.lane.b32.xlu0 %v754, 96
      %v1188 = vpop.permute.xlu0 %1187
      %1189 = vrot.lane.b32.xlu0 %v755, 96
      %v1190 = vpop.permute.xlu0 %1189
      %vm1191 = vcmp.lt.s32.totalorder %v308, 96
      %v1192 = vsel %vm1191, %v1188, %v1190
      %v1193 = vsel %vm1191, %v1190, %v1188
      %v1194 = vsel %vm372, 1, 0
      %v1195 = vsel %vm373, 1, 0
      %vm1196 = vcmp.eq.s32.totalorder %v1194, 1
      %vm1197 = vcmp.eq.s32.totalorder %v1195, 1
      %v1198 = vsel %vm1196, %v1192, 0.0
      %v1199 = vsel %vm1197, %v1193, 0.0
      %v1200 = vpack.c.bf16 %v1198, %v1198
      %v1201 = vpack.c.bf16 %v1199, %v1199
      %v1204 = vunpack.c.l.b16 %v1200
      %v1205 = vunpack.c.l.b16 %v1201
      %v1206 = vpack.c.b16 %v1205, %v1204
      %1208 = vst [vmem:[#allocation2 + $0x150] sm:$0xff] %v1206
      %1209 = vrot.lane.b32.xlu0 %v754, 95
      %v1210 = vpop.permute.xlu0 %1209
      %1211 = vrot.lane.b32.xlu0 %v755, 95
      %v1212 = vpop.permute.xlu0 %1211
      %vm1213 = vcmp.lt.s32.totalorder %v308, 95
      %v1214 = vsel %vm1213, %v1210, %v1212
      %v1215 = vsel %vm1213, %v1212, %v1210
      %v1216 = vsel %vm378, 1, 0
      %v1217 = vsel %vm379, 1, 0
      %vm1218 = vcmp.eq.s32.totalorder %v1216, 1
      %vm1219 = vcmp.eq.s32.totalorder %v1217, 1
      %v1220 = vsel %vm1218, %v1214, 0.0
      %v1221 = vsel %vm1219, %v1215, 0.0
      %v1222 = vpack.c.bf16 %v1220, %v1220
      %v1223 = vpack.c.bf16 %v1221, %v1221
      %v1226 = vunpack.c.l.b16 %v1222
      %v1227 = vunpack.c.l.b16 %v1223
      %v1228 = vpack.c.b16 %v1227, %v1226
      %1230 = vst [vmem:[#allocation2 + $0x158] sm:$0xff] %v1228
      %1231 = vrot.lane.b32.xlu0 %v754, 94
      %v1232 = vpop.permute.xlu0 %1231
      %1233 = vrot.lane.b32.xlu0 %v755, 94
      %v1234 = vpop.permute.xlu0 %1233
      %vm1235 = vcmp.lt.s32.totalorder %v308, 94
      %v1236 = vsel %vm1235, %v1232, %v1234
      %v1237 = vsel %vm1235, %v1234, %v1232
      %v1238 = vsel %vm380, 1, 0
      %v1239 = vsel %vm381, 1, 0
      %vm1240 = vcmp.eq.s32.totalorder %v1238, 1
      %vm1241 = vcmp.eq.s32.totalorder %v1239, 1
      %v1242 = vsel %vm1240, %v1236, 0.0
      %v1243 = vsel %vm1241, %v1237, 0.0
      %v1244 = vpack.c.bf16 %v1242, %v1242
      %v1245 = vpack.c.bf16 %v1243, %v1243
      %v1248 = vunpack.c.l.b16 %v1244
      %v1249 = vunpack.c.l.b16 %v1245
      %v1250 = vpack.c.b16 %v1249, %v1248
      %1252 = vst [vmem:[#allocation2 + $0x160] sm:$0xff] %v1250
      %v1253 = vld [vmem:[%s3] sm:$0xff]
      %v1254 = vld [vmem:[#allocation2 + $0xa0] sm:$0xff]
      %v1255 = vld [vmem:[#allocation2 + $0xa8] sm:$0xff]
      %v1256 = vld [vmem:[#allocation2 + $0xb0] sm:$0xff]
      %v1257 = vld [vmem:[#allocation2 + $0xb8] sm:$0xff]
      %v1258 = vld [vmem:[#allocation2 + $0xc0] sm:$0xff]
      %v1259 = vld [vmem:[#allocation2 + $0xc8] sm:$0xff]
      %v1260 = vld [vmem:[#allocation2 + $0xd0] sm:$0xff]
      %v1261 = vld [vmem:[#allocation2 + $0xd8] sm:$0xff]
      %v1262 = vld [vmem:[#allocation2 + $0xe0] sm:$0xff]
      %v1263 = vld [vmem:[#allocation2 + $0xe8] sm:$0xff]
      %v1264 = vld [vmem:[#allocation2 + $0xf0] sm:$0xff]
      %v1265 = vld [vmem:[#allocation2 + $0xf8] sm:$0xff]
      %v1266 = vld [vmem:[#allocation2 + $0x100] sm:$0xff]
      %v1267 = vld [vmem:[#allocation2 + $0x108] sm:$0xff]
      %v1268 = vld [vmem:[#allocation2 + $0x110] sm:$0xff]
      %v1269 = vld [vmem:[#allocation2 + $0x118] sm:$0xff]
      %v1270 = vld [vmem:[#allocation2 + $0x120] sm:$0xff]
      %v1271 = vld [vmem:[#allocation2 + $0x128] sm:$0xff]
      %v1272 = vld [vmem:[#allocation2 + $0x130] sm:$0xff]
      %v1273 = vld [vmem:[#allocation2 + $0x138] sm:$0xff]
      %v1274 = vld [vmem:[#allocation2 + $0x140] sm:$0xff]
      %v1275 = vld [vmem:[#allocation2 + $0x148] sm:$0xff]
      %v1276 = vld [vmem:[#allocation2 + $0x150] sm:$0xff]
      %v1277 = vld [vmem:[#allocation2 + $0x158] sm:$0xff]
      %v1278 = vld [vmem:[#allocation2 + $0x160] sm:$0xff]
      %v1279 = vld [vmem:[%s1 + $0x70] sm:$0xff]
      %1281 = vset.pattern.permute.xlu0 0
      %1282 = vperm.xlu0 %1281, %v1279
      %v1283 = vpop.permute.xlu0 %1282
      %v1286 = vunpack.c.l.b16 %v1253
      %v1287 = vunpack.c.h.b16 %v1253
      %v1288 = vpack.c.b16 %v1286, %v1286
      %v1289 = vpack.c.b16 %v1287, %v1287
      %v1316 = vunpack.c.l.b16 %v1254
      %v1317 = vunpack.c.h.b16 %v1254
      %v1318 = vunpack.c.l.b16 %v1255
      %v1319 = vunpack.c.h.b16 %v1255
      %v1320 = vunpack.c.l.b16 %v1256
      %v1321 = vunpack.c.h.b16 %v1256
      %v1322 = vunpack.c.l.b16 %v1257
      %v1323 = vunpack.c.h.b16 %v1257
      %v1324 = vunpack.c.l.b16 %v1258
      %v1325 = vunpack.c.h.b16 %v1258
      %v1326 = vunpack.c.l.b16 %v1259
      %v1327 = vunpack.c.h.b16 %v1259
      %v1328 = vunpack.c.l.b16 %v1260
      %v1329 = vunpack.c.h.b16 %v1260
      %v1330 = vunpack.c.l.b16 %v1261
      %v1331 = vunpack.c.h.b16 %v1261
      %v1332 = vunpack.c.l.b16 %v1262
      %v1333 = vunpack.c.h.b16 %v1262
      %v1334 = vunpack.c.l.b16 %v1263
      %v1335 = vunpack.c.h.b16 %v1263
      %v1336 = vunpack.c.l.b16 %v1264
      %v1337 = vunpack.c.h.b16 %v1264
      %v1338 = vunpack.c.l.b16 %v1265
      %v1339 = vunpack.c.h.b16 %v1265
      %v1340 = vunpack.c.l.b16 %v1266
      %v1341 = vunpack.c.h.b16 %v1266
      %v1342 = vunpack.c.l.b16 %v1267
      %v1343 = vunpack.c.h.b16 %v1267
      %v1344 = vunpack.c.l.b16 %v1268
      %v1345 = vunpack.c.h.b16 %v1268
      %v1346 = vunpack.c.l.b16 %v1269
      %v1347 = vunpack.c.h.b16 %v1269
      %v1348 = vunpack.c.l.b16 %v1270
      %v1349 = vunpack.c.h.b16 %v1270
      %v1350 = vunpack.c.l.b16 %v1271
      %v1351 = vunpack.c.h.b16 %v1271
      %v1352 = vunpack.c.l.b16 %v1272
      %v1353 = vunpack.c.h.b16 %v1272
      %v1354 = vunpack.c.l.b16 %v1273
      %v1355 = vunpack.c.h.b16 %v1273
      %v1356 = vunpack.c.l.b16 %v1274
      %v1357 = vunpack.c.h.b16 %v1274
      %v1358 = vunpack.c.l.b16 %v1275
      %v1359 = vunpack.c.h.b16 %v1275
      %v1360 = vunpack.c.l.b16 %v1276
      %v1361 = vunpack.c.h.b16 %v1276
      %v1362 = vunpack.c.l.b16 %v1277
      %v1363 = vunpack.c.h.b16 %v1277
      %v1364 = vunpack.c.l.b16 %v1278
      %v1365 = vunpack.c.h.b16 %v1278
      %v1366 = vpack.c.b16 %v1318, %v1316
      %v1367 = vpack.c.b16 %v1319, %v1317
      %v1368 = vpack.c.b16 %v1322, %v1320
      %v1369 = vpack.c.b16 %v1323, %v1321
      %v1370 = vpack.c.b16 %v1326, %v1324
      %v1371 = vpack.c.b16 %v1327, %v1325
      %v1372 = vpack.c.b16 %v1330, %v1328
      %v1373 = vpack.c.b16 %v1331, %v1329
      %v1374 = vpack.c.b16 %v1334, %v1332
      %v1375 = vpack.c.b16 %v1335, %v1333
      %v1376 = vpack.c.b16 %v1338, %v1336
      %v1377 = vpack.c.b16 %v1339, %v1337
      %v1378 = vpack.c.b16 %v1342, %v1340
      %v1379 = vpack.c.b16 %v1343, %v1341
      %v1380 = vpack.c.b16 %v1346, %v1344
      %v1381 = vpack.c.b16 %v1347, %v1345
      %v1382 = vpack.c.b16 %v1350, %v1348
      %v1383 = vpack.c.b16 %v1351, %v1349
      %v1384 = vpack.c.b16 %v1354, %v1352
      %v1385 = vpack.c.b16 %v1355, %v1353
      %v1386 = vpack.c.b16 %v1358, %v1356
      %v1387 = vpack.c.b16 %v1359, %v1357
      %v1388 = vpack.c.b16 %v1362, %v1360
      %v1389 = vpack.c.b16 %v1363, %v1361
      %v1390 = vpack.c.b16 %v1364, %v1364
      %v1391 = vpack.c.b16 %v1365, %v1365
      %vm1416 = vcmask 588800
      %v1418 = vsel %vm1416, %v1289, 0
      %vm1420 = vcmask 1043456
      %v1422 = vsel %vm1420, %v1390, 0
      %v1425 = vsel %vm1420, %v1391, 0
      %1427 = vmatprep.subr.bf16.mxu0 %v1381
      %1428 = vmatpush1.bf16.msra.mxu0 %v1380
      %1429 = vmatprep.subr.bf16.mxu0 %v1379
      %1430 = vmatpush1.bf16.msra.mxu0 %v1378
      %1431 = vmatprep.subr.bf16.mxu0 %v1377
      %1432 = vmatpush1.bf16.msra.mxu0 %v1376
      %1433 = vmatprep.subr.bf16.mxu0 %v1375
      %1434 = vmatpush1.bf16.msra.mxu0 %v1374
      %1435 = vmatprep.subr.bf16.mxu0 %v1373
      %1436 = vmatpush1.bf16.msra.mxu0 %v1372
      %1437 = vmatprep.subr.bf16.mxu0 %v1371
      %1438 = vmatpush1.bf16.msra.mxu0 %v1370
      %1439 = vmatprep.subr.bf16.mxu0 %v1369
      %1440 = vmatpush1.bf16.msra.mxu0 %v1368
      %1441 = vmatprep.subr.bf16.mxu0 %v1367
      %1442 = vmatpush1.bf16.msra.mxu0 %v1366
      %1443 = vmatprep.subr.bf16.mxu0 0
      %1444 = vmatpush2.bf16.msra.mxu0 0
      %1445 = vmatprep.subr.bf16.mxu0 0
      %1446 = vmatpush2.bf16.msra.mxu0 0
      %1447 = vmatprep.subr.bf16.mxu0 0
      %1448 = vmatpush2.bf16.msra.mxu0 0
      %1449 = vmatprep.subr.bf16.mxu0 %v1425
      %1450 = vmatpush2.bf16.msra.mxu0 %v1422
      %1451 = vmatprep.subr.bf16.mxu0 %v1389
      %1452 = vmatpush2.bf16.msra.mxu0 %v1388
      %1453 = vmatprep.subr.bf16.mxu0 %v1387
      %1454 = vmatpush2.bf16.msra.mxu0 %v1386
      %1455 = vmatprep.subr.bf16.mxu0 %v1385
      %1456 = vmatpush2.bf16.msra.mxu0 %v1384
      %1457 = vmatprep.subr.bf16.mxu0 %v1383
      %1458 = vmatpush2.bf16.msra.mxu0 %v1382
      %1459 = vmatprep.mubr.bf16.mxu0 %v1418
      %1460 = vmatmul.mubr.bf16.gmra.mxu0 %v1288
      %v1461 = vpop.f32.mrf.mxu0
      %v1462 = vadd.f32 %v1283, %v1461
      %v1463 = vpop.f32.mrf.mxu0
      %v1464 = vadd.f32 %v1283, %v1463
      %v1465 = vpop.f32.mrf.mxu0
      %v1466 = vpop.f32.mrf.mxu0
      %1467 = vdwg.mxu0
      %v1468 = vld [vmem:[%s1 + $0x78] sm:$0xff]
      %1470 = vset.pattern.permute.xlu0 0
      %1471 = vperm.xlu0 %1470, %v1468
      %v1472 = vpop.permute.xlu0 %1471
      %v1474 = vmul.f32 %v730, %v1472
      %v1475 = vmul.f32 %v732, %v1472
      %v1476 = vld [vmem:[%s1 + $0x80] sm:$0xff]
      %1478 = vset.pattern.permute.xlu0 0
      %1479 = vperm.xlu0 %1478, %v1476
      %v1480 = vpop.permute.xlu0 %1479
      %v1482 = vadd.f32 %v1474, %v1480
      %v1483 = vadd.f32 %v1475, %v1480
      %v1484 = vmax.f32 %v1482, 0.0
      %v1485 = vmax.f32 %v1483, 0.0
      %1486 = vrot.lane.b32.xlu0 %v1484, 17
      %v1487 = vpop.permute.xlu0 %1486
      %1488 = vrot.lane.b32.xlu0 %v1485, 17
      %v1489 = vpop.permute.xlu0 %1488
      %v1490 = vsel %vm392, %v1487, %v1489
      %v1491 = vsel %vm392, %v1489, %v1487
      %v1492 = vsel %vm397, %v1491, 0.0
      %v1493 = vsel %vm398, %v1490, 0.0
      %v1494 = vpack.c.bf16 %v1492, %v1492
      %v1495 = vpack.c.bf16 %v1493, %v1493
      %v1498 = vunpack.c.l.b16 %v1494
      %v1499 = vunpack.c.l.b16 %v1495
      %v1500 = vpack.c.b16 %v1499, %v1498
      %1502 = vst [vmem:[#allocation2 + $0x168] sm:$0xff] %v1500
      %1503 = vrot.lane.b32.xlu0 %v1484, 16
      %v1504 = vpop.permute.xlu0 %1503
      %1505 = vrot.lane.b32.xlu0 %v1485, 16
      %v1506 = vpop.permute.xlu0 %1505
      %v1507 = vsel %vm407, %v1504, %v1506
      %v1508 = vsel %vm407, %v1506, %v1504
      %v1509 = vsel %vm412, %v1508, 0.0
      %v1510 = vsel %vm413, %v1507, 0.0
      %v1511 = vpack.c.bf16 %v1509, %v1509
      %v1512 = vpack.c.bf16 %v1510, %v1510
      %v1515 = vunpack.c.l.b16 %v1511
      %v1516 = vunpack.c.l.b16 %v1512
      %v1517 = vpack.c.b16 %v1516, %v1515
      %1519 = vst [vmem:[#allocation2 + $0x170] sm:$0xff] %v1517
      %1520 = vrot.lane.b32.xlu0 %v1484, 15
      %v1521 = vpop.permute.xlu0 %1520
      %1522 = vrot.lane.b32.xlu0 %v1485, 15
      %v1523 = vpop.permute.xlu0 %1522
      %v1524 = vsel %vm422, %v1521, %v1523
      %v1525 = vsel %vm422, %v1523, %v1521
      %v1526 = vsel %vm427, %v1525, 0.0
      %v1527 = vsel %vm428, %v1524, 0.0
      %v1528 = vpack.c.bf16 %v1526, %v1526
      %v1529 = vpack.c.bf16 %v1527, %v1527
      %v1532 = vunpack.c.l.b16 %v1528
      %v1533 = vunpack.c.l.b16 %v1529
      %v1534 = vpack.c.b16 %v1533, %v1532
      %1536 = vst [vmem:[#allocation2 + $0x178] sm:$0xff] %v1534
      %1537 = vrot.lane.b32.xlu0 %v1484, 1
      %v1538 = vpop.permute.xlu0 %1537
      %1539 = vrot.lane.b32.xlu0 %v1485, 1
      %v1540 = vpop.permute.xlu0 %1539
      %v1541 = vsel %vm437, %v1538, %v1540
      %v1542 = vsel %vm437, %v1540, %v1538
      %v1543 = vsel %vm442, %v1542, 0.0
      %v1544 = vsel %vm443, %v1541, 0.0
      %v1545 = vpack.c.bf16 %v1543, %v1543
      %v1546 = vpack.c.bf16 %v1544, %v1544
      %v1549 = vunpack.c.l.b16 %v1545
      %v1550 = vunpack.c.l.b16 %v1546
      %v1551 = vpack.c.b16 %v1550, %v1549
      %1553 = vst [vmem:[#allocation2 + $0x180] sm:$0xff] %v1551
      %v1554 = vpack.c.bf16 %v1484, %v1484
      %v1555 = vpack.c.bf16 %v1485, %v1485
      %v1558 = vunpack.c.l.b16 %v1554
      %v1559 = vunpack.c.l.b16 %v1555
      %v1560 = vpack.c.b16 %v1559, %v1558
      %1562 = vst [vmem:[#allocation2 + $0x188] sm:$0xff] %v1560
      %1563 = vrot.lane.b32.xlu0 %v1484, 127
      %v1564 = vpop.permute.xlu0 %1563
      %1565 = vrot.lane.b32.xlu0 %v1485, 127
      %v1566 = vpop.permute.xlu0 %1565
      %v1567 = vsel %vm452, %v1564, %v1566
      %v1568 = vsel %vm452, %v1566, %v1564
      %v1569 = vsel %vm457, %v1567, 0.0
      %v1570 = vsel %vm458, %v1568, 0.0
      %v1571 = vpack.c.bf16 %v1569, %v1569
      %v1572 = vpack.c.bf16 %v1570, %v1570
      %v1575 = vunpack.c.l.b16 %v1571
      %v1576 = vunpack.c.l.b16 %v1572
      %v1577 = vpack.c.b16 %v1576, %v1575
      %1579 = vst [vmem:[#allocation2 + $0x190] sm:$0xff] %v1577
      %1580 = vrot.lane.b32.xlu0 %v1484, 113
      %v1581 = vpop.permute.xlu0 %1580
      %1582 = vrot.lane.b32.xlu0 %v1485, 113
      %v1583 = vpop.permute.xlu0 %1582
      %v1584 = vsel %vm467, %v1581, %v1583
      %v1585 = vsel %vm467, %v1583, %v1581
      %v1586 = vsel %vm472, %v1584, 0.0
      %v1587 = vsel %vm473, %v1585, 0.0
      %v1588 = vpack.c.bf16 %v1586, %v1586
      %v1589 = vpack.c.bf16 %v1587, %v1587
      %v1592 = vunpack.c.l.b16 %v1588
      %v1593 = vunpack.c.l.b16 %v1589
      %v1594 = vpack.c.b16 %v1593, %v1592
      %1596 = vst [vmem:[#allocation2 + $0x198] sm:$0xff] %v1594
      %1597 = vrot.lane.b32.xlu0 %v1484, 112
      %v1598 = vpop.permute.xlu0 %1597
      %1599 = vrot.lane.b32.xlu0 %v1485, 112
      %v1600 = vpop.permute.xlu0 %1599
      %v1601 = vsel %vm482, %v1598, %v1600
      %v1602 = vsel %vm482, %v1600, %v1598
      %v1603 = vsel %vm487, %v1601, 0.0
      %v1604 = vsel %vm488, %v1602, 0.0
      %v1605 = vpack.c.bf16 %v1603, %v1603
      %v1606 = vpack.c.bf16 %v1604, %v1604
      %v1609 = vunpack.c.l.b16 %v1605
      %v1610 = vunpack.c.l.b16 %v1606
      %v1611 = vpack.c.b16 %v1610, %v1609
      %1613 = vst [vmem:[#allocation2 + $0x1a0] sm:$0xff] %v1611
      %1614 = vrot.lane.b32.xlu0 %v1484, 111
      %v1615 = vpop.permute.xlu0 %1614
      %1616 = vrot.lane.b32.xlu0 %v1485, 111
      %v1617 = vpop.permute.xlu0 %1616
      %v1618 = vsel %vm497, %v1615, %v1617
      %v1619 = vsel %vm497, %v1617, %v1615
      %v1620 = vsel %vm502, %v1618, 0.0
      %v1621 = vsel %vm503, %v1619, 0.0
      %v1622 = vpack.c.bf16 %v1620, %v1620
      %v1623 = vpack.c.bf16 %v1621, %v1621
      %v1626 = vunpack.c.l.b16 %v1622
      %v1627 = vunpack.c.l.b16 %v1623
      %v1628 = vpack.c.b16 %v1627, %v1626
      %1630 = vst [vmem:[#allocation2 + $0x1a8] sm:$0xff] %v1628
      %v1631 = vld [vmem:[%s4] sm:$0xf]
      %v1632 = vld [vmem:[#allocation2 + $0x168] sm:$0xff]
      %v1633 = vld [vmem:[#allocation2 + $0x170] sm:$0xff]
      %v1634 = vld [vmem:[#allocation2 + $0x178] sm:$0xff]
      %v1635 = vld [vmem:[#allocation2 + $0x180] sm:$0xff]
      %v1636 = vld [vmem:[#allocation2 + $0x188] sm:$0xff]
      %v1637 = vld [vmem:[#allocation2 + $0x190] sm:$0xff]
      %v1638 = vld [vmem:[#allocation2 + $0x198] sm:$0xff]
      %v1639 = vld [vmem:[#allocation2 + $0x1a0] sm:$0xff]
      %v1640 = vld [vmem:[#allocation2 + $0x1a8] sm:$0xff]
      %v1641 = vld [vmem:[%s1 + $0x88] sm:$0xff]
      %1643 = vset.pattern.permute.xlu0 0
      %1644 = vperm.xlu0 %1643, %v1641
      %v1645 = vpop.permute.xlu0 %1644
      %v1656 = vunpack.c.l.b16 %v1632
      %v1657 = vunpack.c.h.b16 %v1632
      %v1658 = vunpack.c.l.b16 %v1633
      %v1659 = vunpack.c.h.b16 %v1633
      %v1660 = vunpack.c.l.b16 %v1634
      %v1661 = vunpack.c.h.b16 %v1634
      %v1662 = vunpack.c.l.b16 %v1635
      %v1663 = vunpack.c.h.b16 %v1635
      %v1664 = vunpack.c.l.b16 %v1636
      %v1665 = vunpack.c.h.b16 %v1636
      %v1666 = vunpack.c.l.b16 %v1637
      %v1667 = vunpack.c.h.b16 %v1637
      %v1668 = vunpack.c.l.b16 %v1638
      %v1669 = vunpack.c.h.b16 %v1638
      %v1670 = vunpack.c.l.b16 %v1639
      %v1671 = vunpack.c.h.b16 %v1639
      %v1672 = vunpack.c.l.b16 %v1640
      %v1673 = vunpack.c.h.b16 %v1640
      %v1674 = vpack.c.b16 %v1658, %v1656
      %v1675 = vpack.c.b16 %v1659, %v1657
      %v1676 = vpack.c.b16 %v1662, %v1660
      %v1677 = vpack.c.b16 %v1663, %v1661
      %v1678 = vpack.c.b16 %v1666, %v1664
      %v1679 = vpack.c.b16 %v1667, %v1665
      %v1680 = vpack.c.b16 %v1670, %v1668
      %v1681 = vpack.c.b16 %v1671, %v1669
      %v1682 = vpack.c.b16 %v1672, %v1672
      %v1683 = vpack.c.b16 %v1673, %v1673
      %v1693 = vsel %vm1416, %v1631, 0
      %v1696 = vsel %vm1420, %v1682, 0
      %v1699 = vsel %vm1420, %v1683, 0
      %1701 = vmatprep.subr.bf16.mxu0 0
      %1702 = vmatpush1.bf16.msra.mxu0 0
      %1703 = vmatprep.subr.bf16.mxu0 0
      %1704 = vmatpush1.bf16.msra.mxu0 0
      %1705 = vmatprep.subr.bf16.mxu0 0
      %1706 = vmatpush1.bf16.msra.mxu0 0
      %1707 = vmatprep.subr.bf16.mxu0 %v1699
      %1708 = vmatpush1.bf16.msra.mxu0 %v1696
      %1709 = vmatprep.subr.bf16.mxu0 %v1681
      %1710 = vmatpush1.bf16.msra.mxu0 %v1680
      %1711 = vmatprep.subr.bf16.mxu0 %v1679
      %1712 = vmatpush1.bf16.msra.mxu0 %v1678
      %1713 = vmatprep.subr.bf16.mxu0 %v1677
      %1714 = vmatpush1.bf16.msra.mxu0 %v1676
      %1715 = vmatprep.subr.bf16.mxu0 %v1675
      %1716 = vmatpush1.bf16.msra.mxu0 %v1674
      %1717 = vmatprep.subr.bf16.mxu0 0
      %1718 = vmatpush2.bf16.msra.mxu0 0
      %1719 = vmatprep.subr.bf16.mxu0 0
      %1720 = vmatpush2.bf16.msra.mxu0 0
      %1721 = vmatprep.subr.bf16.mxu0 0
      %1722 = vmatpush2.bf16.msra.mxu0 0
      %1723 = vmatprep.subr.bf16.mxu0 0
      %1724 = vmatpush2.bf16.msra.mxu0 0
      %1725 = vmatprep.subr.bf16.mxu0 0
      %1726 = vmatpush2.bf16.msra.mxu0 0
      %1727 = vmatprep.subr.bf16.mxu0 0
      %1728 = vmatpush2.bf16.msra.mxu0 0
      %1729 = vmatprep.subr.bf16.mxu0 0
      %1730 = vmatpush2.bf16.msra.mxu0 0
      %1731 = vmatprep.subr.bf16.mxu0 0
      %1732 = vmatpush2.bf16.msra.mxu0 0
      %1733 = vmatprep.mubr.bf16.mxu0 0
      %1734 = vmatmul.mubr.bf16.gmra.mxu0 %v1693
      %v1735 = vpop.f32.mrf.mxu0
      %v1736 = vadd.f32 %v1645, %v1735
      %v1737 = vpop.f32.mrf.mxu0
      %v1738 = vadd.f32 %v1645, %v1737
      %v1739 = vpop.f32.mrf.mxu0
      %v1740 = vpop.f32.mrf.mxu0
      %1741 = vdwg.mxu0
      %1742 = vst [vmem:[%s305 + $0x10] sm:$0xff] %v720
      %1743 = vst [vmem:[%s305 + $0x18] sm:$0xff] %v722
      %1744 = vst [vmem:[%s305 + $0x20] sm:$0xff] %v1462
      %1745 = vst [vmem:[%s305 + $0x28] sm:$0xff] %v1464
      %1746 = vst [vmem:[%s305 + $0x30] sm:$0xff] %v1736
      %1747 = vst [vmem:[%s305 + $0x38] sm:$0xff] %v1738
      %1748 = vst [vmem:[%s305 + $0x40] sm:$0xff] %v734
      %1749 = vst [vmem:[%s305 + $0x48] sm:$0xff] %v736
      %v1750 = vld [vmem:[%s305] sm:$0xff]
      %v1751 = vld [vmem:[%s305 + $0x8] sm:$0xff]
      %v1752 = vld [vmem:[%s305 + $0x10] sm:$0xff]
      %v1753 = vld [vmem:[%s305 + $0x18] sm:$0xff]
      %v1754 = vld [vmem:[%s305 + $0x20] sm:$0xff]
      %v1755 = vld [vmem:[%s305 + $0x28] sm:$0xff]
      %v1756 = vld [vmem:[%s305 + $0x30] sm:$0xff]
      %v1757 = vld [vmem:[%s305 + $0x38] sm:$0xff]
      %v1758 = vld [vmem:[%s305 + $0x40] sm:$0xff]
      %v1759 = vld [vmem:[%s305 + $0x48] sm:$0xff]
      %1760 = vrot.lane.b32.xlu0 %v1750, 17
      %v1761 = vpop.permute.xlu0 %1760
      %1762 = vrot.lane.b32.xlu0 %v1752, 17
      %v1763 = vpop.permute.xlu0 %1762
      %1764 = vrot.lane.b32.xlu0 %v1754, 17
      %v1765 = vpop.permute.xlu0 %1764
      %1766 = vrot.lane.b32.xlu0 %v1756, 17
      %v1767 = vpop.permute.xlu0 %1766
      %1768 = vrot.lane.b32.xlu0 %v1758, 17
      %v1769 = vpop.permute.xlu0 %1768
      %1770 = vrot.lane.b32.xlu0 %v1751, 17
      %v1771 = vpop.permute.xlu0 %1770
      %1772 = vrot.lane.b32.xlu0 %v1753, 17
      %v1773 = vpop.permute.xlu0 %1772
      %1774 = vrot.lane.b32.xlu0 %v1755, 17
      %v1775 = vpop.permute.xlu0 %1774
      %1776 = vrot.lane.b32.xlu0 %v1757, 17
      %v1777 = vpop.permute.xlu0 %1776
      %1778 = vrot.lane.b32.xlu0 %v1759, 17
      %v1779 = vpop.permute.xlu0 %1778
      %v1780 = vsel %vm392, %v1761, %v1771
      %v1781 = vsel %vm392, %v1763, %v1773
      %v1782 = vsel %vm392, %v1765, %v1775
      %v1783 = vsel %vm392, %v1767, %v1777
      %v1784 = vsel %vm392, %v1769, %v1779
      %v1785 = vsel %vm392, %v1771, %v1761
      %v1786 = vsel %vm392, %v1773, %v1763
      %v1787 = vsel %vm392, %v1775, %v1765
      %v1788 = vsel %vm392, %v1777, %v1767
      %v1789 = vsel %vm392, %v1779, %v1769
      %v1790 = vsel %vm397, %v1785, -inf
      %v1791 = vsel %vm398, %v1780, -inf
      %v1792 = vsel %vm397, %v1786, -inf
      %v1793 = vsel %vm398, %v1781, -inf
      %v1794 = vsel %vm397, %v1787, -inf
      %v1795 = vsel %vm398, %v1782, -inf
      %v1796 = vsel %vm397, %v1788, -inf
      %v1797 = vsel %vm398, %v1783, -inf
      %v1798 = vsel %vm397, %v1789, -inf
      %v1799 = vsel %vm398, %v1784, -inf
      %v1800 = vmax.f32 %v1750, %v1790
      %v1801 = vmax.f32 %v1751, %v1791
      %v1802 = vmax.f32 %v1752, %v1792
      %v1803 = vmax.f32 %v1753, %v1793
      %v1804 = vmax.f32 %v1754, %v1794
      %v1805 = vmax.f32 %v1755, %v1795
      %v1806 = vmax.f32 %v1756, %v1796
      %v1807 = vmax.f32 %v1757, %v1797
      %v1808 = vmax.f32 %v1758, %v1798
      %v1809 = vmax.f32 %v1759, %v1799
      %1810 = vrot.lane.b32.xlu0 %v1750, 16
      %v1811 = vpop.permute.xlu0 %1810
      %1812 = vrot.lane.b32.xlu0 %v1752, 16
      %v1813 = vpop.permute.xlu0 %1812
      %1814 = vrot.lane.b32.xlu0 %v1754, 16
      %v1815 = vpop.permute.xlu0 %1814
      %1816 = vrot.lane.b32.xlu0 %v1756, 16
      %v1817 = vpop.permute.xlu0 %1816
      %1818 = vrot.lane.b32.xlu0 %v1758, 16
      %v1819 = vpop.permute.xlu0 %1818
      %1820 = vrot.lane.b32.xlu0 %v1751, 16
      %v1821 = vpop.permute.xlu0 %1820
      %1822 = vrot.lane.b32.xlu0 %v1753, 16
      %v1823 = vpop.permute.xlu0 %1822
      %1824 = vrot.lane.b32.xlu0 %v1755, 16
      %v1825 = vpop.permute.xlu0 %1824
      %1826 = vrot.lane.b32.xlu0 %v1757, 16
      %v1827 = vpop.permute.xlu0 %1826
      %1828 = vrot.lane.b32.xlu0 %v1759, 16
      %v1829 = vpop.permute.xlu0 %1828
      %v1830 = vsel %vm407, %v1811, %v1821
      %v1831 = vsel %vm407, %v1813, %v1823
      %v1832 = vsel %vm407, %v1815, %v1825
      %v1833 = vsel %vm407, %v1817, %v1827
      %v1834 = vsel %vm407, %v1819, %v1829
      %v1835 = vsel %vm407, %v1821, %v1811
      %v1836 = vsel %vm407, %v1823, %v1813
      %v1837 = vsel %vm407, %v1825, %v1815
      %v1838 = vsel %vm407, %v1827, %v1817
      %v1839 = vsel %vm407, %v1829, %v1819
      %v1840 = vsel %vm412, %v1835, -inf
      %v1841 = vsel %vm413, %v1830, -inf
      %v1842 = vsel %vm412, %v1836, -inf
      %v1843 = vsel %vm413, %v1831, -inf
      %v1844 = vsel %vm412, %v1837, -inf
      %v1845 = vsel %vm413, %v1832, -inf
      %v1846 = vsel %vm412, %v1838, -inf
      %v1847 = vsel %vm413, %v1833, -inf
      %v1848 = vsel %vm412, %v1839, -inf
      %v1849 = vsel %vm413, %v1834, -inf
      %v1850 = vmax.f32 %v1800, %v1840
      %v1851 = vmax.f32 %v1801, %v1841
      %v1852 = vmax.f32 %v1802, %v1842
      %v1853 = vmax.f32 %v1803, %v1843
      %v1854 = vmax.f32 %v1804, %v1844
      %v1855 = vmax.f32 %v1805, %v1845
      %v1856 = vmax.f32 %v1806, %v1846
      %v1857 = vmax.f32 %v1807, %v1847
      %v1858 = vmax.f32 %v1808, %v1848
      %v1859 = vmax.f32 %v1809, %v1849
      %1860 = vrot.lane.b32.xlu0 %v1750, 15
      %v1861 = vpop.permute.xlu0 %1860
      %1862 = vrot.lane.b32.xlu0 %v1752, 15
      %v1863 = vpop.permute.xlu0 %1862
      %1864 = vrot.lane.b32.xlu0 %v1754, 15
      %v1865 = vpop.permute.xlu0 %1864
      %1866 = vrot.lane.b32.xlu0 %v1756, 15
      %v1867 = vpop.permute.xlu0 %1866
      %1868 = vrot.lane.b32.xlu0 %v1758, 15
      %v1869 = vpop.permute.xlu0 %1868
      %1870 = vrot.lane.b32.xlu0 %v1751, 15
      %v1871 = vpop.permute.xlu0 %1870
      %1872 = vrot.lane.b32.xlu0 %v1753, 15
      %v1873 = vpop.permute.xlu0 %1872
      %1874 = vrot.lane.b32.xlu0 %v1755, 15
      %v1875 = vpop.permute.xlu0 %1874
      %1876 = vrot.lane.b32.xlu0 %v1757, 15
      %v1877 = vpop.permute.xlu0 %1876
      %1878 = vrot.lane.b32.xlu0 %v1759, 15
      %v1879 = vpop.permute.xlu0 %1878
      %v1880 = vsel %vm422, %v1861, %v1871
      %v1881 = vsel %vm422, %v1863, %v1873
      %v1882 = vsel %vm422, %v1865, %v1875
      %v1883 = vsel %vm422, %v1867, %v1877
      %v1884 = vsel %vm422, %v1869, %v1879
      %v1885 = vsel %vm422, %v1871, %v1861
      %v1886 = vsel %vm422, %v1873, %v1863
      %v1887 = vsel %vm422, %v1875, %v1865
      %v1888 = vsel %vm422, %v1877, %v1867
      %v1889 = vsel %vm422, %v1879, %v1869
      %v1890 = vsel %vm427, %v1885, -inf
      %v1891 = vsel %vm428, %v1880, -inf
      %v1892 = vsel %vm427, %v1886, -inf
      %v1893 = vsel %vm428, %v1881, -inf
      %v1894 = vsel %vm427, %v1887, -inf
      %v1895 = vsel %vm428, %v1882, -inf
      %v1896 = vsel %vm427, %v1888, -inf
      %v1897 = vsel %vm428, %v1883, -inf
      %v1898 = vsel %vm427, %v1889, -inf
      %v1899 = vsel %vm428, %v1884, -inf
      %v1900 = vmax.f32 %v1850, %v1890
      %v1901 = vmax.f32 %v1851, %v1891
      %v1902 = vmax.f32 %v1852, %v1892
      %v1903 = vmax.f32 %v1853, %v1893
      %v1904 = vmax.f32 %v1854, %v1894
      %v1905 = vmax.f32 %v1855, %v1895
      %v1906 = vmax.f32 %v1856, %v1896
      %v1907 = vmax.f32 %v1857, %v1897
      %v1908 = vmax.f32 %v1858, %v1898
      %v1909 = vmax.f32 %v1859, %v1899
      %1910 = vrot.lane.b32.xlu0 %v1750, 1
      %v1911 = vpop.permute.xlu0 %1910
      %1912 = vrot.lane.b32.xlu0 %v1752, 1
      %v1913 = vpop.permute.xlu0 %1912
      %1914 = vrot.lane.b32.xlu0 %v1754, 1
      %v1915 = vpop.permute.xlu0 %1914
      %1916 = vrot.lane.b32.xlu0 %v1756, 1
      %v1917 = vpop.permute.xlu0 %1916
      %1918 = vrot.lane.b32.xlu0 %v1758, 1
      %v1919 = vpop.permute.xlu0 %1918
      %1920 = vrot.lane.b32.xlu0 %v1751, 1
      %v1921 = vpop.permute.xlu0 %1920
      %1922 = vrot.lane.b32.xlu0 %v1753, 1
      %v1923 = vpop.permute.xlu0 %1922
      %1924 = vrot.lane.b32.xlu0 %v1755, 1
      %v1925 = vpop.permute.xlu0 %1924
      %1926 = vrot.lane.b32.xlu0 %v1757, 1
      %v1927 = vpop.permute.xlu0 %1926
      %1928 = vrot.lane.b32.xlu0 %v1759, 1
      %v1929 = vpop.permute.xlu0 %1928
      %v1930 = vsel %vm437, %v1911, %v1921
      %v1931 = vsel %vm437, %v1913, %v1923
      %v1932 = vsel %vm437, %v1915, %v1925
      %v1933 = vsel %vm437, %v1917, %v1927
      %v1934 = vsel %vm437, %v1919, %v1929
      %v1935 = vsel %vm437, %v1921, %v1911
      %v1936 = vsel %vm437, %v1923, %v1913
      %v1937 = vsel %vm437, %v1925, %v1915
      %v1938 = vsel %vm437, %v1927, %v1917
      %v1939 = vsel %vm437, %v1929, %v1919
      %v1940 = vsel %vm442, %v1935, -inf
      %v1941 = vsel %vm443, %v1930, -inf
      %v1942 = vsel %vm442, %v1936, -inf
      %v1943 = vsel %vm443, %v1931, -inf
      %v1944 = vsel %vm442, %v1937, -inf
      %v1945 = vsel %vm443, %v1932, -inf
      %v1946 = vsel %vm442, %v1938, -inf
      %v1947 = vsel %vm443, %v1933, -inf
      %v1948 = vsel %vm442, %v1939, -inf
      %v1949 = vsel %vm443, %v1934, -inf
      %v1950 = vmax.f32 %v1900, %v1940
      %v1951 = vmax.f32 %v1901, %v1941
      %v1952 = vmax.f32 %v1902, %v1942
      %v1953 = vmax.f32 %v1903, %v1943
      %v1954 = vmax.f32 %v1904, %v1944
      %v1955 = vmax.f32 %v1905, %v1945
      %v1956 = vmax.f32 %v1906, %v1946
      %v1957 = vmax.f32 %v1907, %v1947
      %v1958 = vmax.f32 %v1908, %v1948
      %v1959 = vmax.f32 %v1909, %v1949
      %1960 = vrot.lane.b32.xlu0 %v1750, 127
      %v1961 = vpop.permute.xlu0 %1960
      %1962 = vrot.lane.b32.xlu0 %v1752, 127
      %v1963 = vpop.permute.xlu0 %1962
      %1964 = vrot.lane.b32.xlu0 %v1754, 127
      %v1965 = vpop.permute.xlu0 %1964
      %1966 = vrot.lane.b32.xlu0 %v1756, 127
      %v1967 = vpop.permute.xlu0 %1966
      %1968 = vrot.lane.b32.xlu0 %v1758, 127
      %v1969 = vpop.permute.xlu0 %1968
      %1970 = vrot.lane.b32.xlu0 %v1751, 127
      %v1971 = vpop.permute.xlu0 %1970
      %1972 = vrot.lane.b32.xlu0 %v1753, 127
      %v1973 = vpop.permute.xlu0 %1972
      %1974 = vrot.lane.b32.xlu0 %v1755, 127
      %v1975 = vpop.permute.xlu0 %1974
      %1976 = vrot.lane.b32.xlu0 %v1757, 127
      %v1977 = vpop.permute.xlu0 %1976
      %1978 = vrot.lane.b32.xlu0 %v1759, 127
      %v1979 = vpop.permute.xlu0 %1978
      %v1980 = vsel %vm452, %v1961, %v1971
      %v1981 = vsel %vm452, %v1963, %v1973
      %v1982 = vsel %vm452, %v1965, %v1975
      %v1983 = vsel %vm452, %v1967, %v1977
      %v1984 = vsel %vm452, %v1969, %v1979
      %v1985 = vsel %vm452, %v1971, %v1961
      %v1986 = vsel %vm452, %v1973, %v1963
      %v1987 = vsel %vm452, %v1975, %v1965
      %v1988 = vsel %vm452, %v1977, %v1967
      %v1989 = vsel %vm452, %v1979, %v1969
      %v1990 = vsel %vm457, %v1980, -inf
      %v1991 = vsel %vm458, %v1985, -inf
      %v1992 = vsel %vm457, %v1981, -inf
      %v1993 = vsel %vm458, %v1986, -inf
      %v1994 = vsel %vm457, %v1982, -inf
      %v1995 = vsel %vm458, %v1987, -inf
      %v1996 = vsel %vm457, %v1983, -inf
      %v1997 = vsel %vm458, %v1988, -inf
      %v1998 = vsel %vm457, %v1984, -inf
      %v1999 = vsel %vm458, %v1989, -inf
      %v2000 = vmax.f32 %v1950, %v1990
      %v2001 = vmax.f32 %v1951, %v1991
      %v2002 = vmax.f32 %v1952, %v1992
      %v2003 = vmax.f32 %v1953, %v1993
      %v2004 = vmax.f32 %v1954, %v1994
      %v2005 = vmax.f32 %v1955, %v1995
      %v2006 = vmax.f32 %v1956, %v1996
      %v2007 = vmax.f32 %v1957, %v1997
      %v2008 = vmax.f32 %v1958, %v1998
      %v2009 = vmax.f32 %v1959, %v1999
      %2010 = vrot.lane.b32.xlu0 %v1750, 113
      %v2011 = vpop.permute.xlu0 %2010
      %2012 = vrot.lane.b32.xlu0 %v1752, 113
      %v2013 = vpop.permute.xlu0 %2012
      %2014 = vrot.lane.b32.xlu0 %v1754, 113
      %v2015 = vpop.permute.xlu0 %2014
      %2016 = vrot.lane.b32.xlu0 %v1756, 113
      %v2017 = vpop.permute.xlu0 %2016
      %2018 = vrot.lane.b32.xlu0 %v1758, 113
      %v2019 = vpop.permute.xlu0 %2018
      %2020 = vrot.lane.b32.xlu0 %v1751, 113
      %v2021 = vpop.permute.xlu0 %2020
      %2022 = vrot.lane.b32.xlu0 %v1753, 113
      %v2023 = vpop.permute.xlu0 %2022
      %2024 = vrot.lane.b32.xlu0 %v1755, 113
      %v2025 = vpop.permute.xlu0 %2024
      %2026 = vrot.lane.b32.xlu0 %v1757, 113
      %v2027 = vpop.permute.xlu0 %2026
      %2028 = vrot.lane.b32.xlu0 %v1759, 113
      %v2029 = vpop.permute.xlu0 %2028
      %v2030 = vsel %vm467, %v2011, %v2021
      %v2031 = vsel %vm467, %v2013, %v2023
      %v2032 = vsel %vm467, %v2015, %v2025
      %v2033 = vsel %vm467, %v2017, %v2027
      %v2034 = vsel %vm467, %v2019, %v2029
      %v2035 = vsel %vm467, %v2021, %v2011
      %v2036 = vsel %vm467, %v2023, %v2013
      %v2037 = vsel %vm467, %v2025, %v2015
      %v2038 = vsel %vm467, %v2027, %v2017
      %v2039 = vsel %vm467, %v2029, %v2019
      %v2040 = vsel %vm472, %v2030, -inf
      %v2041 = vsel %vm473, %v2035, -inf
      %v2042 = vsel %vm472, %v2031, -inf
      %v2043 = vsel %vm473, %v2036, -inf
      %v2044 = vsel %vm472, %v2032, -inf
      %v2045 = vsel %vm473, %v2037, -inf
      %v2046 = vsel %vm472, %v2033, -inf
      %v2047 = vsel %vm473, %v2038, -inf
      %v2048 = vsel %vm472, %v2034, -inf
      %v2049 = vsel %vm473, %v2039, -inf
      %v2050 = vmax.f32 %v2000, %v2040
      %v2051 = vmax.f32 %v2001, %v2041
      %v2052 = vmax.f32 %v2002, %v2042
      %v2053 = vmax.f32 %v2003, %v2043
      %v2054 = vmax.f32 %v2004, %v2044
      %v2055 = vmax.f32 %v2005, %v2045
      %v2056 = vmax.f32 %v2006, %v2046
      %v2057 = vmax.f32 %v2007, %v2047
      %v2058 = vmax.f32 %v2008, %v2048
      %v2059 = vmax.f32 %v2009, %v2049
      %2060 = vrot.lane.b32.xlu0 %v1750, 112
      %v2061 = vpop.permute.xlu0 %2060
      %2062 = vrot.lane.b32.xlu0 %v1752, 112
      %v2063 = vpop.permute.xlu0 %2062
      %2064 = vrot.lane.b32.xlu0 %v1754, 112
      %v2065 = vpop.permute.xlu0 %2064
      %2066 = vrot.lane.b32.xlu0 %v1756, 112
      %v2067 = vpop.permute.xlu0 %2066
      %2068 = vrot.lane.b32.xlu0 %v1758, 112
      %v2069 = vpop.permute.xlu0 %2068
      %2070 = vrot.lane.b32.xlu0 %v1751, 112
      %v2071 = vpop.permute.xlu0 %2070
      %2072 = vrot.lane.b32.xlu0 %v1753, 112
      %v2073 = vpop.permute.xlu0 %2072
      %2074 = vrot.lane.b32.xlu0 %v1755, 112
      %v2075 = vpop.permute.xlu0 %2074
      %2076 = vrot.lane.b32.xlu0 %v1757, 112
      %v2077 = vpop.permute.xlu0 %2076
      %2078 = vrot.lane.b32.xlu0 %v1759, 112
      %v2079 = vpop.permute.xlu0 %2078
      %v2080 = vsel %vm482, %v2061, %v2071
      %v2081 = vsel %vm482, %v2063, %v2073
      %v2082 = vsel %vm482, %v2065, %v2075
      %v2083 = vsel %vm482, %v2067, %v2077
      %v2084 = vsel %vm482, %v2069, %v2079
      %v2085 = vsel %vm482, %v2071, %v2061
      %v2086 = vsel %vm482, %v2073, %v2063
      %v2087 = vsel %vm482, %v2075, %v2065
      %v2088 = vsel %vm482, %v2077, %v2067
      %v2089 = vsel %vm482, %v2079, %v2069
      %v2090 = vsel %vm487, %v2080, -inf
      %v2091 = vsel %vm488, %v2085, -inf
      %v2092 = vsel %vm487, %v2081, -inf
      %v2093 = vsel %vm488, %v2086, -inf
      %v2094 = vsel %vm487, %v2082, -inf
      %v2095 = vsel %vm488, %v2087, -inf
      %v2096 = vsel %vm487, %v2083, -inf
      %v2097 = vsel %vm488, %v2088, -inf
      %v2098 = vsel %vm487, %v2084, -inf
      %v2099 = vsel %vm488, %v2089, -inf
      %v2100 = vmax.f32 %v2050, %v2090
      %v2101 = vmax.f32 %v2051, %v2091
      %v2102 = vmax.f32 %v2052, %v2092
      %v2103 = vmax.f32 %v2053, %v2093
      %v2104 = vmax.f32 %v2054, %v2094
      %v2105 = vmax.f32 %v2055, %v2095
      %v2106 = vmax.f32 %v2056, %v2096
      %v2107 = vmax.f32 %v2057, %v2097
      %v2108 = vmax.f32 %v2058, %v2098
      %v2109 = vmax.f32 %v2059, %v2099
      %2110 = vrot.lane.b32.xlu0 %v1750, 111
      %v2111 = vpop.permute.xlu0 %2110
      %2112 = vrot.lane.b32.xlu0 %v1752, 111
      %v2113 = vpop.permute.xlu0 %2112
      %2114 = vrot.lane.b32.xlu0 %v1754, 111
      %v2115 = vpop.permute.xlu0 %2114
      %2116 = vrot.lane.b32.xlu0 %v1756, 111
      %v2117 = vpop.permute.xlu0 %2116
      %2118 = vrot.lane.b32.xlu0 %v1758, 111
      %v2119 = vpop.permute.xlu0 %2118
      %2120 = vrot.lane.b32.xlu0 %v1751, 111
      %v2121 = vpop.permute.xlu0 %2120
      %2122 = vrot.lane.b32.xlu0 %v1753, 111
      %v2123 = vpop.permute.xlu0 %2122
      %2124 = vrot.lane.b32.xlu0 %v1755, 111
      %v2125 = vpop.permute.xlu0 %2124
      %2126 = vrot.lane.b32.xlu0 %v1757, 111
      %v2127 = vpop.permute.xlu0 %2126
      %2128 = vrot.lane.b32.xlu0 %v1759, 111
      %v2129 = vpop.permute.xlu0 %2128
      %v2130 = vsel %vm497, %v2111, %v2121
      %v2131 = vsel %vm497, %v2113, %v2123
      %v2132 = vsel %vm497, %v2115, %v2125
      %v2133 = vsel %vm497, %v2117, %v2127
      %v2134 = vsel %vm497, %v2119, %v2129
      %v2135 = vsel %vm497, %v2121, %v2111
      %v2136 = vsel %vm497, %v2123, %v2113
      %v2137 = vsel %vm497, %v2125, %v2115
      %v2138 = vsel %vm497, %v2127, %v2117
      %v2139 = vsel %vm497, %v2129, %v2119
      %v2140 = vsel %vm502, %v2130, -inf
      %v2141 = vsel %vm503, %v2135, -inf
      %v2142 = vsel %vm502, %v2131, -inf
      %v2143 = vsel %vm503, %v2136, -inf
      %v2144 = vsel %vm502, %v2132, -inf
      %v2145 = vsel %vm503, %v2137, -inf
      %v2146 = vsel %vm502, %v2133, -inf
      %v2147 = vsel %vm503, %v2138, -inf
      %v2148 = vsel %vm502, %v2134, -inf
      %v2149 = vsel %vm503, %v2139, -inf
      %v2150 = vmax.f32 %v2100, %v2140
      %v2151 = vmax.f32 %v2101, %v2141
      %v2152 = vmax.f32 %v2102, %v2142
      %v2153 = vmax.f32 %v2103, %v2143
      %v2154 = vmax.f32 %v2104, %v2144
      %v2155 = vmax.f32 %v2105, %v2145
      %v2156 = vmax.f32 %v2106, %v2146
      %v2157 = vmax.f32 %v2107, %v2147
      %v2158 = vmax.f32 %v2108, %v2148
      %v2159 = vmax.f32 %v2109, %v2149
      %v2160 = vld [vmem:[%s1 + $0x90] sm:$0xff]
      %v2161 = vld [vmem:[%s1 + $0x98] sm:$0xff]
      %v2162 = vld [vmem:[%s1 + $0xa0] sm:$0xff]
      %v2163 = vld [vmem:[%s1 + $0xa8] sm:$0xff]
      %v2164 = vld [vmem:[%s1 + $0xb0] sm:$0xff]
      %v2165 = vld [vmem:[%s1 + $0xb8] sm:$0xff]
      %v2166 = vld [vmem:[%s1 + $0xc0] sm:$0xff]
      %v2167 = vld [vmem:[%s1 + $0xc8] sm:$0xff]
      %v2168 = vld [vmem:[%s1 + $0xd0] sm:$0xff]
      %v2169 = vld [vmem:[%s1 + $0xd8] sm:$0xff]
      %2171 = vset.pattern.permute.xlu0 0
      %2172 = vperm.xlu0 %2171, %v2160
      %v2173 = vpop.permute.xlu0 %2172
      %2176 = vset.pattern.permute.xlu0 0
      %2177 = vperm.xlu0 %2176, %v2161
      %v2178 = vpop.permute.xlu0 %2177
      %2181 = vset.pattern.permute.xlu0 0
      %2182 = vperm.xlu0 %2181, %v2162
      %v2183 = vpop.permute.xlu0 %2182
      %2186 = vset.pattern.permute.xlu0 0
      %2187 = vperm.xlu0 %2186, %v2163
      %v2188 = vpop.permute.xlu0 %2187
      %2191 = vset.pattern.permute.xlu0 0
      %2192 = vperm.xlu0 %2191, %v2164
      %v2193 = vpop.permute.xlu0 %2192
      %v2195 = vmul.f32 %v1750, %v2173
      %v2196 = vmul.f32 %v1751, %v2173
      %v2197 = vmul.f32 %v1752, %v2178
      %v2198 = vmul.f32 %v1753, %v2178
      %v2199 = vmul.f32 %v1754, %v2183
      %v2200 = vmul.f32 %v1755, %v2183
      %v2201 = vmul.f32 %v1756, %v2188
      %v2202 = vmul.f32 %v1757, %v2188
      %v2203 = vmul.f32 %v1758, %v2193
      %v2204 = vmul.f32 %v1759, %v2193
      %2206 = vset.pattern.permute.xlu0 0
      %2207 = vperm.xlu0 %2206, %v2165
      %v2208 = vpop.permute.xlu0 %2207
      %2211 = vset.pattern.permute.xlu0 0
      %2212 = vperm.xlu0 %2211, %v2166
      %v2213 = vpop.permute.xlu0 %2212
      %2216 = vset.pattern.permute.xlu0 0
      %2217 = vperm.xlu0 %2216, %v2167
      %v2218 = vpop.permute.xlu0 %2217
      %2221 = vset.pattern.permute.xlu0 0
      %2222 = vperm.xlu0 %2221, %v2168
      %v2223 = vpop.permute.xlu0 %2222
      %2226 = vset.pattern.permute.xlu0 0
      %2227 = vperm.xlu0 %2226, %v2169
      %v2228 = vpop.permute.xlu0 %2227
      %v2230 = vadd.f32 %v2195, %v2208
      %v2231 = vadd.f32 %v2196, %v2208
      %v2232 = vadd.f32 %v2197, %v2213
      %v2233 = vadd.f32 %v2198, %v2213
      %v2234 = vadd.f32 %v2199, %v2218
      %v2235 = vadd.f32 %v2200, %v2218
      %v2236 = vadd.f32 %v2201, %v2223
      %v2237 = vadd.f32 %v2202, %v2223
      %v2238 = vadd.f32 %v2203, %v2228
      %v2239 = vadd.f32 %v2204, %v2228
      %v2240 = vmax.f32 %v2230, 0.0
      %v2241 = vmax.f32 %v2231, 0.0
      %v2242 = vmax.f32 %v2232, 0.0
      %v2243 = vmax.f32 %v2233, 0.0
      %v2244 = vmax.f32 %v2234, 0.0
      %v2245 = vmax.f32 %v2235, 0.0
      %v2246 = vmax.f32 %v2236, 0.0
      %v2247 = vmax.f32 %v2237, 0.0
      %v2248 = vmax.f32 %v2238, 0.0
      %v2249 = vmax.f32 %v2239, 0.0
      %v2250 = vpack.c.bf16 %v2242, %v2240
      %v2251 = vpack.c.bf16 %v2243, %v2241
      %v2252 = vpack.c.bf16 %v2246, %v2244
      %v2253 = vpack.c.bf16 %v2247, %v2245
      %v2254 = vpack.c.bf16 %v2248, %v2248
      %v2255 = vpack.c.bf16 %v2249, %v2249
      %v2262 = vunpack.c.l.b16 %v2250
      %v2263 = vunpack.c.l.b16 %v2251
      %v2264 = vunpack.c.h.b16 %v2250
      %v2265 = vunpack.c.h.b16 %v2251
      %v2266 = vunpack.c.l.b16 %v2252
      %v2267 = vunpack.c.l.b16 %v2253
      %v2268 = vunpack.c.h.b16 %v2252
      %v2269 = vunpack.c.h.b16 %v2253
      %v2270 = vunpack.c.l.b16 %v2254
      %v2271 = vunpack.c.l.b16 %v2255
      %v2272 = vpack.c.b16 %v2263, %v2262
      %v2273 = vpack.c.b16 %v2265, %v2264
      %v2274 = vpack.c.b16 %v2267, %v2266
      %v2275 = vpack.c.b16 %v2269, %v2268
      %v2276 = vpack.c.b16 %v2271, %v2270
      %2282 = vst [vmem:[#allocation2] sm:$0xff] %v2272
      %2283 = vst [vmem:[#allocation2 + $0x8] sm:$0xff] %v2273
      %2284 = vst [vmem:[#allocation2 + $0x10] sm:$0xff] %v2274
      %2285 = vst [vmem:[#allocation2 + $0x18] sm:$0xff] %v2275
      %2286 = vst [vmem:[#allocation2 + $0x20] sm:$0xff] %v2276
      %v2287 = vld [vmem:[%s1 + $0xe0] sm:$0xff]
      %v2288 = vld [vmem:[%s1 + $0xe8] sm:$0xff]
      %v2289 = vld [vmem:[%s1 + $0xf0] sm:$0xff]
      %v2290 = vld [vmem:[%s1 + $0xf8] sm:$0xff]
      %v2291 = vld [vmem:[%s1 + $0x100] sm:$0xff]
      %v2292 = vld [vmem:[%s1 + $0x108] sm:$0xff]
      %v2293 = vld [vmem:[%s1 + $0x110] sm:$0xff]
      %v2294 = vld [vmem:[%s1 + $0x118] sm:$0xff]
      %v2295 = vld [vmem:[%s1 + $0x120] sm:$0xff]
      %v2296 = vld [vmem:[%s1 + $0x128] sm:$0xff]
      %2298 = vset.pattern.permute.xlu0 0
      %2299 = vperm.xlu0 %2298, %v2287
      %v2300 = vpop.permute.xlu0 %2299
      %2303 = vset.pattern.permute.xlu0 0
      %2304 = vperm.xlu0 %2303, %v2288
      %v2305 = vpop.permute.xlu0 %2304
      %2308 = vset.pattern.permute.xlu0 0
      %2309 = vperm.xlu0 %2308, %v2289
      %v2310 = vpop.permute.xlu0 %2309
      %2313 = vset.pattern.permute.xlu0 0
      %2314 = vperm.xlu0 %2313, %v2290
      %v2315 = vpop.permute.xlu0 %2314
      %2318 = vset.pattern.permute.xlu0 0
      %2319 = vperm.xlu0 %2318, %v2291
      %v2320 = vpop.permute.xlu0 %2319
      %v2322 = vmul.f32 %v1750, %v2300
      %v2323 = vmul.f32 %v1751, %v2300
      %v2324 = vmul.f32 %v1752, %v2305
      %v2325 = vmul.f32 %v1753, %v2305
      %v2326 = vmul.f32 %v1754, %v2310
      %v2327 = vmul.f32 %v1755, %v2310
      %v2328 = vmul.f32 %v1756, %v2315
      %v2329 = vmul.f32 %v1757, %v2315
      %v2330 = vmul.f32 %v1758, %v2320
      %v2331 = vmul.f32 %v1759, %v2320
      %2333 = vset.pattern.permute.xlu0 0
      %2334 = vperm.xlu0 %2333, %v2292
      %v2335 = vpop.permute.xlu0 %2334
      %2338 = vset.pattern.permute.xlu0 0
      %2339 = vperm.xlu0 %2338, %v2293
      %v2340 = vpop.permute.xlu0 %2339
      %2343 = vset.pattern.permute.xlu0 0
      %2344 = vperm.xlu0 %2343, %v2294
      %v2345 = vpop.permute.xlu0 %2344
      %2348 = vset.pattern.permute.xlu0 0
      %2349 = vperm.xlu0 %2348, %v2295
      %v2350 = vpop.permute.xlu0 %2349
      %2353 = vset.pattern.permute.xlu0 0
      %2354 = vperm.xlu0 %2353, %v2296
      %v2355 = vpop.permute.xlu0 %2354
      %v2357 = vadd.f32 %v2322, %v2335
      %v2358 = vadd.f32 %v2323, %v2335
      %v2359 = vadd.f32 %v2324, %v2340
      %v2360 = vadd.f32 %v2325, %v2340
      %v2361 = vadd.f32 %v2326, %v2345
      %v2362 = vadd.f32 %v2327, %v2345
      %v2363 = vadd.f32 %v2328, %v2350
      %v2364 = vadd.f32 %v2329, %v2350
      %v2365 = vadd.f32 %v2330, %v2355
      %v2366 = vadd.f32 %v2331, %v2355
      %v2367 = vmax.f32 %v2357, 0.0
      %v2368 = vmax.f32 %v2358, 0.0
      %v2369 = vmax.f32 %v2359, 0.0
      %v2370 = vmax.f32 %v2360, 0.0
      %v2371 = vmax.f32 %v2361, 0.0
      %v2372 = vmax.f32 %v2362, 0.0
      %v2373 = vmax.f32 %v2363, 0.0
      %v2374 = vmax.f32 %v2364, 0.0
      %v2375 = vmax.f32 %v2365, 0.0
      %v2376 = vmax.f32 %v2366, 0.0
      %v2377 = vpack.c.bf16 %v2369, %v2367
      %v2378 = vpack.c.bf16 %v2370, %v2368
      %v2379 = vpack.c.bf16 %v2373, %v2371
      %v2380 = vpack.c.bf16 %v2374, %v2372
      %v2381 = vpack.c.bf16 %v2375, %v2375
      %v2382 = vpack.c.bf16 %v2376, %v2376
      %v2389 = vunpack.c.l.b16 %v2377
      %v2390 = vunpack.c.l.b16 %v2378
      %v2391 = vunpack.c.h.b16 %v2377
      %v2392 = vunpack.c.h.b16 %v2378
      %v2393 = vunpack.c.l.b16 %v2379
      %v2394 = vunpack.c.l.b16 %v2380
      %v2395 = vunpack.c.h.b16 %v2379
      %v2396 = vunpack.c.h.b16 %v2380
      %v2397 = vunpack.c.l.b16 %v2381
      %v2398 = vunpack.c.l.b16 %v2382
      %v2399 = vpack.c.b16 %v2390, %v2389
      %v2400 = vpack.c.b16 %v2392, %v2391
      %v2401 = vpack.c.b16 %v2394, %v2393
      %v2402 = vpack.c.b16 %v2396, %v2395
      %v2403 = vpack.c.b16 %v2398, %v2397
      %2409 = vst [vmem:[#allocation2 + $0x28] sm:$0xff] %v2399
      %2410 = vst [vmem:[#allocation2 + $0x30] sm:$0xff] %v2400
      %2411 = vst [vmem:[#allocation2 + $0x38] sm:$0xff] %v2401
      %2412 = vst [vmem:[#allocation2 + $0x40] sm:$0xff] %v2402
      %2413 = vst [vmem:[#allocation2 + $0x48] sm:$0xff] %v2403
      %v2414 = vld [vmem:[%s1 + $0x130] sm:$0xff]
      %v2415 = vld [vmem:[%s1 + $0x138] sm:$0xff]
      %v2416 = vld [vmem:[%s1 + $0x140] sm:$0xff]
      %v2417 = vld [vmem:[%s1 + $0x148] sm:$0xff]
      %v2418 = vld [vmem:[%s1 + $0x150] sm:$0xff]
      %v2419 = vld [vmem:[%s1 + $0x158] sm:$0xff]
      %v2420 = vld [vmem:[%s1 + $0x160] sm:$0xff]
      %v2421 = vld [vmem:[%s1 + $0x168] sm:$0xff]
      %v2422 = vld [vmem:[%s1 + $0x170] sm:$0xff]
      %v2423 = vld [vmem:[%s1 + $0x178] sm:$0xff]
      %2425 = vset.pattern.permute.xlu0 0
      %2426 = vperm.xlu0 %2425, %v2414
      %v2427 = vpop.permute.xlu0 %2426
      %2430 = vset.pattern.permute.xlu0 0
      %2431 = vperm.xlu0 %2430, %v2415
      %v2432 = vpop.permute.xlu0 %2431
      %2435 = vset.pattern.permute.xlu0 0
      %2436 = vperm.xlu0 %2435, %v2416
      %v2437 = vpop.permute.xlu0 %2436
      %2440 = vset.pattern.permute.xlu0 0
      %2441 = vperm.xlu0 %2440, %v2417
      %v2442 = vpop.permute.xlu0 %2441
      %2445 = vset.pattern.permute.xlu0 0
      %2446 = vperm.xlu0 %2445, %v2418
      %v2447 = vpop.permute.xlu0 %2446
      %v2449 = vmul.f32 %v1750, %v2427
      %v2450 = vmul.f32 %v1751, %v2427
      %v2451 = vmul.f32 %v1752, %v2432
      %v2452 = vmul.f32 %v1753, %v2432
      %v2453 = vmul.f32 %v1754, %v2437
      %v2454 = vmul.f32 %v1755, %v2437
      %v2455 = vmul.f32 %v1756, %v2442
      %v2456 = vmul.f32 %v1757, %v2442
      %v2457 = vmul.f32 %v1758, %v2447
      %v2458 = vmul.f32 %v1759, %v2447
      %2460 = vset.pattern.permute.xlu0 0
      %2461 = vperm.xlu0 %2460, %v2419
      %v2462 = vpop.permute.xlu0 %2461
      %2465 = vset.pattern.permute.xlu0 0
      %2466 = vperm.xlu0 %2465, %v2420
      %v2467 = vpop.permute.xlu0 %2466
      %2470 = vset.pattern.permute.xlu0 0
      %2471 = vperm.xlu0 %2470, %v2421
      %v2472 = vpop.permute.xlu0 %2471
      %2475 = vset.pattern.permute.xlu0 0
      %2476 = vperm.xlu0 %2475, %v2422
      %v2477 = vpop.permute.xlu0 %2476
      %2480 = vset.pattern.permute.xlu0 0
      %2481 = vperm.xlu0 %2480, %v2423
      %v2482 = vpop.permute.xlu0 %2481
      %v2484 = vadd.f32 %v2449, %v2462
      %v2485 = vadd.f32 %v2450, %v2462
      %v2486 = vadd.f32 %v2451, %v2467
      %v2487 = vadd.f32 %v2452, %v2467
      %v2488 = vadd.f32 %v2453, %v2472
      %v2489 = vadd.f32 %v2454, %v2472
      %v2490 = vadd.f32 %v2455, %v2477
      %v2491 = vadd.f32 %v2456, %v2477
      %v2492 = vadd.f32 %v2457, %v2482
      %v2493 = vadd.f32 %v2458, %v2482
      %v2494 = vmax.f32 %v2484, 0.0
      %v2495 = vmax.f32 %v2485, 0.0
      %v2496 = vmax.f32 %v2486, 0.0
      %v2497 = vmax.f32 %v2487, 0.0
      %v2498 = vmax.f32 %v2488, 0.0
      %v2499 = vmax.f32 %v2489, 0.0
      %v2500 = vmax.f32 %v2490, 0.0
      %v2501 = vmax.f32 %v2491, 0.0
      %v2502 = vmax.f32 %v2492, 0.0
      %v2503 = vmax.f32 %v2493, 0.0
      %v2504 = vpack.c.bf16 %v2496, %v2494
      %v2505 = vpack.c.bf16 %v2497, %v2495
      %v2506 = vpack.c.bf16 %v2500, %v2498
      %v2507 = vpack.c.bf16 %v2501, %v2499
      %v2508 = vpack.c.bf16 %v2502, %v2502
      %v2509 = vpack.c.bf16 %v2503, %v2503
      %v2516 = vunpack.c.l.b16 %v2504
      %v2517 = vunpack.c.l.b16 %v2505
      %v2518 = vunpack.c.h.b16 %v2504
      %v2519 = vunpack.c.h.b16 %v2505
      %v2520 = vunpack.c.l.b16 %v2506
      %v2521 = vunpack.c.l.b16 %v2507
      %v2522 = vunpack.c.h.b16 %v2506
      %v2523 = vunpack.c.h.b16 %v2507
      %v2524 = vunpack.c.l.b16 %v2508
      %v2525 = vunpack.c.l.b16 %v2509
      %v2526 = vpack.c.b16 %v2517, %v2516
      %v2527 = vpack.c.b16 %v2519, %v2518
      %v2528 = vpack.c.b16 %v2521, %v2520
      %v2529 = vpack.c.b16 %v2523, %v2522
      %v2530 = vpack.c.b16 %v2525, %v2524
      %2536 = vst [vmem:[#allocation2 + $0x50] sm:$0xff] %v2526
      %2537 = vst [vmem:[#allocation2 + $0x58] sm:$0xff] %v2527
      %2538 = vst [vmem:[#allocation2 + $0x60] sm:$0xff] %v2528
      %2539 = vst [vmem:[#allocation2 + $0x68] sm:$0xff] %v2529
      %2540 = vst [vmem:[#allocation2 + $0x70] sm:$0xff] %v2530
      %v2541 = vld [vmem:[%s1 + $0x180] sm:$0xff]
      %v2542 = vld [vmem:[%s1 + $0x188] sm:$0xff]
      %v2543 = vld [vmem:[%s1 + $0x190] sm:$0xff]
      %v2544 = vld [vmem:[%s1 + $0x198] sm:$0xff]
      %v2545 = vld [vmem:[%s1 + $0x1a0] sm:$0xff]
      %v2546 = vld [vmem:[%s1 + $0x1a8] sm:$0xff]
      %v2547 = vld [vmem:[%s1 + $0x1b0] sm:$0xff]
      %v2548 = vld [vmem:[%s1 + $0x1b8] sm:$0xff]
      %v2549 = vld [vmem:[%s1 + $0x1c0] sm:$0xff]
      %v2550 = vld [vmem:[%s1 + $0x1c8] sm:$0xff]
      %2552 = vset.pattern.permute.xlu0 0
      %2553 = vperm.xlu0 %2552, %v2541
      %v2554 = vpop.permute.xlu0 %2553
      %2557 = vset.pattern.permute.xlu0 0
      %2558 = vperm.xlu0 %2557, %v2542
      %v2559 = vpop.permute.xlu0 %2558
      %2562 = vset.pattern.permute.xlu0 0
      %2563 = vperm.xlu0 %2562, %v2543
      %v2564 = vpop.permute.xlu0 %2563
      %2567 = vset.pattern.permute.xlu0 0
      %2568 = vperm.xlu0 %2567, %v2544
      %v2569 = vpop.permute.xlu0 %2568
      %2572 = vset.pattern.permute.xlu0 0
      %2573 = vperm.xlu0 %2572, %v2545
      %v2574 = vpop.permute.xlu0 %2573
      %v2576 = vmul.f32 %v2150, %v2554
      %v2577 = vmul.f32 %v2151, %v2554
      %v2578 = vmul.f32 %v2152, %v2559
      %v2579 = vmul.f32 %v2153, %v2559
      %v2580 = vmul.f32 %v2154, %v2564
      %v2581 = vmul.f32 %v2155, %v2564
      %v2582 = vmul.f32 %v2156, %v2569
      %v2583 = vmul.f32 %v2157, %v2569
      %v2584 = vmul.f32 %v2158, %v2574
      %v2585 = vmul.f32 %v2159, %v2574
      %2587 = vset.pattern.permute.xlu0 0
      %2588 = vperm.xlu0 %2587, %v2546
      %v2589 = vpop.permute.xlu0 %2588
      %2592 = vset.pattern.permute.xlu0 0
      %2593 = vperm.xlu0 %2592, %v2547
      %v2594 = vpop.permute.xlu0 %2593
      %2597 = vset.pattern.permute.xlu0 0
      %2598 = vperm.xlu0 %2597, %v2548
      %v2599 = vpop.permute.xlu0 %2598
      %2602 = vset.pattern.permute.xlu0 0
      %2603 = vperm.xlu0 %2602, %v2549
      %v2604 = vpop.permute.xlu0 %2603
      %2607 = vset.pattern.permute.xlu0 0
      %2608 = vperm.xlu0 %2607, %v2550
      %v2609 = vpop.permute.xlu0 %2608
      %v2611 = vadd.f32 %v2576, %v2589
      %v2612 = vadd.f32 %v2577, %v2589
      %v2613 = vadd.f32 %v2578, %v2594
      %v2614 = vadd.f32 %v2579, %v2594
      %v2615 = vadd.f32 %v2580, %v2599
      %v2616 = vadd.f32 %v2581, %v2599
      %v2617 = vadd.f32 %v2582, %v2604
      %v2618 = vadd.f32 %v2583, %v2604
      %v2619 = vadd.f32 %v2584, %v2609
      %v2620 = vadd.f32 %v2585, %v2609
      %v2621 = vmax.f32 %v2611, 0.0
      %v2622 = vmax.f32 %v2612, 0.0
      %v2623 = vmax.f32 %v2613, 0.0
      %v2624 = vmax.f32 %v2614, 0.0
      %v2625 = vmax.f32 %v2615, 0.0
      %v2626 = vmax.f32 %v2616, 0.0
      %v2627 = vmax.f32 %v2617, 0.0
      %v2628 = vmax.f32 %v2618, 0.0
      %v2629 = vmax.f32 %v2619, 0.0
      %v2630 = vmax.f32 %v2620, 0.0
      %v2631 = vpack.c.bf16 %v2623, %v2621
      %v2632 = vpack.c.bf16 %v2624, %v2622
      %v2633 = vpack.c.bf16 %v2627, %v2625
      %v2634 = vpack.c.bf16 %v2628, %v2626
      %v2635 = vpack.c.bf16 %v2629, %v2629
      %v2636 = vpack.c.bf16 %v2630, %v2630
      %v2643 = vunpack.c.l.b16 %v2631
      %v2644 = vunpack.c.l.b16 %v2632
      %v2645 = vunpack.c.h.b16 %v2631
      %v2646 = vunpack.c.h.b16 %v2632
      %v2647 = vunpack.c.l.b16 %v2633
      %v2648 = vunpack.c.l.b16 %v2634
      %v2649 = vunpack.c.h.b16 %v2633
      %v2650 = vunpack.c.h.b16 %v2634
      %v2651 = vunpack.c.l.b16 %v2635
      %v2652 = vunpack.c.l.b16 %v2636
      %v2653 = vpack.c.b16 %v2644, %v2643
      %v2654 = vpack.c.b16 %v2646, %v2645
      %v2655 = vpack.c.b16 %v2648, %v2647
      %v2656 = vpack.c.b16 %v2650, %v2649
      %v2657 = vpack.c.b16 %v2652, %v2651
      %2663 = vst [vmem:[#allocation2 + $0x78] sm:$0xff] %v2653
      %2664 = vst [vmem:[#allocation2 + $0x80] sm:$0xff] %v2654
      %2665 = vst [vmem:[#allocation2 + $0x88] sm:$0xff] %v2655
      %2666 = vst [vmem:[#allocation2 + $0x90] sm:$0xff] %v2656
      %2667 = vst [vmem:[#allocation2 + $0x98] sm:$0xff] %v2657
      %v2668 = vld [vmem:[%s5] sm:$0xff]
      %v2669 = vld [vmem:[%s5 + $0x8] sm:$0xff]
      %v2670 = vld [vmem:[%s5 + $0x10] sm:$0xff]
      %v2671 = vld [vmem:[%s5 + $0x18] sm:$0xff]
      %v2672 = vld [vmem:[#allocation2] sm:$0xff]
      %v2673 = vld [vmem:[#allocation2 + $0x8] sm:$0xff]
      %v2674 = vld [vmem:[#allocation2 + $0x10] sm:$0xff]
      %v2675 = vld [vmem:[#allocation2 + $0x18] sm:$0xff]
      %v2676 = vld [vmem:[#allocation2 + $0x20] sm:$0xff]
      %v2677 = vld [vmem:[#allocation2 + $0x28] sm:$0xff]
      %v2678 = vld [vmem:[#allocation2 + $0x30] sm:$0xff]
      %v2679 = vld [vmem:[#allocation2 + $0x38] sm:$0xff]
      %v2680 = vld [vmem:[#allocation2 + $0x40] sm:$0xff]
      %v2681 = vld [vmem:[#allocation2 + $0x48] sm:$0xff]
      %v2682 = vld [vmem:[#allocation2 + $0x50] sm:$0xff]
      %v2683 = vld [vmem:[#allocation2 + $0x58] sm:$0xff]
      %v2684 = vld [vmem:[#allocation2 + $0x60] sm:$0xff]
      %v2685 = vld [vmem:[#allocation2 + $0x68] sm:$0xff]
      %v2686 = vld [vmem:[#allocation2 + $0x70] sm:$0xff]
      %v2687 = vld [vmem:[#allocation2 + $0x78] sm:$0xff]
      %v2688 = vld [vmem:[#allocation2 + $0x80] sm:$0xff]
      %v2689 = vld [vmem:[#allocation2 + $0x88] sm:$0xff]
      %v2690 = vld [vmem:[#allocation2 + $0x90] sm:$0xff]
      %v2691 = vld [vmem:[#allocation2 + $0x98] sm:$0xff]
      %v2692 = vld [vmem:[%s1 + $0x1d0] sm:$0xff]
      %v2693 = vld [vmem:[%s1 + $0x1d8] sm:$0xff]
      %v2694 = vld [vmem:[%s1 + $0x1e0] sm:$0xff]
      %v2695 = vld [vmem:[%s1 + $0x1e8] sm:$0xff]
      %2697 = vset.pattern.permute.xlu0 0
      %2698 = vperm.xlu0 %2697, %v2692
      %v2699 = vpop.permute.xlu0 %2698
      %2702 = vset.pattern.permute.xlu0 0
      %2703 = vperm.xlu0 %2702, %v2693
      %v2704 = vpop.permute.xlu0 %2703
      %2707 = vset.pattern.permute.xlu0 0
      %2708 = vperm.xlu0 %2707, %v2694
      %v2709 = vpop.permute.xlu0 %2708
      %2712 = vset.pattern.permute.xlu0 0
      %2713 = vperm.xlu0 %2712, %v2695
      %v2714 = vpop.permute.xlu0 %2713
      %v2720 = vunpack.c.l.b16 %v2668
      %v2721 = vunpack.c.h.b16 %v2668
      %v2722 = vunpack.c.l.b16 %v2669
      %v2723 = vunpack.c.h.b16 %v2669
      %v2724 = vunpack.c.l.b16 %v2670
      %v2725 = vunpack.c.h.b16 %v2670
      %v2726 = vunpack.c.l.b16 %v2671
      %v2727 = vunpack.c.h.b16 %v2671
      %v2728 = vpack.c.b16 %v2722, %v2720
      %v2729 = vpack.c.b16 %v2723, %v2721
      %v2730 = vpack.c.b16 %v2726, %v2724
      %v2731 = vpack.c.b16 %v2727, %v2725
      %v2754 = vunpack.c.l.b16 %v2672
      %v2755 = vunpack.c.h.b16 %v2672
      %v2756 = vunpack.c.l.b16 %v2673
      %v2757 = vunpack.c.h.b16 %v2673
      %v2758 = vunpack.c.l.b16 %v2674
      %v2759 = vunpack.c.h.b16 %v2674
      %v2760 = vunpack.c.l.b16 %v2675
      %v2761 = vunpack.c.h.b16 %v2675
      %v2762 = vunpack.c.l.b16 %v2676
      %v2763 = vunpack.c.h.b16 %v2676
      %v2764 = vunpack.c.l.b16 %v2677
      %v2765 = vunpack.c.h.b16 %v2677
      %v2766 = vunpack.c.l.b16 %v2678
      %v2767 = vunpack.c.h.b16 %v2678
      %v2768 = vunpack.c.l.b16 %v2679
      %v2769 = vunpack.c.h.b16 %v2679
      %v2770 = vunpack.c.l.b16 %v2680
      %v2771 = vunpack.c.h.b16 %v2680
      %v2772 = vunpack.c.l.b16 %v2681
      %v2773 = vunpack.c.h.b16 %v2681
      %v2774 = vunpack.c.l.b16 %v2682
      %v2775 = vunpack.c.h.b16 %v2682
      %v2776 = vunpack.c.l.b16 %v2683
      %v2777 = vunpack.c.h.b16 %v2683
      %v2778 = vunpack.c.l.b16 %v2684
      %v2779 = vunpack.c.h.b16 %v2684
      %v2780 = vunpack.c.l.b16 %v2685
      %v2781 = vunpack.c.h.b16 %v2685
      %v2782 = vunpack.c.l.b16 %v2686
      %v2783 = vunpack.c.h.b16 %v2686
      %v2784 = vunpack.c.l.b16 %v2687
      %v2785 = vunpack.c.h.b16 %v2687
      %v2786 = vunpack.c.l.b16 %v2688
      %v2787 = vunpack.c.h.b16 %v2688
      %v2788 = vunpack.c.l.b16 %v2689
      %v2789 = vunpack.c.h.b16 %v2689
      %v2790 = vunpack.c.l.b16 %v2690
      %v2791 = vunpack.c.h.b16 %v2690
      %v2792 = vunpack.c.l.b16 %v2691
      %v2793 = vunpack.c.h.b16 %v2691
      %v2794 = vpack.c.b16 %v2756, %v2754
      %v2795 = vpack.c.b16 %v2757, %v2755
      %v2796 = vpack.c.b16 %v2760, %v2758
      %v2797 = vpack.c.b16 %v2761, %v2759
      %v2798 = vpack.c.b16 %v2764, %v2762
      %v2799 = vpack.c.b16 %v2765, %v2763
      %v2800 = vpack.c.b16 %v2768, %v2766
      %v2801 = vpack.c.b16 %v2769, %v2767
      %v2802 = vpack.c.b16 %v2772, %v2770
      %v2803 = vpack.c.b16 %v2773, %v2771
      %v2804 = vpack.c.b16 %v2776, %v2774
      %v2805 = vpack.c.b16 %v2777, %v2775
      %v2806 = vpack.c.b16 %v2780, %v2778
      %v2807 = vpack.c.b16 %v2781, %v2779
      %v2808 = vpack.c.b16 %v2784, %v2782
      %v2809 = vpack.c.b16 %v2785, %v2783
      %v2810 = vpack.c.b16 %v2788, %v2786
      %v2811 = vpack.c.b16 %v2789, %v2787
      %v2812 = vpack.c.b16 %v2792, %v2790
      %v2813 = vpack.c.b16 %v2793, %v2791
      %v2835 = vsel %vm678, %v2729, 0
      %v2838 = vsel %vm678, %v2731, 0
      %2840 = vmatprep.subr.bf16.mxu0 %v2809
      %2841 = vmatpush1.bf16.msra.mxu0 %v2808
      %2842 = vmatprep.subr.bf16.mxu0 %v2807
      %2843 = vmatpush1.bf16.msra.mxu0 %v2806
      %2844 = vmatprep.subr.bf16.mxu0 %v2805
      %2845 = vmatpush1.bf16.msra.mxu0 %v2804
      %2846 = vmatprep.subr.bf16.mxu0 %v2803
      %2847 = vmatpush1.bf16.msra.mxu0 %v2802
      %2848 = vmatprep.subr.bf16.mxu0 %v2801
      %2849 = vmatpush1.bf16.msra.mxu0 %v2800
      %2850 = vmatprep.subr.bf16.mxu0 %v2799
      %2851 = vmatpush1.bf16.msra.mxu0 %v2798
      %2852 = vmatprep.subr.bf16.mxu0 %v2797
      %2853 = vmatpush1.bf16.msra.mxu0 %v2796
      %2854 = vmatprep.subr.bf16.mxu0 %v2795
      %2855 = vmatpush1.bf16.msra.mxu0 %v2794
      %2856 = vmatprep.subr.bf16.mxu0 0
      %2857 = vmatpush2.bf16.msra.mxu0 0
      %2858 = vmatprep.subr.bf16.mxu0 0
      %2859 = vmatpush2.bf16.msra.mxu0 0
      %2860 = vmatprep.subr.bf16.mxu0 0
      %2861 = vmatpush2.bf16.msra.mxu0 0
      %2862 = vmatprep.subr.bf16.mxu0 0
      %2863 = vmatpush2.bf16.msra.mxu0 0
      %2864 = vmatprep.subr.bf16.mxu0 0
      %2865 = vmatpush2.bf16.msra.mxu0 0
      %2866 = vmatprep.subr.bf16.mxu0 0
      %2867 = vmatpush2.bf16.msra.mxu0 0
      %2868 = vmatprep.subr.bf16.mxu0 %v2813
      %2869 = vmatpush2.bf16.msra.mxu0 %v2812
      %2870 = vmatprep.subr.bf16.mxu0 %v2811
      %2871 = vmatpush2.bf16.msra.mxu0 %v2810
      %2872 = vmatprep.mubr.bf16.mxu0 %v2835
      %2873 = vmatmul.mubr.bf16.gmra.mxu0 %v2728
      %v2874 = vpop.f32.mrf.mxu0
      %v2875 = vadd.f32 %v2699, %v2874
      %v2876 = vpop.f32.mrf.mxu0
      %v2877 = vadd.f32 %v2699, %v2876
      %v2878 = vpop.f32.mrf.mxu0
      %v2879 = vadd.f32 %v2704, %v2878
      %v2880 = vpop.f32.mrf.mxu0
      %v2881 = vadd.f32 %v2704, %v2880
      %2882 = vmatprep.mubr.bf16.mxu0 %v2838
      %2883 = vmatmul.mubr.bf16.gmra.mxu0 %v2730
      %v2884 = vpop.f32.mrf.mxu0
      %v2885 = vadd.f32 %v2709, %v2884
      %v2886 = vpop.f32.mrf.mxu0
      %v2887 = vadd.f32 %v2709, %v2886
      %v2888 = vpop.f32.mrf.mxu0
      %v2889 = vadd.f32 %v2714, %v2888
      %v2890 = vpop.f32.mrf.mxu0
      %v2891 = vadd.f32 %v2714, %v2890
      %2892 = vdwg.mxu0
      %v2893 = vld [vmem:[%s1 + $0x1f0] sm:$0xff]
      %2895 = vset.pattern.permute.xlu0 0
      %2896 = vperm.xlu0 %2895, %v2893
      %v2897 = vpop.permute.xlu0 %2896
      %v2899 = vmul.f32 %v2879, %v2897
      %v2900 = vmul.f32 %v2881, %v2897
      %v2901 = vld [vmem:[%s1 + $0x1f8] sm:$0xff]
      %2903 = vset.pattern.permute.xlu0 0
      %2904 = vperm.xlu0 %2903, %v2901
      %v2905 = vpop.permute.xlu0 %2904
      %v2907 = vadd.f32 %v2899, %v2905
      %v2908 = vadd.f32 %v2900, %v2905
      %v2909 = vmax.f32 %v2907, 0.0
      %v2910 = vmax.f32 %v2908, 0.0
      %2911 = vrot.lane.b32.xlu0 %v2909, 34
      %v2912 = vpop.permute.xlu0 %2911
      %2913 = vrot.lane.b32.xlu0 %v2910, 34
      %v2914 = vpop.permute.xlu0 %2913
      %v2915 = vsel %vm760, %v2912, %v2914
      %v2916 = vsel %vm760, %v2914, %v2912
      %v2917 = vsel %vm765, %v2916, 0.0
      %v2918 = vsel %vm766, %v2915, 0.0
      %v2919 = vpack.c.bf16 %v2917, %v2917
      %v2920 = vpack.c.bf16 %v2918, %v2918
      %v2923 = vunpack.c.l.b16 %v2919
      %v2924 = vunpack.c.l.b16 %v2920
      %v2925 = vpack.c.b16 %v2924, %v2923
      %2927 = vst [vmem:[#allocation2 + $0xa0] sm:$0xff] %v2925
      %2928 = vrot.lane.b32.xlu0 %v2909, 33
      %v2929 = vpop.permute.xlu0 %2928
      %2930 = vrot.lane.b32.xlu0 %v2910, 33
      %v2931 = vpop.permute.xlu0 %2930
      %v2932 = vsel %vm782, %v2929, %v2931
      %v2933 = vsel %vm782, %v2931, %v2929
      %v2934 = vsel %vm787, %v2933, 0.0
      %v2935 = vsel %vm788, %v2932, 0.0
      %v2936 = vpack.c.bf16 %v2934, %v2934
      %v2937 = vpack.c.bf16 %v2935, %v2935
      %v2940 = vunpack.c.l.b16 %v2936
      %v2941 = vunpack.c.l.b16 %v2937
      %v2942 = vpack.c.b16 %v2941, %v2940
      %2944 = vst [vmem:[#allocation2 + $0xa8] sm:$0xff] %v2942
      %2945 = vrot.lane.b32.xlu0 %v2909, 32
      %v2946 = vpop.permute.xlu0 %2945
      %2947 = vrot.lane.b32.xlu0 %v2910, 32
      %v2948 = vpop.permute.xlu0 %2947
      %v2949 = vsel %vm804, %v2946, %v2948
      %v2950 = vsel %vm804, %v2948, %v2946
      %v2951 = vsel %vm809, %v2950, 0.0
      %v2952 = vsel %vm810, %v2949, 0.0
      %v2953 = vpack.c.bf16 %v2951, %v2951
      %v2954 = vpack.c.bf16 %v2952, %v2952
      %v2957 = vunpack.c.l.b16 %v2953
      %v2958 = vunpack.c.l.b16 %v2954
      %v2959 = vpack.c.b16 %v2958, %v2957
      %2961 = vst [vmem:[#allocation2 + $0xb0] sm:$0xff] %v2959
      %2962 = vrot.lane.b32.xlu0 %v2909, 31
      %v2963 = vpop.permute.xlu0 %2962
      %2964 = vrot.lane.b32.xlu0 %v2910, 31
      %v2965 = vpop.permute.xlu0 %2964
      %v2966 = vsel %vm826, %v2963, %v2965
      %v2967 = vsel %vm826, %v2965, %v2963
      %v2968 = vsel %vm831, %v2967, 0.0
      %v2969 = vsel %vm832, %v2966, 0.0
      %v2970 = vpack.c.bf16 %v2968, %v2968
      %v2971 = vpack.c.bf16 %v2969, %v2969
      %v2974 = vunpack.c.l.b16 %v2970
      %v2975 = vunpack.c.l.b16 %v2971
      %v2976 = vpack.c.b16 %v2975, %v2974
      %2978 = vst [vmem:[#allocation2 + $0xb8] sm:$0xff] %v2976
      %2979 = vrot.lane.b32.xlu0 %v2909, 30
      %v2980 = vpop.permute.xlu0 %2979
      %2981 = vrot.lane.b32.xlu0 %v2910, 30
      %v2982 = vpop.permute.xlu0 %2981
      %v2983 = vsel %vm848, %v2980, %v2982
      %v2984 = vsel %vm848, %v2982, %v2980
      %v2985 = vsel %vm853, %v2984, 0.0
      %v2986 = vsel %vm854, %v2983, 0.0
      %v2987 = vpack.c.bf16 %v2985, %v2985
      %v2988 = vpack.c.bf16 %v2986, %v2986
      %v2991 = vunpack.c.l.b16 %v2987
      %v2992 = vunpack.c.l.b16 %v2988
      %v2993 = vpack.c.b16 %v2992, %v2991
      %2995 = vst [vmem:[#allocation2 + $0xc0] sm:$0xff] %v2993
      %2996 = vrot.lane.b32.xlu0 %v2909, 18
      %v2997 = vpop.permute.xlu0 %2996
      %2998 = vrot.lane.b32.xlu0 %v2910, 18
      %v2999 = vpop.permute.xlu0 %2998
      %v3000 = vsel %vm870, %v2997, %v2999
      %v3001 = vsel %vm870, %v2999, %v2997
      %v3002 = vsel %vm875, %v3001, 0.0
      %v3003 = vsel %vm876, %v3000, 0.0
      %v3004 = vpack.c.bf16 %v3002, %v3002
      %v3005 = vpack.c.bf16 %v3003, %v3003
      %v3008 = vunpack.c.l.b16 %v3004
      %v3009 = vunpack.c.l.b16 %v3005
      %v3010 = vpack.c.b16 %v3009, %v3008
      %3012 = vst [vmem:[#allocation2 + $0xc8] sm:$0xff] %v3010
      %3013 = vrot.lane.b32.xlu0 %v2909, 17
      %v3014 = vpop.permute.xlu0 %3013
      %3015 = vrot.lane.b32.xlu0 %v2910, 17
      %v3016 = vpop.permute.xlu0 %3015
      %v3017 = vsel %vm392, %v3014, %v3016
      %v3018 = vsel %vm392, %v3016, %v3014
      %v3019 = vsel %vm397, %v3018, 0.0
      %v3020 = vsel %vm398, %v3017, 0.0
      %v3021 = vpack.c.bf16 %v3019, %v3019
      %v3022 = vpack.c.bf16 %v3020, %v3020
      %v3025 = vunpack.c.l.b16 %v3021
      %v3026 = vunpack.c.l.b16 %v3022
      %v3027 = vpack.c.b16 %v3026, %v3025
      %3029 = vst [vmem:[#allocation2 + $0xd0] sm:$0xff] %v3027
      %3030 = vrot.lane.b32.xlu0 %v2909, 16
      %v3031 = vpop.permute.xlu0 %3030
      %3032 = vrot.lane.b32.xlu0 %v2910, 16
      %v3033 = vpop.permute.xlu0 %3032
      %v3034 = vsel %vm407, %v3031, %v3033
      %v3035 = vsel %vm407, %v3033, %v3031
      %v3036 = vsel %vm412, %v3035, 0.0
      %v3037 = vsel %vm413, %v3034, 0.0
      %v3038 = vpack.c.bf16 %v3036, %v3036
      %v3039 = vpack.c.bf16 %v3037, %v3037
      %v3042 = vunpack.c.l.b16 %v3038
      %v3043 = vunpack.c.l.b16 %v3039
      %v3044 = vpack.c.b16 %v3043, %v3042
      %3046 = vst [vmem:[#allocation2 + $0xd8] sm:$0xff] %v3044
      %3047 = vrot.lane.b32.xlu0 %v2909, 15
      %v3048 = vpop.permute.xlu0 %3047
      %3049 = vrot.lane.b32.xlu0 %v2910, 15
      %v3050 = vpop.permute.xlu0 %3049
      %v3051 = vsel %vm422, %v3048, %v3050
      %v3052 = vsel %vm422, %v3050, %v3048
      %v3053 = vsel %vm427, %v3052, 0.0
      %v3054 = vsel %vm428, %v3051, 0.0
      %v3055 = vpack.c.bf16 %v3053, %v3053
      %v3056 = vpack.c.bf16 %v3054, %v3054
      %v3059 = vunpack.c.l.b16 %v3055
      %v3060 = vunpack.c.l.b16 %v3056
      %v3061 = vpack.c.b16 %v3060, %v3059
      %3063 = vst [vmem:[#allocation2 + $0xe0] sm:$0xff] %v3061
      %3064 = vrot.lane.b32.xlu0 %v2909, 14
      %v3065 = vpop.permute.xlu0 %3064
      %3066 = vrot.lane.b32.xlu0 %v2910, 14
      %v3067 = vpop.permute.xlu0 %3066
      %v3068 = vsel %vm943, %v3065, %v3067
      %v3069 = vsel %vm943, %v3067, %v3065
      %v3070 = vsel %vm948, %v3069, 0.0
      %v3071 = vsel %vm949, %v3068, 0.0
      %v3072 = vpack.c.bf16 %v3070, %v3070
      %v3073 = vpack.c.bf16 %v3071, %v3071
      %v3076 = vunpack.c.l.b16 %v3072
      %v3077 = vunpack.c.l.b16 %v3073
      %v3078 = vpack.c.b16 %v3077, %v3076
      %3080 = vst [vmem:[#allocation2 + $0xe8] sm:$0xff] %v3078
      %3081 = vrot.lane.b32.xlu0 %v2909, 2
      %v3082 = vpop.permute.xlu0 %3081
      %3083 = vrot.lane.b32.xlu0 %v2910, 2
      %v3084 = vpop.permute.xlu0 %3083
      %v3085 = vsel %vm965, %v3082, %v3084
      %v3086 = vsel %vm965, %v3084, %v3082
      %v3087 = vsel %vm970, %v3086, 0.0
      %v3088 = vsel %vm971, %v3085, 0.0
      %v3089 = vpack.c.bf16 %v3087, %v3087
      %v3090 = vpack.c.bf16 %v3088, %v3088
      %v3093 = vunpack.c.l.b16 %v3089
      %v3094 = vunpack.c.l.b16 %v3090
      %v3095 = vpack.c.b16 %v3094, %v3093
      %3097 = vst [vmem:[#allocation2 + $0xf0] sm:$0xff] %v3095
      %3098 = vrot.lane.b32.xlu0 %v2909, 1
      %v3099 = vpop.permute.xlu0 %3098
      %3100 = vrot.lane.b32.xlu0 %v2910, 1
      %v3101 = vpop.permute.xlu0 %3100
      %v3102 = vsel %vm437, %v3099, %v3101
      %v3103 = vsel %vm437, %v3101, %v3099
      %v3104 = vsel %vm442, %v3103, 0.0
      %v3105 = vsel %vm443, %v3102, 0.0
      %v3106 = vpack.c.bf16 %v3104, %v3104
      %v3107 = vpack.c.bf16 %v3105, %v3105
      %v3110 = vunpack.c.l.b16 %v3106
      %v3111 = vunpack.c.l.b16 %v3107
      %v3112 = vpack.c.b16 %v3111, %v3110
      %3114 = vst [vmem:[#allocation2 + $0xf8] sm:$0xff] %v3112
      %v3115 = vpack.c.bf16 %v2909, %v2909
      %v3116 = vpack.c.bf16 %v2910, %v2910
      %v3119 = vunpack.c.l.b16 %v3115
      %v3120 = vunpack.c.l.b16 %v3116
      %v3121 = vpack.c.b16 %v3120, %v3119
      %3123 = vst [vmem:[#allocation2 + $0x100] sm:$0xff] %v3121
      %3124 = vrot.lane.b32.xlu0 %v2909, 127
      %v3125 = vpop.permute.xlu0 %3124
      %3126 = vrot.lane.b32.xlu0 %v2910, 127
      %v3127 = vpop.permute.xlu0 %3126
      %v3128 = vsel %vm452, %v3125, %v3127
      %v3129 = vsel %vm452, %v3127, %v3125
      %v3130 = vsel %vm457, %v3128, 0.0
      %v3131 = vsel %vm458, %v3129, 0.0
      %v3132 = vpack.c.bf16 %v3130, %v3130
      %v3133 = vpack.c.bf16 %v3131, %v3131
      %v3136 = vunpack.c.l.b16 %v3132
      %v3137 = vunpack.c.l.b16 %v3133
      %v3138 = vpack.c.b16 %v3137, %v3136
      %3140 = vst [vmem:[#allocation2 + $0x108] sm:$0xff] %v3138
      %3141 = vrot.lane.b32.xlu0 %v2909, 126
      %v3142 = vpop.permute.xlu0 %3141
      %3143 = vrot.lane.b32.xlu0 %v2910, 126
      %v3144 = vpop.permute.xlu0 %3143
      %v3145 = vsel %vm1030, %v3142, %v3144
      %v3146 = vsel %vm1030, %v3144, %v3142
      %v3147 = vsel %vm1035, %v3145, 0.0
      %v3148 = vsel %vm1036, %v3146, 0.0
      %v3149 = vpack.c.bf16 %v3147, %v3147
      %v3150 = vpack.c.bf16 %v3148, %v3148
      %v3153 = vunpack.c.l.b16 %v3149
      %v3154 = vunpack.c.l.b16 %v3150
      %v3155 = vpack.c.b16 %v3154, %v3153
      %3157 = vst [vmem:[#allocation2 + $0x110] sm:$0xff] %v3155
      %3158 = vrot.lane.b32.xlu0 %v2909, 114
      %v3159 = vpop.permute.xlu0 %3158
      %3160 = vrot.lane.b32.xlu0 %v2910, 114
      %v3161 = vpop.permute.xlu0 %3160
      %v3162 = vsel %vm1052, %v3159, %v3161
      %v3163 = vsel %vm1052, %v3161, %v3159
      %v3164 = vsel %vm1057, %v3162, 0.0
      %v3165 = vsel %vm1058, %v3163, 0.0
      %v3166 = vpack.c.bf16 %v3164, %v3164
      %v3167 = vpack.c.bf16 %v3165, %v3165
      %v3170 = vunpack.c.l.b16 %v3166
      %v3171 = vunpack.c.l.b16 %v3167
      %v3172 = vpack.c.b16 %v3171, %v3170
      %3174 = vst [vmem:[#allocation2 + $0x118] sm:$0xff] %v3172
      %3175 = vrot.lane.b32.xlu0 %v2909, 113
      %v3176 = vpop.permute.xlu0 %3175
      %3177 = vrot.lane.b32.xlu0 %v2910, 113
      %v3178 = vpop.permute.xlu0 %3177
      %v3179 = vsel %vm467, %v3176, %v3178
      %v3180 = vsel %vm467, %v3178, %v3176
      %v3181 = vsel %vm472, %v3179, 0.0
      %v3182 = vsel %vm473, %v3180, 0.0
      %v3183 = vpack.c.bf16 %v3181, %v3181
      %v3184 = vpack.c.bf16 %v3182, %v3182
      %v3187 = vunpack.c.l.b16 %v3183
      %v3188 = vunpack.c.l.b16 %v3184
      %v3189 = vpack.c.b16 %v3188, %v3187
      %3191 = vst [vmem:[#allocation2 + $0x120] sm:$0xff] %v3189
      %3192 = vrot.lane.b32.xlu0 %v2909, 112
      %v3193 = vpop.permute.xlu0 %3192
      %3194 = vrot.lane.b32.xlu0 %v2910, 112
      %v3195 = vpop.permute.xlu0 %3194
      %v3196 = vsel %vm482, %v3193, %v3195
      %v3197 = vsel %vm482, %v3195, %v3193
      %v3198 = vsel %vm487, %v3196, 0.0
      %v3199 = vsel %vm488, %v3197, 0.0
      %v3200 = vpack.c.bf16 %v3198, %v3198
      %v3201 = vpack.c.bf16 %v3199, %v3199
      %v3204 = vunpack.c.l.b16 %v3200
      %v3205 = vunpack.c.l.b16 %v3201
      %v3206 = vpack.c.b16 %v3205, %v3204
      %3208 = vst [vmem:[#allocation2 + $0x128] sm:$0xff] %v3206
      %3209 = vrot.lane.b32.xlu0 %v2909, 111
      %v3210 = vpop.permute.xlu0 %3209
      %3211 = vrot.lane.b32.xlu0 %v2910, 111
      %v3212 = vpop.permute.xlu0 %3211
      %v3213 = vsel %vm497, %v3210, %v3212
      %v3214 = vsel %vm497, %v3212, %v3210
      %v3215 = vsel %vm502, %v3213, 0.0
      %v3216 = vsel %vm503, %v3214, 0.0
      %v3217 = vpack.c.bf16 %v3215, %v3215
      %v3218 = vpack.c.bf16 %v3216, %v3216
      %v3221 = vunpack.c.l.b16 %v3217
      %v3222 = vunpack.c.l.b16 %v3218
      %v3223 = vpack.c.b16 %v3222, %v3221
      %3225 = vst [vmem:[#allocation2 + $0x130] sm:$0xff] %v3223
      %3226 = vrot.lane.b32.xlu0 %v2909, 110
      %v3227 = vpop.permute.xlu0 %3226
      %3228 = vrot.lane.b32.xlu0 %v2910, 110
      %v3229 = vpop.permute.xlu0 %3228
      %v3230 = vsel %vm1125, %v3227, %v3229
      %v3231 = vsel %vm1125, %v3229, %v3227
      %v3232 = vsel %vm1130, %v3230, 0.0
      %v3233 = vsel %vm1131, %v3231, 0.0
      %v3234 = vpack.c.bf16 %v3232, %v3232
      %v3235 = vpack.c.bf16 %v3233, %v3233
      %v3238 = vunpack.c.l.b16 %v3234
      %v3239 = vunpack.c.l.b16 %v3235
      %v3240 = vpack.c.b16 %v3239, %v3238
      %3242 = vst [vmem:[#allocation2 + $0x138] sm:$0xff] %v3240
      %3243 = vrot.lane.b32.xlu0 %v2909, 98
      %v3244 = vpop.permute.xlu0 %3243
      %3245 = vrot.lane.b32.xlu0 %v2910, 98
      %v3246 = vpop.permute.xlu0 %3245
      %v3247 = vsel %vm1147, %v3244, %v3246
      %v3248 = vsel %vm1147, %v3246, %v3244
      %v3249 = vsel %vm1152, %v3247, 0.0
      %v3250 = vsel %vm1153, %v3248, 0.0
      %v3251 = vpack.c.bf16 %v3249, %v3249
      %v3252 = vpack.c.bf16 %v3250, %v3250
      %v3255 = vunpack.c.l.b16 %v3251
      %v3256 = vunpack.c.l.b16 %v3252
      %v3257 = vpack.c.b16 %v3256, %v3255
      %3259 = vst [vmem:[#allocation2 + $0x140] sm:$0xff] %v3257
      %3260 = vrot.lane.b32.xlu0 %v2909, 97
      %v3261 = vpop.permute.xlu0 %3260
      %3262 = vrot.lane.b32.xlu0 %v2910, 97
      %v3263 = vpop.permute.xlu0 %3262
      %v3264 = vsel %vm1169, %v3261, %v3263
      %v3265 = vsel %vm1169, %v3263, %v3261
      %v3266 = vsel %vm1174, %v3264, 0.0
      %v3267 = vsel %vm1175, %v3265, 0.0
      %v3268 = vpack.c.bf16 %v3266, %v3266
      %v3269 = vpack.c.bf16 %v3267, %v3267
      %v3272 = vunpack.c.l.b16 %v3268
      %v3273 = vunpack.c.l.b16 %v3269
      %v3274 = vpack.c.b16 %v3273, %v3272
      %3276 = vst [vmem:[#allocation2 + $0x148] sm:$0xff] %v3274
      %3277 = vrot.lane.b32.xlu0 %v2909, 96
      %v3278 = vpop.permute.xlu0 %3277
      %3279 = vrot.lane.b32.xlu0 %v2910, 96
      %v3280 = vpop.permute.xlu0 %3279
      %v3281 = vsel %vm1191, %v3278, %v3280
      %v3282 = vsel %vm1191, %v3280, %v3278
      %v3283 = vsel %vm1196, %v3281, 0.0
      %v3284 = vsel %vm1197, %v3282, 0.0
      %v3285 = vpack.c.bf16 %v3283, %v3283
      %v3286 = vpack.c.bf16 %v3284, %v3284
      %v3289 = vunpack.c.l.b16 %v3285
      %v3290 = vunpack.c.l.b16 %v3286
      %v3291 = vpack.c.b16 %v3290, %v3289
      %3293 = vst [vmem:[#allocation2 + $0x150] sm:$0xff] %v3291
      %3294 = vrot.lane.b32.xlu0 %v2909, 95
      %v3295 = vpop.permute.xlu0 %3294
      %3296 = vrot.lane.b32.xlu0 %v2910, 95
      %v3297 = vpop.permute.xlu0 %3296
      %v3298 = vsel %vm1213, %v3295, %v3297
      %v3299 = vsel %vm1213, %v3297, %v3295
      %v3300 = vsel %vm1218, %v3298, 0.0
      %v3301 = vsel %vm1219, %v3299, 0.0
      %v3302 = vpack.c.bf16 %v3300, %v3300
      %v3303 = vpack.c.bf16 %v3301, %v3301
      %v3306 = vunpack.c.l.b16 %v3302
      %v3307 = vunpack.c.l.b16 %v3303
      %v3308 = vpack.c.b16 %v3307, %v3306
      %3310 = vst [vmem:[#allocation2 + $0x158] sm:$0xff] %v3308
      %3311 = vrot.lane.b32.xlu0 %v2909, 94
      %v3312 = vpop.permute.xlu0 %3311
      %3313 = vrot.lane.b32.xlu0 %v2910, 94
      %v3314 = vpop.permute.xlu0 %3313
      %v3315 = vsel %vm1235, %v3312, %v3314
      %v3316 = vsel %vm1235, %v3314, %v3312
      %v3317 = vsel %vm1240, %v3315, 0.0
      %v3318 = vsel %vm1241, %v3316, 0.0
      %v3319 = vpack.c.bf16 %v3317, %v3317
      %v3320 = vpack.c.bf16 %v3318, %v3318
      %v3323 = vunpack.c.l.b16 %v3319
      %v3324 = vunpack.c.l.b16 %v3320
      %v3325 = vpack.c.b16 %v3324, %v3323
      %3327 = vst [vmem:[#allocation2 + $0x160] sm:$0xff] %v3325
      %v3328 = vld [vmem:[%s6] sm:$0xff]
      %v3329 = vld [vmem:[#allocation2 + $0xa0] sm:$0xff]
      %v3330 = vld [vmem:[#allocation2 + $0xa8] sm:$0xff]
      %v3331 = vld [vmem:[#allocation2 + $0xb0] sm:$0xff]
      %v3332 = vld [vmem:[#allocation2 + $0xb8] sm:$0xff]
      %v3333 = vld [vmem:[#allocation2 + $0xc0] sm:$0xff]
      %v3334 = vld [vmem:[#allocation2 + $0xc8] sm:$0xff]
      %v3335 = vld [vmem:[#allocation2 + $0xd0] sm:$0xff]
      %v3336 = vld [vmem:[#allocation2 + $0xd8] sm:$0xff]
      %v3337 = vld [vmem:[#allocation2 + $0xe0] sm:$0xff]
      %v3338 = vld [vmem:[#allocation2 + $0xe8] sm:$0xff]
      %v3339 = vld [vmem:[#allocation2 + $0xf0] sm:$0xff]
      %v3340 = vld [vmem:[#allocation2 + $0xf8] sm:$0xff]
      %v3341 = vld [vmem:[#allocation2 + $0x100] sm:$0xff]
      %v3342 = vld [vmem:[#allocation2 + $0x108] sm:$0xff]
      %v3343 = vld [vmem:[#allocation2 + $0x110] sm:$0xff]
      %v3344 = vld [vmem:[#allocation2 + $0x118] sm:$0xff]
      %v3345 = vld [vmem:[#allocation2 + $0x120] sm:$0xff]
      %v3346 = vld [vmem:[#allocation2 + $0x128] sm:$0xff]
      %v3347 = vld [vmem:[#allocation2 + $0x130] sm:$0xff]
      %v3348 = vld [vmem:[#allocation2 + $0x138] sm:$0xff]
      %v3349 = vld [vmem:[#allocation2 + $0x140] sm:$0xff]
      %v3350 = vld [vmem:[#allocation2 + $0x148] sm:$0xff]
      %v3351 = vld [vmem:[#allocation2 + $0x150] sm:$0xff]
      %v3352 = vld [vmem:[#allocation2 + $0x158] sm:$0xff]
      %v3353 = vld [vmem:[#allocation2 + $0x160] sm:$0xff]
      %v3354 = vld [vmem:[%s1 + $0x200] sm:$0xff]
      %3356 = vset.pattern.permute.xlu0 0
      %3357 = vperm.xlu0 %3356, %v3354
      %v3358 = vpop.permute.xlu0 %3357
      %v3361 = vunpack.c.l.b16 %v3328
      %v3362 = vunpack.c.h.b16 %v3328
      %v3363 = vpack.c.b16 %v3361, %v3361
      %v3364 = vpack.c.b16 %v3362, %v3362
      %v3391 = vunpack.c.l.b16 %v3329
      %v3392 = vunpack.c.h.b16 %v3329
      %v3393 = vunpack.c.l.b16 %v3330
      %v3394 = vunpack.c.h.b16 %v3330
      %v3395 = vunpack.c.l.b16 %v3331
      %v3396 = vunpack.c.h.b16 %v3331
      %v3397 = vunpack.c.l.b16 %v3332
      %v3398 = vunpack.c.h.b16 %v3332
      %v3399 = vunpack.c.l.b16 %v3333
      %v3400 = vunpack.c.h.b16 %v3333
      %v3401 = vunpack.c.l.b16 %v3334
      %v3402 = vunpack.c.h.b16 %v3334
      %v3403 = vunpack.c.l.b16 %v3335
      %v3404 = vunpack.c.h.b16 %v3335
      %v3405 = vunpack.c.l.b16 %v3336
      %v3406 = vunpack.c.h.b16 %v3336
      %v3407 = vunpack.c.l.b16 %v3337
      %v3408 = vunpack.c.h.b16 %v3337
      %v3409 = vunpack.c.l.b16 %v3338
      %v3410 = vunpack.c.h.b16 %v3338
      %v3411 = vunpack.c.l.b16 %v3339
      %v3412 = vunpack.c.h.b16 %v3339
      %v3413 = vunpack.c.l.b16 %v3340
      %v3414 = vunpack.c.h.b16 %v3340
      %v3415 = vunpack.c.l.b16 %v3341
      %v3416 = vunpack.c.h.b16 %v3341
      %v3417 = vunpack.c.l.b16 %v3342
      %v3418 = vunpack.c.h.b16 %v3342
      %v3419 = vunpack.c.l.b16 %v3343
      %v3420 = vunpack.c.h.b16 %v3343
      %v3421 = vunpack.c.l.b16 %v3344
      %v3422 = vunpack.c.h.b16 %v3344
      %v3423 = vunpack.c.l.b16 %v3345
      %v3424 = vunpack.c.h.b16 %v3345
      %v3425 = vunpack.c.l.b16 %v3346
      %v3426 = vunpack.c.h.b16 %v3346
      %v3427 = vunpack.c.l.b16 %v3347
      %v3428 = vunpack.c.h.b16 %v3347
      %v3429 = vunpack.c.l.b16 %v3348
      %v3430 = vunpack.c.h.b16 %v3348
      %v3431 = vunpack.c.l.b16 %v3349
      %v3432 = vunpack.c.h.b16 %v3349
      %v3433 = vunpack.c.l.b16 %v3350
      %v3434 = vunpack.c.h.b16 %v3350
      %v3435 = vunpack.c.l.b16 %v3351
      %v3436 = vunpack.c.h.b16 %v3351
      %v3437 = vunpack.c.l.b16 %v3352
      %v3438 = vunpack.c.h.b16 %v3352
      %v3439 = vunpack.c.l.b16 %v3353
      %v3440 = vunpack.c.h.b16 %v3353
      %v3441 = vpack.c.b16 %v3393, %v3391
      %v3442 = vpack.c.b16 %v3394, %v3392
      %v3443 = vpack.c.b16 %v3397, %v3395
      %v3444 = vpack.c.b16 %v3398, %v3396
      %v3445 = vpack.c.b16 %v3401, %v3399
      %v3446 = vpack.c.b16 %v3402, %v3400
      %v3447 = vpack.c.b16 %v3405, %v3403
      %v3448 = vpack.c.b16 %v3406, %v3404
      %v3449 = vpack.c.b16 %v3409, %v3407
      %v3450 = vpack.c.b16 %v3410, %v3408
      %v3451 = vpack.c.b16 %v3413, %v3411
      %v3452 = vpack.c.b16 %v3414, %v3412
      %v3453 = vpack.c.b16 %v3417, %v3415
      %v3454 = vpack.c.b16 %v3418, %v3416
      %v3455 = vpack.c.b16 %v3421, %v3419
      %v3456 = vpack.c.b16 %v3422, %v3420
      %v3457 = vpack.c.b16 %v3425, %v3423
      %v3458 = vpack.c.b16 %v3426, %v3424
      %v3459 = vpack.c.b16 %v3429, %v3427
      %v3460 = vpack.c.b16 %v3430, %v3428
      %v3461 = vpack.c.b16 %v3433, %v3431
      %v3462 = vpack.c.b16 %v3434, %v3432
      %v3463 = vpack.c.b16 %v3437, %v3435
      %v3464 = vpack.c.b16 %v3438, %v3436
      %v3465 = vpack.c.b16 %v3439, %v3439
      %v3466 = vpack.c.b16 %v3440, %v3440
      %v3492 = vsel %vm1416, %v3364, 0
      %v3495 = vsel %vm1420, %v3465, 0
      %v3498 = vsel %vm1420, %v3466, 0
      %3500 = vmatprep.subr.bf16.mxu0 %v3456
      %3501 = vmatpush1.bf16.msra.mxu0 %v3455
      %3502 = vmatprep.subr.bf16.mxu0 %v3454
      %3503 = vmatpush1.bf16.msra.mxu0 %v3453
      %3504 = vmatprep.subr.bf16.mxu0 %v3452
      %3505 = vmatpush1.bf16.msra.mxu0 %v3451
      %3506 = vmatprep.subr.bf16.mxu0 %v3450
      %3507 = vmatpush1.bf16.msra.mxu0 %v3449
      %3508 = vmatprep.subr.bf16.mxu0 %v3448
      %3509 = vmatpush1.bf16.msra.mxu0 %v3447
      %3510 = vmatprep.subr.bf16.mxu0 %v3446
      %3511 = vmatpush1.bf16.msra.mxu0 %v3445
      %3512 = vmatprep.subr.bf16.mxu0 %v3444
      %3513 = vmatpush1.bf16.msra.mxu0 %v3443
      %3514 = vmatprep.subr.bf16.mxu0 %v3442
      %3515 = vmatpush1.bf16.msra.mxu0 %v3441
      %3516 = vmatprep.subr.bf16.mxu0 0
      %3517 = vmatpush2.bf16.msra.mxu0 0
      %3518 = vmatprep.subr.bf16.mxu0 0
      %3519 = vmatpush2.bf16.msra.mxu0 0
      %3520 = vmatprep.subr.bf16.mxu0 0
      %3521 = vmatpush2.bf16.msra.mxu0 0
      %3522 = vmatprep.subr.bf16.mxu0 %v3498
      %3523 = vmatpush2.bf16.msra.mxu0 %v3495
      %3524 = vmatprep.subr.bf16.mxu0 %v3464
      %3525 = vmatpush2.bf16.msra.mxu0 %v3463
      %3526 = vmatprep.subr.bf16.mxu0 %v3462
      %3527 = vmatpush2.bf16.msra.mxu0 %v3461
      %3528 = vmatprep.subr.bf16.mxu0 %v3460
      %3529 = vmatpush2.bf16.msra.mxu0 %v3459
      %3530 = vmatprep.subr.bf16.mxu0 %v3458
      %3531 = vmatpush2.bf16.msra.mxu0 %v3457
      %3532 = vmatprep.mubr.bf16.mxu0 %v3492
      %3533 = vmatmul.mubr.bf16.gmra.mxu0 %v3363
      %v3534 = vpop.f32.mrf.mxu0
      %v3535 = vadd.f32 %v3358, %v3534
      %v3536 = vpop.f32.mrf.mxu0
      %v3537 = vadd.f32 %v3358, %v3536
      %v3538 = vpop.f32.mrf.mxu0
      %v3539 = vpop.f32.mrf.mxu0
      %3540 = vdwg.mxu0
      %v3541 = vld [vmem:[%s1 + $0x208] sm:$0xff]
      %3543 = vset.pattern.permute.xlu0 0
      %3544 = vperm.xlu0 %3543, %v3541
      %v3545 = vpop.permute.xlu0 %3544
      %v3547 = vmul.f32 %v2885, %v3545
      %v3548 = vmul.f32 %v2887, %v3545
      %v3549 = vld [vmem:[%s1 + $0x210] sm:$0xff]
      %3551 = vset.pattern.permute.xlu0 0
      %3552 = vperm.xlu0 %3551, %v3549
      %v3553 = vpop.permute.xlu0 %3552
      %v3555 = vadd.f32 %v3547, %v3553
      %v3556 = vadd.f32 %v3548, %v3553
      %v3557 = vmax.f32 %v3555, 0.0
      %v3558 = vmax.f32 %v3556, 0.0
      %3559 = vrot.lane.b32.xlu0 %v3557, 17
      %v3560 = vpop.permute.xlu0 %3559
      %3561 = vrot.lane.b32.xlu0 %v3558, 17
      %v3562 = vpop.permute.xlu0 %3561
      %v3563 = vsel %vm392, %v3560, %v3562
      %v3564 = vsel %vm392, %v3562, %v3560
      %v3565 = vsel %vm397, %v3564, 0.0
      %v3566 = vsel %vm398, %v3563, 0.0
      %v3567 = vpack.c.bf16 %v3565, %v3565
      %v3568 = vpack.c.bf16 %v3566, %v3566
      %v3571 = vunpack.c.l.b16 %v3567
      %v3572 = vunpack.c.l.b16 %v3568
      %v3573 = vpack.c.b16 %v3572, %v3571
      %3575 = vst [vmem:[#allocation2 + $0x168] sm:$0xff] %v3573
      %3576 = vrot.lane.b32.xlu0 %v3557, 16
      %v3577 = vpop.permute.xlu0 %3576
      %3578 = vrot.lane.b32.xlu0 %v3558, 16
      %v3579 = vpop.permute.xlu0 %3578
      %v3580 = vsel %vm407, %v3577, %v3579
      %v3581 = vsel %vm407, %v3579, %v3577
      %v3582 = vsel %vm412, %v3581, 0.0
      %v3583 = vsel %vm413, %v3580, 0.0
      %v3584 = vpack.c.bf16 %v3582, %v3582
      %v3585 = vpack.c.bf16 %v3583, %v3583
      %v3588 = vunpack.c.l.b16 %v3584
      %v3589 = vunpack.c.l.b16 %v3585
      %v3590 = vpack.c.b16 %v3589, %v3588
      %3592 = vst [vmem:[#allocation2 + $0x170] sm:$0xff] %v3590
      %3593 = vrot.lane.b32.xlu0 %v3557, 15
      %v3594 = vpop.permute.xlu0 %3593
      %3595 = vrot.lane.b32.xlu0 %v3558, 15
      %v3596 = vpop.permute.xlu0 %3595
      %v3597 = vsel %vm422, %v3594, %v3596
      %v3598 = vsel %vm422, %v3596, %v3594
      %v3599 = vsel %vm427, %v3598, 0.0
      %v3600 = vsel %vm428, %v3597, 0.0
      %v3601 = vpack.c.bf16 %v3599, %v3599
      %v3602 = vpack.c.bf16 %v3600, %v3600
      %v3605 = vunpack.c.l.b16 %v3601
      %v3606 = vunpack.c.l.b16 %v3602
      %v3607 = vpack.c.b16 %v3606, %v3605
      %3609 = vst [vmem:[#allocation2 + $0x178] sm:$0xff] %v3607
      %3610 = vrot.lane.b32.xlu0 %v3557, 1
      %v3611 = vpop.permute.xlu0 %3610
      %3612 = vrot.lane.b32.xlu0 %v3558, 1
      %v3613 = vpop.permute.xlu0 %3612
      %v3614 = vsel %vm437, %v3611, %v3613
      %v3615 = vsel %vm437, %v3613, %v3611
      %v3616 = vsel %vm442, %v3615, 0.0
      %v3617 = vsel %vm443, %v3614, 0.0
      %v3618 = vpack.c.bf16 %v3616, %v3616
      %v3619 = vpack.c.bf16 %v3617, %v3617
      %v3622 = vunpack.c.l.b16 %v3618
      %v3623 = vunpack.c.l.b16 %v3619
      %v3624 = vpack.c.b16 %v3623, %v3622
      %3626 = vst [vmem:[#allocation2 + $0x180] sm:$0xff] %v3624
      %v3627 = vpack.c.bf16 %v3557, %v3557
      %v3628 = vpack.c.bf16 %v3558, %v3558
      %v3631 = vunpack.c.l.b16 %v3627
      %v3632 = vunpack.c.l.b16 %v3628
      %v3633 = vpack.c.b16 %v3632, %v3631
      %3635 = vst [vmem:[#allocation2 + $0x188] sm:$0xff] %v3633
      %3636 = vrot.lane.b32.xlu0 %v3557, 127
      %v3637 = vpop.permute.xlu0 %3636
      %3638 = vrot.lane.b32.xlu0 %v3558, 127
      %v3639 = vpop.permute.xlu0 %3638
      %v3640 = vsel %vm452, %v3637, %v3639
      %v3641 = vsel %vm452, %v3639, %v3637
      %v3642 = vsel %vm457, %v3640, 0.0
      %v3643 = vsel %vm458, %v3641, 0.0
      %v3644 = vpack.c.bf16 %v3642, %v3642
      %v3645 = vpack.c.bf16 %v3643, %v3643
      %v3648 = vunpack.c.l.b16 %v3644
      %v3649 = vunpack.c.l.b16 %v3645
      %v3650 = vpack.c.b16 %v3649, %v3648
      %3652 = vst [vmem:[#allocation2 + $0x190] sm:$0xff] %v3650
      %3653 = vrot.lane.b32.xlu0 %v3557, 113
      %v3654 = vpop.permute.xlu0 %3653
      %3655 = vrot.lane.b32.xlu0 %v3558, 113
      %v3656 = vpop.permute.xlu0 %3655
      %v3657 = vsel %vm467, %v3654, %v3656
      %v3658 = vsel %vm467, %v3656, %v3654
      %v3659 = vsel %vm472, %v3657, 0.0
      %v3660 = vsel %vm473, %v3658, 0.0
      %v3661 = vpack.c.bf16 %v3659, %v3659
      %v3662 = vpack.c.bf16 %v3660, %v3660
      %v3665 = vunpack.c.l.b16 %v3661
      %v3666 = vunpack.c.l.b16 %v3662
      %v3667 = vpack.c.b16 %v3666, %v3665
      %3669 = vst [vmem:[#allocation2 + $0x198] sm:$0xff] %v3667
      %3670 = vrot.lane.b32.xlu0 %v3557, 112
      %v3671 = vpop.permute.xlu0 %3670
      %3672 = vrot.lane.b32.xlu0 %v3558, 112
      %v3673 = vpop.permute.xlu0 %3672
      %v3674 = vsel %vm482, %v3671, %v3673
      %v3675 = vsel %vm482, %v3673, %v3671
      %v3676 = vsel %vm487, %v3674, 0.0
      %v3677 = vsel %vm488, %v3675, 0.0
      %v3678 = vpack.c.bf16 %v3676, %v3676
      %v3679 = vpack.c.bf16 %v3677, %v3677
      %v3682 = vunpack.c.l.b16 %v3678
      %v3683 = vunpack.c.l.b16 %v3679
      %v3684 = vpack.c.b16 %v3683, %v3682
      %3686 = vst [vmem:[#allocation2 + $0x1a0] sm:$0xff] %v3684
      %3687 = vrot.lane.b32.xlu0 %v3557, 111
      %v3688 = vpop.permute.xlu0 %3687
      %3689 = vrot.lane.b32.xlu0 %v3558, 111
      %v3690 = vpop.permute.xlu0 %3689
      %v3691 = vsel %vm497, %v3688, %v3690
      %v3692 = vsel %vm497, %v3690, %v3688
      %v3693 = vsel %vm502, %v3691, 0.0
      %v3694 = vsel %vm503, %v3692, 0.0
      %v3695 = vpack.c.bf16 %v3693, %v3693
      %v3696 = vpack.c.bf16 %v3694, %v3694
      %v3699 = vunpack.c.l.b16 %v3695
      %v3700 = vunpack.c.l.b16 %v3696
      %v3701 = vpack.c.b16 %v3700, %v3699
      %3703 = vst [vmem:[#allocation2 + $0x1a8] sm:$0xff] %v3701
      %v3704 = vld [vmem:[%s7] sm:$0xf]
      %v3705 = vld [vmem:[#allocation2 + $0x168] sm:$0xff]
      %v3706 = vld [vmem:[#allocation2 + $0x170] sm:$0xff]
      %v3707 = vld [vmem:[#allocation2 + $0x178] sm:$0xff]
      %v3708 = vld [vmem:[#allocation2 + $0x180] sm:$0xff]
      %v3709 = vld [vmem:[#allocation2 + $0x188] sm:$0xff]
      %v3710 = vld [vmem:[#allocation2 + $0x190] sm:$0xff]
      %v3711 = vld [vmem:[#allocation2 + $0x198] sm:$0xff]
      %v3712 = vld [vmem:[#allocation2 + $0x1a0] sm:$0xff]
      %v3713 = vld [vmem:[#allocation2 + $0x1a8] sm:$0xff]
      %v3714 = vld [vmem:[%s1 + $0x218] sm:$0xff]
      %3716 = vset.pattern.permute.xlu0 0
      %3717 = vperm.xlu0 %3716, %v3714
      %v3718 = vpop.permute.xlu0 %3717
      %v3729 = vunpack.c.l.b16 %v3705
      %v3730 = vunpack.c.h.b16 %v3705
      %v3731 = vunpack.c.l.b16 %v3706
      %v3732 = vunpack.c.h.b16 %v3706
      %v3733 = vunpack.c.l.b16 %v3707
      %v3734 = vunpack.c.h.b16 %v3707
      %v3735 = vunpack.c.l.b16 %v3708
      %v3736 = vunpack.c.h.b16 %v3708
      %v3737 = vunpack.c.l.b16 %v3709
      %v3738 = vunpack.c.h.b16 %v3709
      %v3739 = vunpack.c.l.b16 %v3710
      %v3740 = vunpack.c.h.b16 %v3710
      %v3741 = vunpack.c.l.b16 %v3711
      %v3742 = vunpack.c.h.b16 %v3711
      %v3743 = vunpack.c.l.b16 %v3712
      %v3744 = vunpack.c.h.b16 %v3712
      %v3745 = vunpack.c.l.b16 %v3713
      %v3746 = vunpack.c.h.b16 %v3713
      %v3747 = vpack.c.b16 %v3731, %v3729
      %v3748 = vpack.c.b16 %v3732, %v3730
      %v3749 = vpack.c.b16 %v3735, %v3733
      %v3750 = vpack.c.b16 %v3736, %v3734
      %v3751 = vpack.c.b16 %v3739, %v3737
      %v3752 = vpack.c.b16 %v3740, %v3738
      %v3753 = vpack.c.b16 %v3743, %v3741
      %v3754 = vpack.c.b16 %v3744, %v3742
      %v3755 = vpack.c.b16 %v3745, %v3745
      %v3756 = vpack.c.b16 %v3746, %v3746
      %v3766 = vsel %vm1416, %v3704, 0
      %v3769 = vsel %vm1420, %v3755, 0
      %v3772 = vsel %vm1420, %v3756, 0
      %3774 = vmatprep.subr.bf16.mxu0 0
      %3775 = vmatpush1.bf16.msra.mxu0 0
      %3776 = vmatprep.subr.bf16.mxu0 0
      %3777 = vmatpush1.bf16.msra.mxu0 0
      %3778 = vmatprep.subr.bf16.mxu0 0
      %3779 = vmatpush1.bf16.msra.mxu0 0
      %3780 = vmatprep.subr.bf16.mxu0 %v3772
      %3781 = vmatpush1.bf16.msra.mxu0 %v3769
      %3782 = vmatprep.subr.bf16.mxu0 %v3754
      %3783 = vmatpush1.bf16.msra.mxu0 %v3753
      %3784 = vmatprep.subr.bf16.mxu0 %v3752
      %3785 = vmatpush1.bf16.msra.mxu0 %v3751
      %3786 = vmatprep.subr.bf16.mxu0 %v3750
      %3787 = vmatpush1.bf16.msra.mxu0 %v3749
      %3788 = vmatprep.subr.bf16.mxu0 %v3748
      %3789 = vmatpush1.bf16.msra.mxu0 %v3747
      %3790 = vmatprep.subr.bf16.mxu0 0
      %3791 = vmatpush2.bf16.msra.mxu0 0
      %3792 = vmatprep.subr.bf16.mxu0 0
      %3793 = vmatpush2.bf16.msra.mxu0 0
      %3794 = vmatprep.subr.bf16.mxu0 0
      %3795 = vmatpush2.bf16.msra.mxu0 0
      %3796 = vmatprep.subr.bf16.mxu0 0
      %3797 = vmatpush2.bf16.msra.mxu0 0
      %3798 = vmatprep.subr.bf16.mxu0 0
      %3799 = vmatpush2.bf16.msra.mxu0 0
      %3800 = vmatprep.subr.bf16.mxu0 0
      %3801 = vmatpush2.bf16.msra.mxu0 0
      %3802 = vmatprep.subr.bf16.mxu0 0
      %3803 = vmatpush2.bf16.msra.mxu0 0
      %3804 = vmatprep.subr.bf16.mxu0 0
      %3805 = vmatpush2.bf16.msra.mxu0 0
      %3806 = vmatprep.mubr.bf16.mxu0 0
      %3807 = vmatmul.mubr.bf16.gmra.mxu0 %v3766
      %v3808 = vpop.f32.mrf.mxu0
      %v3809 = vadd.f32 %v3718, %v3808
      %v3810 = vpop.f32.mrf.mxu0
      %v3811 = vadd.f32 %v3718, %v3810
      %v3812 = vpop.f32.mrf.mxu0
      %v3813 = vpop.f32.mrf.mxu0
      %3814 = vdwg.mxu0
      %3815 = vst [vmem:[%s305 + $0x50] sm:$0xff] %v2875
      %3816 = vst [vmem:[%s305 + $0x58] sm:$0xff] %v2877
      %3817 = vst [vmem:[%s305 + $0x60] sm:$0xff] %v3535
      %3818 = vst [vmem:[%s305 + $0x68] sm:$0xff] %v3537
      %3819 = vst [vmem:[%s305 + $0x70] sm:$0xff] %v3809
      %3820 = vst [vmem:[%s305 + $0x78] sm:$0xff] %v3811
      %3821 = vst [vmem:[%s305 + $0x80] sm:$0xff] %v2889
      %3822 = vst [vmem:[%s305 + $0x88] sm:$0xff] %v2891
      %p3823 = scmp.lt.s32.totalorder %s19, 1
      %s3824 = scalar_select %p3823, %s19, 1
      %s3825 = smul.addr %s3824, 18
      %s3826 = smul.addr %s3825, 8
      %s3827 = scalar_lea.vmem %s8, %s3826
      // Predicated region
      $region53: #{dense_module_forward.1} parent=51 // pred_check
        %p3828 = pneg %p210
      $region54: #{dense_module_forward.1} parent=51 // pred_check_branch
        %3830 = sbr.rel (%p3828) target = $region56
      $region55: #{dense_module_forward.1} parent=51 // pred_region
        _
      $region56: #{dense_module_forward.1} parent=51 // pred_fallthru
        _
    $region52: #{dense_module_forward.1} parent=5 // pred_fallthru
      _
    %p3831 = scmp.le.s32.totalorder 2, %s14
    // Predicated region
    $region57: #{dense_module_forward.1} parent=5 // pred_check
      %p3832 = pneg %p3831
    $region58: #{dense_module_forward.1} parent=5 // pred_check_branch
      %3834 = sbr.rel (%p3832) target = $region60
    $region59: #{dense_module_forward.1} parent=5 // pred_region
      %s3835 = ssub.s32 %s14, 2
      // Predicated region
      $region61: #{dense_module_forward.1} parent=59 // pred_check
        %p3836 = pneg %p216
      $region62: #{dense_module_forward.1} parent=59 // pred_check_branch
        %3838 = sbr.rel (%p3836) target = $region64
      $region63: #{dense_module_forward.1} parent=59 // pred_region
        %p3839 = scmp.lt.s32.totalorder %s20, 1
        %s3840 = scalar_select %p3839, %s20, 1
        %s3841 = smul.addr %s3840, 18
        %s3842 = smul.addr %s3841, 8
        %s3843 = scalar_lea.vmem %s8, %s3842
      $region64: #{dense_module_forward.1} parent=59 // pred_fallthru
        _
    $region60: #{dense_module_forward.1} parent=5 // pred_fallthru
      _
  $region6: #{dense_module_forward.1} parent=0 // loop_footer
    %s18 = sadd.s32 1, %s14
  $region7: #{dense_module_forward.1} parent=0 // loop_footer_branch
    %13 = sbr.rel target = $region3
  $region8: #{dense_module_forward.1} parent=0 // loop_exit
    _

</llo_original>
